<compile_context>
chip_gen: v6e
topology: v6e:2x2x1
jax: 0.10.0
libtpu: 0.0.40
codegen_flags: <defaults>
</compile_context>

<pallas_src>
import functools

import jax
import jax.numpy as jnp
from jax.experimental import pallas as pl
from jax.experimental.pallas import tpu as pltpu


# ----------------------------------------------------------------------------
# Fused SSH kernel: one image per grid step.
# ----------------------------------------------------------------------------
def _ssh_fused_kernel(x_ref, w1_ref, b1_ref, w2_ref, b2_ref, w3_ref, b3_ref,
                      o_ref, xpad_ref, mpad_ref,
                      *, H, W, Cin, C2, C4, leaky):
    HW = H * W
    OC = C2 + 2 * C4

    def im2col(pad_ref, C):
        # Build the (H*W, 9*C) patch matrix from a zero-padded (H+2, W+2, C)
        # VMEM buffer -> single big-K MXU contraction per conv stage.
        cols = []
        for dy in range(3):
            for dx in range(3):
                cols.append(pad_ref[dy:dy + H, dx:dx + W, :].reshape(HW, C))
        return jnp.concatenate(cols, axis=-1)

    def leaky_relu(v):
        return jnp.where(v >= 0, v, v * leaky)

    # ---- stage 1: conv3X3 and conv5X5_1 share the input (one matmul) --------
    xpad_ref[...] = jnp.zeros_like(xpad_ref)
    xpad_ref[1:H + 1, 1:W + 1, :] = x_ref[0]
    y1 = jnp.dot(im2col(xpad_ref, Cin), w1_ref[...],
                 preferred_element_type=jnp.float32) + b1_ref[...]
    c3 = y1[:, :C2]                 # branch 1 (final ReLU applied at the end)
    c51 = leaky_relu(y1[:, C2:])    # shared stem: conv5X5_1 (BN + LeakyReLU)

    # ---- stage 2: conv5X5_2 and conv7X7_2 share c5_1 (one matmul) -----------
    mpad_ref[...] = jnp.zeros_like(mpad_ref)
    mpad_ref[1:H + 1, 1:W + 1, :] = c51.reshape(H, W, C4)
    y2 = jnp.dot(im2col(mpad_ref, C4), w2_ref[...],
                 preferred_element_type=jnp.float32) + b2_ref[...]
    c5 = y2[:, :C4]                 # branch 2 (final ReLU at the end)
    c72 = leaky_relu(y2[:, C4:])    # conv7X7_2 (BN + LeakyReLU)

    # ---- stage 3: conv7x7_3 (reuse the padded scratch; borders stay zero) ---
    mpad_ref[1:H + 1, 1:W + 1, :] = c72.reshape(H, W, C4)
    c7 = jnp.dot(im2col(mpad_ref, C4), w3_ref[...],
                 preferred_element_type=jnp.float32) + b3_ref[...]

    # ---- fused F.relu(cat(...)): one lane-dense store of the full channel ---
    out = jnp.maximum(jnp.concatenate([c3, c5, c7], axis=-1), 0.0)
    o_ref[...] = out.reshape(1, H, W, OC).astype(o_ref.dtype)


def ssh_pallas(x_nhwc, w1, b1, w2, b2, w3, b3, *, C2, C4, leaky):
    """Fused SSH block. x: (N, H, W, Cin) -> (N, H, W, C2 + 2*C4)."""
    N, H, W, Cin = x_nhwc.shape
    OC = C2 + 2 * C4
    kernel = functools.partial(_ssh_fused_kernel, H=H, W=W, Cin=Cin,
                               C2=C2, C4=C4, leaky=leaky)
    return pl.pallas_call(
        kernel,
        out_shape=jax.ShapeDtypeStruct((N, H, W, OC), jnp.float32),
        grid=(N,),
        in_specs=[
            pl.BlockSpec((1, H, W, Cin), lambda n: (n, 0, 0, 0)),
            pl.BlockSpec(w1.shape, lambda n: (0, 0)),
            pl.BlockSpec(b1.shape, lambda n: (0, 0)),
            pl.BlockSpec(w2.shape, lambda n: (0, 0)),
            pl.BlockSpec(b2.shape, lambda n: (0, 0)),
            pl.BlockSpec(w3.shape, lambda n: (0, 0)),
            pl.BlockSpec(b3.shape, lambda n: (0, 0)),
        ],
        out_specs=pl.BlockSpec((1, H, W, OC), lambda n: (n, 0, 0, 0)),
        scratch_shapes=[
            pltpu.VMEM((H + 2, W + 2, Cin), jnp.float32),   # padded input
            pltpu.VMEM((H + 2, W + 2, C4), jnp.float32),    # padded c5_1 / c7_2
        ],
        compiler_params=pltpu.CompilerParams(
            dimension_semantics=("parallel",)),
    )(x_nhwc, w1, b1, w2, b2, w3, b3)


# ----------------------------------------------------------------------------
# Parameter construction (deterministic, synthetic).  BatchNorm is eval-mode:
#   scale = gamma / sqrt(var + eps);  shift = beta - mean * scale
# ----------------------------------------------------------------------------
def _make_conv_bn_params(key, cin, cout, eps=1e-5):
    kw, kg, kb, km, kv = jax.random.split(key, 5)
    w = jax.random.normal(kw, (3, 3, cin, cout), jnp.float32) * 0.1   # HWIO
    gamma = 1.0 + 0.1 * jax.random.normal(kg, (cout,), jnp.float32)
    beta = 0.1 * jax.random.normal(kb, (cout,), jnp.float32)
    mean = 0.1 * jax.random.normal(km, (cout,), jnp.float32)
    var = jnp.abs(jax.random.normal(kv, (cout,), jnp.float32)) + 0.5
    scale = gamma / jnp.sqrt(var + eps)
    shift = beta - mean * scale
    return {"w": w, "scale": scale, "shift": shift}


def init_ssh_params(key, in_channel, out_channel):
    assert out_channel % 4 == 0
    ks = jax.random.split(key, 5)
    return {
        "conv3X3":   _make_conv_bn_params(ks[0], in_channel, out_channel // 2),
        "conv5X5_1": _make_conv_bn_params(ks[1], in_channel, out_channel // 4),
        "conv5X5_2": _make_conv_bn_params(ks[2], out_channel // 4, out_channel // 4),
        "conv7X7_2": _make_conv_bn_params(ks[3], out_channel // 4, out_channel // 4),
        "conv7x7_3": _make_conv_bn_params(ks[4], out_channel // 4, out_channel // 4),
    }


# ----------------------------------------------------------------------------
# SSH forward (matches the torch module; NCHW in / NCHW out).  jit-ed so the
# BN folding / weight packing is done once at trace time.
# ----------------------------------------------------------------------------
@functools.partial(jax.jit, static_argnums=(2,))
def ssh_forward(x_nchw, params, out_channel):
    leaky = 0.1 if out_channel <= 64 else 0.0
    C2, C4 = out_channel // 2, out_channel // 4
    x = jnp.transpose(x_nchw, (0, 2, 3, 1))          # NCHW -> NHWC
    Cin = x.shape[-1]

    def fold(prm):                                    # bake BN scale into W
        return prm["w"] * prm["scale"], prm["shift"]

    w_c3, s_c3 = fold(params["conv3X3"])
    w_51, s_51 = fold(params["conv5X5_1"])
    w_52, s_52 = fold(params["conv5X5_2"])
    w_72, s_72 = fold(params["conv7X7_2"])
    w_73, s_73 = fold(params["conv7x7_3"])

    # Stage weights: convs sharing an input share one matmul (concat on Cout).
    w1 = jnp.concatenate([w_c3, w_51], axis=-1).reshape(9 * Cin, C2 + C4)
    b1 = jnp.concatenate([s_c3, s_51]).reshape(1, C2 + C4)
    w2 = jnp.concatenate([w_52, w_72], axis=-1).reshape(9 * C4, 2 * C4)
    b2 = jnp.concatenate([s_52, s_72]).reshape(1, 2 * C4)
    w3 = w_73.reshape(9 * C4, C4)
    b3 = s_73.reshape(1, C4)

    out = ssh_pallas(x, w1, b1, w2, b2, w3, b3, C2=C2, C4=C4, leaky=leaky)
    return jnp.transpose(out, (0, 3, 1, 2))          # NHWC -> NCHW


# ----------------------------------------------------------------------------
# Pure-JAX reference (lax conv) for a correctness check.
# ----------------------------------------------------------------------------
def _ref_conv_bn(x_nhwc, prm, act, neg_slope):
    y = jax.lax.conv_general_dilated(
        x_nhwc, prm["w"], window_strides=(1, 1), padding="SAME",
        dimension_numbers=("NHWC", "HWIO", "NHWC"))
    y = y * prm["scale"] + prm["shift"]
    if act == "leaky":
        y = jnp.where(y >= 0, y, y * neg_slope)
    return y


def ssh_reference(x_nchw, params, out_channel):
    leaky = 0.1 if out_channel <= 64 else 0.0
    x = jnp.transpose(x_nchw, (0, 2, 3, 1))
    c3 = _ref_conv_bn(x, params["conv3X3"], "none", leaky)
    c5_1 = _ref_conv_bn(x, params["conv5X5_1"], "leaky", leaky)
    c5 = _ref_conv_bn(c5_1, params["conv5X5_2"], "none", leaky)
    c7_2 = _ref_conv_bn(c5_1, params["conv7X7_2"], "leaky", leaky)
    c7 = _ref_conv_bn(c7_2, params["conv7x7_3"], "none", leaky)
    out = jnp.concatenate([c3, c5, c7], axis=-1)
    out = jnp.maximum(out, 0.0)                      # F.relu after concat
    return jnp.transpose(out, (0, 3, 1, 2))


if __name__ == "__main__":
    # Small shapes consistent with the module: NCHW input.
    N, IN_CH, OUT_CH, H, W = 2, 8, 16, 16, 16

    key = jax.random.PRNGKey(0)
    kx, kp = jax.random.split(key)
    x = jax.random.normal(kx, (N, IN_CH, H, W), jnp.float32)
    params = init_ssh_params(kp, IN_CH, OUT_CH)

    out = ssh_forward(x, params, OUT_CH)
    out = jax.block_until_ready(out)

    ref = jax.block_until_ready(ssh_reference(x, params, OUT_CH))
    assert out.shape == (N, OUT_CH, H, W), out.shape
    assert jnp.allclose(out, ref, atol=1e-4, rtol=1e-4), \
        float(jnp.max(jnp.abs(out - ref)))

    print("KERNEL_OK")
</pallas_src>

<mosaic_0001>
module attributes {stable_mosaic.version = 11 : i64} {
  func.func @_ssh_fused_kernel(%arg0: i32, %arg1: memref<1x16x16x8xf32, #tpu.memory_space<vmem>>, %arg2: memref<72x12xf32, #tpu.memory_space<vmem>>, %arg3: memref<1x12xf32, #tpu.memory_space<vmem>>, %arg4: memref<36x8xf32, #tpu.memory_space<vmem>>, %arg5: memref<1x8xf32, #tpu.memory_space<vmem>>, %arg6: memref<36x4xf32, #tpu.memory_space<vmem>>, %arg7: memref<1x4xf32, #tpu.memory_space<vmem>>, %arg8: memref<1x16x16x16xf32, #tpu.memory_space<vmem>>, %arg9: memref<18x18x8xf32, #tpu.memory_space<vmem>>, %arg10: memref<18x18x4xf32, #tpu.memory_space<vmem>>) attributes {dimension_semantics = [#tpu.dimension_semantics<parallel>], iteration_bounds = array<i64: 2>, scalar_prefetch = 0 : i64, scratch_operands = 2 : i64, tpu.core_type = #tpu.core_type<tc>, window_params = [{transform_indices = @transform_0, window_bounds = array<i64: 1, 16, 16, 8>}, {pipeline_mode = #tpu.pipeline_mode<synchronous>, transform_indices = @transform_1, window_bounds = array<i64: 72, 12>}, {pipeline_mode = #tpu.pipeline_mode<synchronous>, transform_indices = @transform_2, window_bounds = array<i64: 1, 12>}, {pipeline_mode = #tpu.pipeline_mode<synchronous>, transform_indices = @transform_3, window_bounds = array<i64: 36, 8>}, {pipeline_mode = #tpu.pipeline_mode<synchronous>, transform_indices = @transform_4, window_bounds = array<i64: 1, 8>}, {pipeline_mode = #tpu.pipeline_mode<synchronous>, transform_indices = @transform_5, window_bounds = array<i64: 36, 4>}, {pipeline_mode = #tpu.pipeline_mode<synchronous>, transform_indices = @transform_6, window_bounds = array<i64: 1, 4>}, {transform_indices = @transform_7, window_bounds = array<i64: 1, 16, 16, 16>}]} {
    %cst = arith.constant 0.000000e+00 : f32
    %0 = vector.broadcast %cst : f32 to vector<18x18x8xf32>
    %c0 = arith.constant 0 : index
    %c0_0 = arith.constant 0 : index
    %c0_1 = arith.constant 0 : index
    %1 = vector.load %arg9[%c0, %c0_0, %c0_1] : memref<18x18x8xf32, #tpu.memory_space<vmem>>, vector<18x18x8xf32>
    tpu.vector_store %arg9[%c0, %c0_0, %c0_1], %0 {strides = array<i32>} : memref<18x18x8xf32, #tpu.memory_space<vmem>>, vector<18x18x8xf32>,
    %c0_2 = arith.constant 0 : index
    %c0_3 = arith.constant 0 : index
    %c0_4 = arith.constant 0 : index
    %c0_5 = arith.constant 0 : index
    %2 = vector.load %arg1[%c0_2, %c0_3, %c0_4, %c0_5] : memref<1x16x16x8xf32, #tpu.memory_space<vmem>>, vector<1x16x16x8xf32>
    %3 = vector.shape_cast %2 : vector<1x16x16x8xf32> to vector<16x16x8xf32>
    %c1 = arith.constant 1 : index
    %c1_6 = arith.constant 1 : index
    %c0_7 = arith.constant 0 : index
    %4 = vector.load %arg9[%c1, %c1_6, %c0_7] : memref<18x18x8xf32, #tpu.memory_space<vmem>>, vector<16x16x8xf32>
    tpu.vector_store %arg9[%c1, %c1_6, %c0_7], %3 {strides = array<i32>} : memref<18x18x8xf32, #tpu.memory_space<vmem>>, vector<16x16x8xf32>,
    %c0_8 = arith.constant 0 : index
    %c0_9 = arith.constant 0 : index
    %c0_10 = arith.constant 0 : index
    %5 = vector.load %arg9[%c0_8, %c0_9, %c0_10] : memref<18x18x8xf32, #tpu.memory_space<vmem>>, vector<16x16x8xf32>
    %6 = vector.shape_cast %5 : vector<16x16x8xf32> to vector<256x8xf32>
    %c0_11 = arith.constant 0 : index
    %c1_12 = arith.constant 1 : index
    %c0_13 = arith.constant 0 : index
    %7 = vector.load %arg9[%c0_11, %c1_12, %c0_13] : memref<18x18x8xf32, #tpu.memory_space<vmem>>, vector<16x16x8xf32>
    %8 = vector.shape_cast %7 : vector<16x16x8xf32> to vector<256x8xf32>
    %c0_14 = arith.constant 0 : index
    %c2 = arith.constant 2 : index
    %c0_15 = arith.constant 0 : index
    %9 = vector.load %arg9[%c0_14, %c2, %c0_15] : memref<18x18x8xf32, #tpu.memory_space<vmem>>, vector<16x16x8xf32>
    %10 = vector.shape_cast %9 : vector<16x16x8xf32> to vector<256x8xf32>
    %c1_16 = arith.constant 1 : index
    %c0_17 = arith.constant 0 : index
    %c0_18 = arith.constant 0 : index
    %11 = vector.load %arg9[%c1_16, %c0_17, %c0_18] : memref<18x18x8xf32, #tpu.memory_space<vmem>>, vector<16x16x8xf32>
    %12 = vector.shape_cast %11 : vector<16x16x8xf32> to vector<256x8xf32>
    %c1_19 = arith.constant 1 : index
    %c1_20 = arith.constant 1 : index
    %c0_21 = arith.constant 0 : index
    %13 = vector.load %arg9[%c1_19, %c1_20, %c0_21] : memref<18x18x8xf32, #tpu.memory_space<vmem>>, vector<16x16x8xf32>
    %14 = vector.shape_cast %13 : vector<16x16x8xf32> to vector<256x8xf32>
    %c1_22 = arith.constant 1 : index
    %c2_23 = arith.constant 2 : index
    %c0_24 = arith.constant 0 : index
    %15 = vector.load %arg9[%c1_22, %c2_23, %c0_24] : memref<18x18x8xf32, #tpu.memory_space<vmem>>, vector<16x16x8xf32>
    %16 = vector.shape_cast %15 : vector<16x16x8xf32> to vector<256x8xf32>
    %c2_25 = arith.constant 2 : index
    %c0_26 = arith.constant 0 : index
    %c0_27 = arith.constant 0 : index
    %17 = vector.load %arg9[%c2_25, %c0_26, %c0_27] : memref<18x18x8xf32, #tpu.memory_space<vmem>>, vector<16x16x8xf32>
    %18 = vector.shape_cast %17 : vector<16x16x8xf32> to vector<256x8xf32>
    %c2_28 = arith.constant 2 : index
    %c1_29 = arith.constant 1 : index
    %c0_30 = arith.constant 0 : index
    %19 = vector.load %arg9[%c2_28, %c1_29, %c0_30] : memref<18x18x8xf32, #tpu.memory_space<vmem>>, vector<16x16x8xf32>
    %20 = vector.shape_cast %19 : vector<16x16x8xf32> to vector<256x8xf32>
    %c2_31 = arith.constant 2 : index
    %c2_32 = arith.constant 2 : index
    %c0_33 = arith.constant 0 : index
    %21 = vector.load %arg9[%c2_31, %c2_32, %c0_33] : memref<18x18x8xf32, #tpu.memory_space<vmem>>, vector<16x16x8xf32>
    %22 = vector.shape_cast %21 : vector<16x16x8xf32> to vector<256x8xf32>
    %23 = tpu.concatenate %6, %8, %10, %12, %14, %16, %18, %20, %22 in 1 : vector<256x8xf32>, vector<256x8xf32>, vector<256x8xf32>, vector<256x8xf32>, vector<256x8xf32>, vector<256x8xf32>, vector<256x8xf32>, vector<256x8xf32>, vector<256x8xf32> -> vector<256x72xf32>
    %c0_34 = arith.constant 0 : index
    %c0_35 = arith.constant 0 : index
    %24 = vector.load %arg2[%c0_34, %c0_35] : memref<72x12xf32, #tpu.memory_space<vmem>>, vector<72x12xf32>
    %cst_36 = arith.constant dense<0.000000e+00> : vector<256x12xf32>
    %25 = tpu.matmul %23, %24, %cst_36 {dimension_numbers = #tpu.dot_dimension_numbers<[1], [0], [0], [1], [0, 0, 1, 1], [], []>} : vector<256x72xf32>, vector<72x12xf32>, vector<256x12xf32> -> vector<256x12xf32>
    %c0_37 = arith.constant 0 : index
    %c0_38 = arith.constant 0 : index
    %26 = vector.load %arg3[%c0_37, %c0_38] : memref<1x12xf32, #tpu.memory_space<vmem>>, vector<1x12xf32>
    %27 = vector.broadcast %26 : vector<1x12xf32> to vector<256x12xf32>
    %28 = arith.addf %25, %27 : vector<256x12xf32>
    %29 = vector.extract_strided_slice %28 {offsets = [0, 0], sizes = [256, 8], strides = [1, 1]} : vector<256x12xf32> to vector<256x8xf32>
    %30 = vector.extract_strided_slice %28 {offsets = [0, 8], sizes = [256, 4], strides = [1, 1]} : vector<256x12xf32> to vector<256x4xf32>
    %cst_39 = arith.constant 0.000000e+00 : f32
    %31 = vector.broadcast %cst_39 : f32 to vector<256x4xf32>
    %32 = arith.cmpf oge, %30, %31 : vector<256x4xf32>
    %cst_40 = arith.constant 1.000000e-01 : f32
    %33 = vector.broadcast %cst_40 : f32 to vector<256x4xf32>
    %34 = arith.mulf %30, %33 : vector<256x4xf32>
    %35 = arith.select %32, %30, %34 : vector<256x4xi1>, vector<256x4xf32>
    %cst_41 = arith.constant 0.000000e+00 : f32
    %36 = vector.broadcast %cst_41 : f32 to vector<18x18x4xf32>
    %c0_42 = arith.constant 0 : index
    %c0_43 = arith.constant 0 : index
    %c0_44 = arith.constant 0 : index
    %37 = vector.load %arg10[%c0_42, %c0_43, %c0_44] : memref<18x18x4xf32, #tpu.memory_space<vmem>>, vector<18x18x4xf32>
    tpu.vector_store %arg10[%c0_42, %c0_43, %c0_44], %36 {strides = array<i32>} : memref<18x18x4xf32, #tpu.memory_space<vmem>>, vector<18x18x4xf32>,
    %38 = vector.shape_cast %35 : vector<256x4xf32> to vector<16x16x4xf32>
    %c1_45 = arith.constant 1 : index
    %c1_46 = arith.constant 1 : index
    %c0_47 = arith.constant 0 : index
    %39 = vector.load %arg10[%c1_45, %c1_46, %c0_47] : memref<18x18x4xf32, #tpu.memory_space<vmem>>, vector<16x16x4xf32>
    tpu.vector_store %arg10[%c1_45, %c1_46, %c0_47], %38 {strides = array<i32>} : memref<18x18x4xf32, #tpu.memory_space<vmem>>, vector<16x16x4xf32>,
    %c0_48 = arith.constant 0 : index
    %c0_49 = arith.constant 0 : index
    %c0_50 = arith.constant 0 : index
    %40 = vector.load %arg10[%c0_48, %c0_49, %c0_50] : memref<18x18x4xf32, #tpu.memory_space<vmem>>, vector<16x16x4xf32>
    %41 = vector.shape_cast %40 : vector<16x16x4xf32> to vector<256x4xf32>
    %c0_51 = arith.constant 0 : index
    %c1_52 = arith.constant 1 : index
    %c0_53 = arith.constant 0 : index
    %42 = vector.load %arg10[%c0_51, %c1_52, %c0_53] : memref<18x18x4xf32, #tpu.memory_space<vmem>>, vector<16x16x4xf32>
    %43 = vector.shape_cast %42 : vector<16x16x4xf32> to vector<256x4xf32>
    %c0_54 = arith.constant 0 : index
    %c2_55 = arith.constant 2 : index
    %c0_56 = arith.constant 0 : index
    %44 = vector.load %arg10[%c0_54, %c2_55, %c0_56] : memref<18x18x4xf32, #tpu.memory_space<vmem>>, vector<16x16x4xf32>
    %45 = vector.shape_cast %44 : vector<16x16x4xf32> to vector<256x4xf32>
    %c1_57 = arith.constant 1 : index
    %c0_58 = arith.constant 0 : index
    %c0_59 = arith.constant 0 : index
    %46 = vector.load %arg10[%c1_57, %c0_58, %c0_59] : memref<18x18x4xf32, #tpu.memory_space<vmem>>, vector<16x16x4xf32>
    %47 = vector.shape_cast %46 : vector<16x16x4xf32> to vector<256x4xf32>
    %c1_60 = arith.constant 1 : index
    %c1_61 = arith.constant 1 : index
    %c0_62 = arith.constant 0 : index
    %48 = vector.load %arg10[%c1_60, %c1_61, %c0_62] : memref<18x18x4xf32, #tpu.memory_space<vmem>>, vector<16x16x4xf32>
    %49 = vector.shape_cast %48 : vector<16x16x4xf32> to vector<256x4xf32>
    %c1_63 = arith.constant 1 : index
    %c2_64 = arith.constant 2 : index
    %c0_65 = arith.constant 0 : index
    %50 = vector.load %arg10[%c1_63, %c2_64, %c0_65] : memref<18x18x4xf32, #tpu.memory_space<vmem>>, vector<16x16x4xf32>
    %51 = vector.shape_cast %50 : vector<16x16x4xf32> to vector<256x4xf32>
    %c2_66 = arith.constant 2 : index
    %c0_67 = arith.constant 0 : index
    %c0_68 = arith.constant 0 : index
    %52 = vector.load %arg10[%c2_66, %c0_67, %c0_68] : memref<18x18x4xf32, #tpu.memory_space<vmem>>, vector<16x16x4xf32>
    %53 = vector.shape_cast %52 : vector<16x16x4xf32> to vector<256x4xf32>
    %c2_69 = arith.constant 2 : index
    %c1_70 = arith.constant 1 : index
    %c0_71 = arith.constant 0 : index
    %54 = vector.load %arg10[%c2_69, %c1_70, %c0_71] : memref<18x18x4xf32, #tpu.memory_space<vmem>>, vector<16x16x4xf32>
    %55 = vector.shape_cast %54 : vector<16x16x4xf32> to vector<256x4xf32>
    %c2_72 = arith.constant 2 : index
    %c2_73 = arith.constant 2 : index
    %c0_74 = arith.constant 0 : index
    %56 = vector.load %arg10[%c2_72, %c2_73, %c0_74] : memref<18x18x4xf32, #tpu.memory_space<vmem>>, vector<16x16x4xf32>
    %57 = vector.shape_cast %56 : vector<16x16x4xf32> to vector<256x4xf32>
    %58 = tpu.concatenate %41, %43, %45, %47, %49, %51, %53, %55, %57 in 1 : vector<256x4xf32>, vector<256x4xf32>, vector<256x4xf32>, vector<256x4xf32>, vector<256x4xf32>, vector<256x4xf32>, vector<256x4xf32>, vector<256x4xf32>, vector<256x4xf32> -> vector<256x36xf32>
    %c0_75 = arith.constant 0 : index
    %c0_76 = arith.constant 0 : index
    %59 = vector.load %arg4[%c0_75, %c0_76] : memref<36x8xf32, #tpu.memory_space<vmem>>, vector<36x8xf32>
    %cst_77 = arith.constant dense<0.000000e+00> : vector<256x8xf32>
    %60 = tpu.matmul %58, %59, %cst_77 {dimension_numbers = #tpu.dot_dimension_numbers<[1], [0], [0], [1], [0, 0, 1, 1], [], []>} : vector<256x36xf32>, vector<36x8xf32>, vector<256x8xf32> -> vector<256x8xf32>
    %c0_78 = arith.constant 0 : index
    %c0_79 = arith.constant 0 : index
    %61 = vector.load %arg5[%c0_78, %c0_79] : memref<1x8xf32, #tpu.memory_space<vmem>>, vector<1x8xf32>
    %62 = vector.broadcast %61 : vector<1x8xf32> to vector<256x8xf32>
    %63 = arith.addf %60, %62 : vector<256x8xf32>
    %64 = vector.extract_strided_slice %63 {offsets = [0, 0], sizes = [256, 4], strides = [1, 1]} : vector<256x8xf32> to vector<256x4xf32>
    %65 = vector.extract_strided_slice %63 {offsets = [0, 4], sizes = [256, 4], strides = [1, 1]} : vector<256x8xf32> to vector<256x4xf32>
    %cst_80 = arith.constant 0.000000e+00 : f32
    %66 = vector.broadcast %cst_80 : f32 to vector<256x4xf32>
    %67 = arith.cmpf oge, %65, %66 : vector<256x4xf32>
    %cst_81 = arith.constant 1.000000e-01 : f32
    %68 = vector.broadcast %cst_81 : f32 to vector<256x4xf32>
    %69 = arith.mulf %65, %68 : vector<256x4xf32>
    %70 = arith.select %67, %65, %69 : vector<256x4xi1>, vector<256x4xf32>
    %71 = vector.shape_cast %70 : vector<256x4xf32> to vector<16x16x4xf32>
    %c1_82 = arith.constant 1 : index
    %c1_83 = arith.constant 1 : index
    %c0_84 = arith.constant 0 : index
    %72 = vector.load %arg10[%c1_82, %c1_83, %c0_84] : memref<18x18x4xf32, #tpu.memory_space<vmem>>, vector<16x16x4xf32>
    tpu.vector_store %arg10[%c1_82, %c1_83, %c0_84], %71 {strides = array<i32>} : memref<18x18x4xf32, #tpu.memory_space<vmem>>, vector<16x16x4xf32>,
    %c0_85 = arith.constant 0 : index
    %c0_86 = arith.constant 0 : index
    %c0_87 = arith.constant 0 : index
    %73 = vector.load %arg10[%c0_85, %c0_86, %c0_87] : memref<18x18x4xf32, #tpu.memory_space<vmem>>, vector<16x16x4xf32>
    %74 = vector.shape_cast %73 : vector<16x16x4xf32> to vector<256x4xf32>
    %c0_88 = arith.constant 0 : index
    %c1_89 = arith.constant 1 : index
    %c0_90 = arith.constant 0 : index
    %75 = vector.load %arg10[%c0_88, %c1_89, %c0_90] : memref<18x18x4xf32, #tpu.memory_space<vmem>>, vector<16x16x4xf32>
    %76 = vector.shape_cast %75 : vector<16x16x4xf32> to vector<256x4xf32>
    %c0_91 = arith.constant 0 : index
    %c2_92 = arith.constant 2 : index
    %c0_93 = arith.constant 0 : index
    %77 = vector.load %arg10[%c0_91, %c2_92, %c0_93] : memref<18x18x4xf32, #tpu.memory_space<vmem>>, vector<16x16x4xf32>
    %78 = vector.shape_cast %77 : vector<16x16x4xf32> to vector<256x4xf32>
    %c1_94 = arith.constant 1 : index
    %c0_95 = arith.constant 0 : index
    %c0_96 = arith.constant 0 : index
    %79 = vector.load %arg10[%c1_94, %c0_95, %c0_96] : memref<18x18x4xf32, #tpu.memory_space<vmem>>, vector<16x16x4xf32>
    %80 = vector.shape_cast %79 : vector<16x16x4xf32> to vector<256x4xf32>
    %c1_97 = arith.constant 1 : index
    %c1_98 = arith.constant 1 : index
    %c0_99 = arith.constant 0 : index
    %81 = vector.load %arg10[%c1_97, %c1_98, %c0_99] : memref<18x18x4xf32, #tpu.memory_space<vmem>>, vector<16x16x4xf32>
    %82 = vector.shape_cast %81 : vector<16x16x4xf32> to vector<256x4xf32>
    %c1_100 = arith.constant 1 : index
    %c2_101 = arith.constant 2 : index
    %c0_102 = arith.constant 0 : index
    %83 = vector.load %arg10[%c1_100, %c2_101, %c0_102] : memref<18x18x4xf32, #tpu.memory_space<vmem>>, vector<16x16x4xf32>
    %84 = vector.shape_cast %83 : vector<16x16x4xf32> to vector<256x4xf32>
    %c2_103 = arith.constant 2 : index
    %c0_104 = arith.constant 0 : index
    %c0_105 = arith.constant 0 : index
    %85 = vector.load %arg10[%c2_103, %c0_104, %c0_105] : memref<18x18x4xf32, #tpu.memory_space<vmem>>, vector<16x16x4xf32>
    %86 = vector.shape_cast %85 : vector<16x16x4xf32> to vector<256x4xf32>
    %c2_106 = arith.constant 2 : index
    %c1_107 = arith.constant 1 : index
    %c0_108 = arith.constant 0 : index
    %87 = vector.load %arg10[%c2_106, %c1_107, %c0_108] : memref<18x18x4xf32, #tpu.memory_space<vmem>>, vector<16x16x4xf32>
    %88 = vector.shape_cast %87 : vector<16x16x4xf32> to vector<256x4xf32>
    %c2_109 = arith.constant 2 : index
    %c2_110 = arith.constant 2 : index
    %c0_111 = arith.constant 0 : index
    %89 = vector.load %arg10[%c2_109, %c2_110, %c0_111] : memref<18x18x4xf32, #tpu.memory_space<vmem>>, vector<16x16x4xf32>
    %90 = vector.shape_cast %89 : vector<16x16x4xf32> to vector<256x4xf32>
    %91 = tpu.concatenate %74, %76, %78, %80, %82, %84, %86, %88, %90 in 1 : vector<256x4xf32>, vector<256x4xf32>, vector<256x4xf32>, vector<256x4xf32>, vector<256x4xf32>, vector<256x4xf32>, vector<256x4xf32>, vector<256x4xf32>, vector<256x4xf32> -> vector<256x36xf32>
    %c0_112 = arith.constant 0 : index
    %c0_113 = arith.constant 0 : index
    %92 = vector.load %arg6[%c0_112, %c0_113] : memref<36x4xf32, #tpu.memory_space<vmem>>, vector<36x4xf32>
    %cst_114 = arith.constant dense<0.000000e+00> : vector<256x4xf32>
    %93 = tpu.matmul %91, %92, %cst_114 {dimension_numbers = #tpu.dot_dimension_numbers<[1], [0], [0], [1], [0, 0, 1, 1], [], []>} : vector<256x36xf32>, vector<36x4xf32>, vector<256x4xf32> -> vector<256x4xf32>
    %c0_115 = arith.constant 0 : index
    %c0_116 = arith.constant 0 : index
    %94 = vector.load %arg7[%c0_115, %c0_116] : memref<1x4xf32, #tpu.memory_space<vmem>>, vector<1x4xf32>
    %95 = vector.broadcast %94 : vector<1x4xf32> to vector<256x4xf32>
    %96 = arith.addf %93, %95 : vector<256x4xf32>
    %97 = tpu.concatenate %29, %64, %96 in 1 : vector<256x8xf32>, vector<256x4xf32>, vector<256x4xf32> -> vector<256x16xf32>
    %cst_117 = arith.constant 0.000000e+00 : f32
    %98 = vector.broadcast %cst_117 : f32 to vector<256x16xf32>
    %99 = arith.maximumf %97, %98 : vector<256x16xf32>
    %100 = vector.shape_cast %99 : vector<256x16xf32> to vector<1x16x16x16xf32>
    %c0_118 = arith.constant 0 : index
    %c0_119 = arith.constant 0 : index
    %c0_120 = arith.constant 0 : index
    %c0_121 = arith.constant 0 : index
    %101 = vector.load %arg8[%c0_118, %c0_119, %c0_120, %c0_121] : memref<1x16x16x16xf32, #tpu.memory_space<vmem>>, vector<1x16x16x16xf32>
    tpu.vector_store %arg8[%c0_118, %c0_119, %c0_120, %c0_121], %100 {strides = array<i32>} : memref<1x16x16x16xf32, #tpu.memory_space<vmem>>, vector<1x16x16x16xf32>,
    return
  }
  func.func @transform_0(%arg0: i32) -> (i32, i32, i32, i32) {
    %c0_i32 = arith.constant 0 : i32
    %c0_i32_0 = arith.constant 0 : i32
    %c0_i32_1 = arith.constant 0 : i32
    %c0_i32_2 = arith.constant 0 : i32
    return %arg0, %c0_i32, %c0_i32_0, %c0_i32_1 : i32, i32, i32, i32
  }
  func.func @transform_1(%arg0: i32) -> (i32, i32) {
    %c0_i32 = arith.constant 0 : i32
    %c0_i32_0 = arith.constant 0 : i32
    %c0_i32_1 = arith.constant 0 : i32
    return %c0_i32, %c0_i32_0 : i32, i32
  }
  func.func @transform_2(%arg0: i32) -> (i32, i32) {
    %c0_i32 = arith.constant 0 : i32
    %c0_i32_0 = arith.constant 0 : i32
    %c0_i32_1 = arith.constant 0 : i32
    return %c0_i32, %c0_i32_0 : i32, i32
  }
  func.func @transform_3(%arg0: i32) -> (i32, i32) {
    %c0_i32 = arith.constant 0 : i32
    %c0_i32_0 = arith.constant 0 : i32
    %c0_i32_1 = arith.constant 0 : i32
    return %c0_i32, %c0_i32_0 : i32, i32
  }
  func.func @transform_4(%arg0: i32) -> (i32, i32) {
    %c0_i32 = arith.constant 0 : i32
    %c0_i32_0 = arith.constant 0 : i32
    %c0_i32_1 = arith.constant 0 : i32
    return %c0_i32, %c0_i32_0 : i32, i32
  }
  func.func @transform_5(%arg0: i32) -> (i32, i32) {
    %c0_i32 = arith.constant 0 : i32
    %c0_i32_0 = arith.constant 0 : i32
    %c0_i32_1 = arith.constant 0 : i32
    return %c0_i32, %c0_i32_0 : i32, i32
  }
  func.func @transform_6(%arg0: i32) -> (i32, i32) {
    %c0_i32 = arith.constant 0 : i32
    %c0_i32_0 = arith.constant 0 : i32
    %c0_i32_1 = arith.constant 0 : i32
    return %c0_i32, %c0_i32_0 : i32, i32
  }
  func.func @transform_7(%arg0: i32) -> (i32, i32, i32, i32) {
    %c0_i32 = arith.constant 0 : i32
    %c0_i32_0 = arith.constant 0 : i32
    %c0_i32_1 = arith.constant 0 : i32
    %c0_i32_2 = arith.constant 0 : i32
    return %arg0, %c0_i32, %c0_i32_0, %c0_i32_1 : i32, i32, i32, i32
  }
}

</mosaic_0001>

<llo_original>
// kernel: ssh_forward.1
$region0: #{ssh_forward.1}
  #allocation0 [shape = 'u32[]', space=smem, size = 0x4, offset = 0x4, fixed_abs, tag = 'smem constant byte address 0x4 - core index']
  #allocation1 [shape = 'u32[144,128]{1,0:T(1,128)}', space=vmem, size = 0x12000, scoped, tag = 'internal scratch']
  #allocation2 [shape = 'f32[18,18,8]{2,1,0:T(8,128)}', space=vmem, size = 0x36000, scoped, tag = 'scratch operand']
  #allocation3 [shape = 'f32[18,18,4]{2,1,0:T(8,128)}', space=vmem, size = 0x36000, scoped, tag = 'scratch operand']
  %s0 = inlined_call_operand.vmem [shape: f32[2,16,16,8], index: 0, kind: input, shape index: {}]
  %s1 = inlined_call_operand.vmem [shape: f32[72,12], index: 1, kind: input, shape index: {}]
  %s2 = inlined_call_operand.vmem [shape: f32[1,12], index: 2, kind: input, shape index: {}]
  %s3 = inlined_call_operand.vmem [shape: f32[36,8], index: 3, kind: input, shape index: {}]
  %s4 = inlined_call_operand.vmem [shape: f32[1,8], index: 4, kind: input, shape index: {}]
  %s5 = inlined_call_operand.vmem [shape: f32[36,4], index: 5, kind: input, shape index: {}]
  %s6 = inlined_call_operand.vmem [shape: f32[1,4], index: 6, kind: input, shape index: {}]
  %s7 = inlined_call_operand.vmem [shape: f32[2,16,16,16], index: 7, kind: output, shape index: {}]
  %s8 = sld [smem:[#allocation0]]
  $region61: #{ssh_forward.1} parent=0
    _
  %s10 = ssub.s32 1, %s8
  %s11 = scalar_select 0, %s10, %s8
  loop: start=0, step=1, limit=4
  $region2: #{ssh_forward.1} parent=0 // loop_pre_header
    _
  $region3: #{ssh_forward.1} parent=0 // loop_header
    %s13 = sphi 0, %s17
    %p14 = scmp.ge.s32.totalorder %s13, 4
    %s23 = sphi 0, %s25
    %s26 = sphi 0, %s23
    %s27 = sphi 0, %s26
    %s43 = sphi 0, %s27
    %s47 = sphi 0, %s47
    %s49 = sphi 0, %s47
    %s50 = sphi 0, %s49
    %s64 = sphi 0, %s50
    %s68 = sphi 0, %s68
    %s70 = sphi 0, %s68
    %s71 = sphi 0, %s70
    %s85 = sphi 0, %s71
    %s89 = sphi 0, %s89
    %s91 = sphi 0, %s89
    %s92 = sphi 0, %s91
    %s106 = sphi 0, %s92
    %s110 = sphi 0, %s110
    %s112 = sphi 0, %s110
    %s113 = sphi 0, %s112
    %s127 = sphi 0, %s113
    %s131 = sphi 0, %s131
    %s133 = sphi 0, %s131
    %s134 = sphi 0, %s133
    %s148 = sphi 0, %s134
    %s152 = sphi 0, %s152
    %s154 = sphi 0, %s152
    %s155 = sphi 0, %s154
    %s169 = sphi 0, %s155
    %s175 = sphi 0, %s177
    %s178 = sphi 0, %s175
    %s179 = sphi 0, %s178
    %s195 = sphi 0, %s179
  $region4: #{ssh_forward.1} parent=0 // loop_header_branch
    %16 = sbr.rel (%p14) target = $region8
  $region5: #{ssh_forward.1} parent=0 // loop_body
    %s18 = ssub.s32 %s13, 1
    %s19 = ssub.s32 %s13, 2
    %s20 = sadd.s32 %s13, 1
    %s21 = ssub.s32 %s13, %s20
    %p22 = scmp.eq.s32.totalorder %s21, 0
    %s24 = sadd.s32 %s23, 1
    %s25 = scalar_select %p22, %s23, %s24
    %p28 = pneg %p22
    %p29 = scmp.eq.s32.totalorder %s13, 1
    %p30 = por %p28, %p29
    %p31 = scmp.ne.s32.totalorder %s23, %s26
    %p32 = scmp.eq.s32.totalorder %s13, 0
    %p33 = por %p31, %p32
    %p34 = scmp.ne.s32.totalorder %s23, %s26
    %p35 = scmp.eq.s32.totalorder %s18, 1
    %p36 = por %p34, %p35
    %p37 = scmp.ne.s32.totalorder %s26, %s27
    %p38 = scmp.eq.s32.totalorder %s18, 0
    %p39 = por %p37, %p38
    %p40 = scmp.ne.s32.totalorder %s26, %s27
    %p41 = scmp.eq.s32.totalorder %s19, 1
    %p42 = por %p40, %p41
    %p44 = scmp.ne.s32.totalorder %s27, %s43
    %p45 = scmp.eq.s32.totalorder %s19, 0
    %p46 = por %p44, %p45
    %s48 = sadd.s32 %s47, 1
    %p51 = scmp.eq.s32.totalorder %s13, 1
    %p52 = scmp.ne.s32.totalorder %s47, %s49
    %p53 = scmp.eq.s32.totalorder %s13, 0
    %p54 = por %p52, %p53
    %p55 = scmp.ne.s32.totalorder %s47, %s49
    %p56 = scmp.eq.s32.totalorder %s18, 1
    %p57 = por %p55, %p56
    %p58 = scmp.ne.s32.totalorder %s49, %s50
    %p59 = scmp.eq.s32.totalorder %s18, 0
    %p60 = por %p58, %p59
    %p61 = scmp.ne.s32.totalorder %s49, %s50
    %p62 = scmp.eq.s32.totalorder %s19, 1
    %p63 = por %p61, %p62
    %p65 = scmp.ne.s32.totalorder %s50, %s64
    %p66 = scmp.eq.s32.totalorder %s19, 0
    %p67 = por %p65, %p66
    %s69 = sadd.s32 %s68, 1
    %p72 = scmp.eq.s32.totalorder %s13, 1
    %p73 = scmp.ne.s32.totalorder %s68, %s70
    %p74 = scmp.eq.s32.totalorder %s13, 0
    %p75 = por %p73, %p74
    %p76 = scmp.ne.s32.totalorder %s68, %s70
    %p77 = scmp.eq.s32.totalorder %s18, 1
    %p78 = por %p76, %p77
    %p79 = scmp.ne.s32.totalorder %s70, %s71
    %p80 = scmp.eq.s32.totalorder %s18, 0
    %p81 = por %p79, %p80
    %p82 = scmp.ne.s32.totalorder %s70, %s71
    %p83 = scmp.eq.s32.totalorder %s19, 1
    %p84 = por %p82, %p83
    %p86 = scmp.ne.s32.totalorder %s71, %s85
    %p87 = scmp.eq.s32.totalorder %s19, 0
    %p88 = por %p86, %p87
    %s90 = sadd.s32 %s89, 1
    %p93 = scmp.eq.s32.totalorder %s13, 1
    %p94 = scmp.ne.s32.totalorder %s89, %s91
    %p95 = scmp.eq.s32.totalorder %s13, 0
    %p96 = por %p94, %p95
    %p97 = scmp.ne.s32.totalorder %s89, %s91
    %p98 = scmp.eq.s32.totalorder %s18, 1
    %p99 = por %p97, %p98
    %p100 = scmp.ne.s32.totalorder %s91, %s92
    %p101 = scmp.eq.s32.totalorder %s18, 0
    %p102 = por %p100, %p101
    %p103 = scmp.ne.s32.totalorder %s91, %s92
    %p104 = scmp.eq.s32.totalorder %s19, 1
    %p105 = por %p103, %p104
    %p107 = scmp.ne.s32.totalorder %s92, %s106
    %p108 = scmp.eq.s32.totalorder %s19, 0
    %p109 = por %p107, %p108
    %s111 = sadd.s32 %s110, 1
    %p114 = scmp.eq.s32.totalorder %s13, 1
    %p115 = scmp.ne.s32.totalorder %s110, %s112
    %p116 = scmp.eq.s32.totalorder %s13, 0
    %p117 = por %p115, %p116
    %p118 = scmp.ne.s32.totalorder %s110, %s112
    %p119 = scmp.eq.s32.totalorder %s18, 1
    %p120 = por %p118, %p119
    %p121 = scmp.ne.s32.totalorder %s112, %s113
    %p122 = scmp.eq.s32.totalorder %s18, 0
    %p123 = por %p121, %p122
    %p124 = scmp.ne.s32.totalorder %s112, %s113
    %p125 = scmp.eq.s32.totalorder %s19, 1
    %p126 = por %p124, %p125
    %p128 = scmp.ne.s32.totalorder %s113, %s127
    %p129 = scmp.eq.s32.totalorder %s19, 0
    %p130 = por %p128, %p129
    %s132 = sadd.s32 %s131, 1
    %p135 = scmp.eq.s32.totalorder %s13, 1
    %p136 = scmp.ne.s32.totalorder %s131, %s133
    %p137 = scmp.eq.s32.totalorder %s13, 0
    %p138 = por %p136, %p137
    %p139 = scmp.ne.s32.totalorder %s131, %s133
    %p140 = scmp.eq.s32.totalorder %s18, 1
    %p141 = por %p139, %p140
    %p142 = scmp.ne.s32.totalorder %s133, %s134
    %p143 = scmp.eq.s32.totalorder %s18, 0
    %p144 = por %p142, %p143
    %p145 = scmp.ne.s32.totalorder %s133, %s134
    %p146 = scmp.eq.s32.totalorder %s19, 1
    %p147 = por %p145, %p146
    %p149 = scmp.ne.s32.totalorder %s134, %s148
    %p150 = scmp.eq.s32.totalorder %s19, 0
    %p151 = por %p149, %p150
    %s153 = sadd.s32 %s152, 1
    %p156 = scmp.eq.s32.totalorder %s13, 1
    %p157 = scmp.ne.s32.totalorder %s152, %s154
    %p158 = scmp.eq.s32.totalorder %s13, 0
    %p159 = por %p157, %p158
    %p160 = scmp.ne.s32.totalorder %s152, %s154
    %p161 = scmp.eq.s32.totalorder %s18, 1
    %p162 = por %p160, %p161
    %p163 = scmp.ne.s32.totalorder %s154, %s155
    %p164 = scmp.eq.s32.totalorder %s18, 0
    %p165 = por %p163, %p164
    %p166 = scmp.ne.s32.totalorder %s154, %s155
    %p167 = scmp.eq.s32.totalorder %s19, 1
    %p168 = por %p166, %p167
    %p170 = scmp.ne.s32.totalorder %s155, %s169
    %p171 = scmp.eq.s32.totalorder %s19, 0
    %p172 = por %p170, %p171
    %s173 = ssub.s32 %s13, %s20
    %p174 = scmp.eq.s32.totalorder %s173, 0
    %s176 = sadd.s32 %s175, 1
    %s177 = scalar_select %p174, %s175, %s176
    %p180 = pneg %p174
    %p181 = scmp.eq.s32.totalorder %s13, 1
    %p182 = por %p180, %p181
    %p183 = scmp.ne.s32.totalorder %s175, %s178
    %p184 = scmp.eq.s32.totalorder %s13, 0
    %p185 = por %p183, %p184
    %p186 = scmp.ne.s32.totalorder %s175, %s178
    %p187 = scmp.eq.s32.totalorder %s18, 1
    %p188 = por %p186, %p187
    %p189 = scmp.ne.s32.totalorder %s178, %s179
    %p190 = scmp.eq.s32.totalorder %s18, 0
    %p191 = por %p189, %p190
    %p192 = scmp.ne.s32.totalorder %s178, %s179
    %p193 = scmp.eq.s32.totalorder %s19, 1
    %p194 = por %p192, %p193
    %p196 = scmp.ne.s32.totalorder %s179, %s195
    %p197 = scmp.eq.s32.totalorder %s19, 0
    %p198 = por %p196, %p197
    %p199 = scmp.le.s32.totalorder 1, %s13
    %p200 = scmp.lt.s32.totalorder %s13, 3
    %p201 = pnand %p199, %p200
    %p202 = pneg %p201
    // Predicated region
    $region9: #{ssh_forward.1} parent=5 // pred_check
      _
    $region10: #{ssh_forward.1} parent=5 // pred_check_branch
      %204 = sbr.rel (%p201) target = $region12
    $region11: #{ssh_forward.1} parent=5 // pred_region
      %s205 = ssub.s32 %s13, 1
      // Predicated region
      $region13: #{ssh_forward.1} parent=11 // pred_check
        %p206 = pneg %p60
      $region14: #{ssh_forward.1} parent=11 // pred_check_branch
        %208 = sbr.rel (%p206) target = $region16
      $region15: #{ssh_forward.1} parent=11 // pred_region
        _
      $region16: #{ssh_forward.1} parent=11 // pred_fallthru
        _
      // Predicated region
      $region17: #{ssh_forward.1} parent=11 // pred_check
        %p209 = pneg %p81
      $region18: #{ssh_forward.1} parent=11 // pred_check_branch
        %211 = sbr.rel (%p209) target = $region20
      $region19: #{ssh_forward.1} parent=11 // pred_region
        _
      $region20: #{ssh_forward.1} parent=11 // pred_fallthru
        _
      // Predicated region
      $region21: #{ssh_forward.1} parent=11 // pred_check
        %p212 = pneg %p102
      $region22: #{ssh_forward.1} parent=11 // pred_check_branch
        %214 = sbr.rel (%p212) target = $region24
      $region23: #{ssh_forward.1} parent=11 // pred_region
        _
      $region24: #{ssh_forward.1} parent=11 // pred_fallthru
        _
      // Predicated region
      $region25: #{ssh_forward.1} parent=11 // pred_check
        %p215 = pneg %p123
      $region26: #{ssh_forward.1} parent=11 // pred_check_branch
        %217 = sbr.rel (%p215) target = $region28
      $region27: #{ssh_forward.1} parent=11 // pred_region
        _
      $region28: #{ssh_forward.1} parent=11 // pred_fallthru
        _
      // Predicated region
      $region29: #{ssh_forward.1} parent=11 // pred_check
        %p218 = pneg %p144
      $region30: #{ssh_forward.1} parent=11 // pred_check_branch
        %220 = sbr.rel (%p218) target = $region32
      $region31: #{ssh_forward.1} parent=11 // pred_region
        _
      $region32: #{ssh_forward.1} parent=11 // pred_fallthru
        _
      // Predicated region
      $region33: #{ssh_forward.1} parent=11 // pred_check
        %p221 = pneg %p165
      $region34: #{ssh_forward.1} parent=11 // pred_check_branch
        %223 = sbr.rel (%p221) target = $region36
      $region35: #{ssh_forward.1} parent=11 // pred_region
        _
      $region36: #{ssh_forward.1} parent=11 // pred_fallthru
        _
    $region12: #{ssh_forward.1} parent=5 // pred_fallthru
      _
    %p224 = scmp.lt.s32.totalorder %s13, 2
    // Predicated region
    $region37: #{ssh_forward.1} parent=5 // pred_check
      %p225 = pneg %p224
    $region38: #{ssh_forward.1} parent=5 // pred_check_branch
      %227 = sbr.rel (%p225) target = $region40
    $region39: #{ssh_forward.1} parent=5 // pred_region
      // Predicated region
      $region41: #{ssh_forward.1} parent=39 // pred_check
        %p228 = pneg %p33
      $region42: #{ssh_forward.1} parent=39 // pred_check_branch
        %230 = sbr.rel (%p228) target = $region44
      $region43: #{ssh_forward.1} parent=39 // pred_region
        %p231 = scmp.lt.s32.totalorder %s13, 1
        %s232 = scalar_select %p231, %s13, 1
        %s233 = smul.addr %s232, 32
        %s234 = smul.addr %s233, 8
        %s235 = scalar_lea.vmem %s0, %s234
      $region44: #{ssh_forward.1} parent=39 // pred_fallthru
        _
    $region40: #{ssh_forward.1} parent=5 // pred_fallthru
      _
    %p236 = scmp.le.s32.totalorder 1, %s13
    %p237 = scmp.lt.s32.totalorder %s13, 3
    %p238 = pnand %p236, %p237
    %p239 = pneg %p238
    // Predicated region
    $region45: #{ssh_forward.1} parent=5 // pred_check
      _
    $region46: #{ssh_forward.1} parent=5 // pred_check_branch
      %241 = sbr.rel (%p238) target = $region48
    $region47: #{ssh_forward.1} parent=5 // pred_region
      %s242 = ssub.s32 %s13, 1
      %p243 = scmp.lt.s32.totalorder %s18, 1
      %s244 = scalar_select %p243, %s18, 1
      %s245 = smul.addr %s244, 32
      %s246 = smul.addr %s245, 8
      %s247 = scalar_lea.vmem %s0, %s246
      %p248 = pneg %p39
      %p249 = pneg %p36
      %p250 = pneg %p60
      %p251 = pneg %p57
      %p252 = pneg %p81
      %p253 = pneg %p78
      %p254 = pneg %p102
      %p255 = pneg %p99
      %p256 = pneg %p123
      %p257 = pneg %p120
      %p258 = pneg %p144
      %p259 = pneg %p141
      %p260 = pneg %p165
      %p261 = pneg %p162
      %p262 = pneg %p191
      %p263 = pneg %p188
      %p264 = scmp.lt.s32.totalorder %s18, 1
      %s265 = scalar_select %p264, %s18, 1
      %s266 = smul.addr %s265, 32
      %s267 = smul.addr %s266, 8
      %s268 = scalar_lea.vmem %s7, %s267
      %p269 = scmp.lt.s32.totalorder %s18, 1
      %s270 = scalar_select %p269, %s18, 1
      %s271 = smul.addr %s270, 32
      %s272 = smul.addr %s271, 8
      %s273 = scalar_lea.vmem %s0, %s272
      %p274 = scmp.lt.s32.totalorder %s18, 1
      %s275 = scalar_select %p274, %s18, 1
      %s276 = smul.addr %s275, 32
      %s277 = smul.addr %s276, 8
      %s278 = scalar_lea.vmem %s7, %s277
      %vm279 = vcmask 64512
      %280 = vst.msk [vmem:[#allocation2] sm:$0xff] %vm279, 0.0
      %281 = vst.msk [vmem:[#allocation2 + $0x8] sm:$0xff] %vm279, 0.0
      %vm282 = vcmask 58368
      %283 = vst.msk [vmem:[#allocation2 + $0x10] sm:$0x3] %vm282, 0.0
      %284 = vst.msk [vmem:[#allocation2 + $0x18] sm:$0xff] %vm279, 0.0
      %285 = vst.msk [vmem:[#allocation2 + $0x20] sm:$0xff] %vm279, 0.0
      %286 = vst.msk [vmem:[#allocation2 + $0x28] sm:$0x3] %vm282, 0.0
      %287 = vst.msk [vmem:[#allocation2 + $0x30] sm:$0xff] %vm279, 0.0
      %288 = vst.msk [vmem:[#allocation2 + $0x38] sm:$0xff] %vm279, 0.0
      %289 = vst.msk [vmem:[#allocation2 + $0x40] sm:$0x3] %vm282, 0.0
      %290 = vst.msk [vmem:[#allocation2 + $0x48] sm:$0xff] %vm279, 0.0
      %291 = vst.msk [vmem:[#allocation2 + $0x50] sm:$0xff] %vm279, 0.0
      %292 = vst.msk [vmem:[#allocation2 + $0x58] sm:$0x3] %vm282, 0.0
      %293 = vst.msk [vmem:[#allocation2 + $0x60] sm:$0xff] %vm279, 0.0
      %294 = vst.msk [vmem:[#allocation2 + $0x68] sm:$0xff] %vm279, 0.0
      %295 = vst.msk [vmem:[#allocation2 + $0x70] sm:$0x3] %vm282, 0.0
      %296 = vst.msk [vmem:[#allocation2 + $0x78] sm:$0xff] %vm279, 0.0
      %297 = vst.msk [vmem:[#allocation2 + $0x80] sm:$0xff] %vm279, 0.0
      %298 = vst.msk [vmem:[#allocation2 + $0x88] sm:$0x3] %vm282, 0.0
      %299 = vst.msk [vmem:[#allocation2 + $0x90] sm:$0xff] %vm279, 0.0
      %300 = vst.msk [vmem:[#allocation2 + $0x98] sm:$0xff] %vm279, 0.0
      %301 = vst.msk [vmem:[#allocation2 + $0xa0] sm:$0x3] %vm282, 0.0
      %302 = vst.msk [vmem:[#allocation2 + $0xa8] sm:$0xff] %vm279, 0.0
      %303 = vst.msk [vmem:[#allocation2 + $0xb0] sm:$0xff] %vm279, 0.0
      %304 = vst.msk [vmem:[#allocation2 + $0xb8] sm:$0x3] %vm282, 0.0
      %305 = vst.msk [vmem:[#allocation2 + $0xc0] sm:$0xff] %vm279, 0.0
      %306 = vst.msk [vmem:[#allocation2 + $0xc8] sm:$0xff] %vm279, 0.0
      %307 = vst.msk [vmem:[#allocation2 + $0xd0] sm:$0x3] %vm282, 0.0
      %308 = vst.msk [vmem:[#allocation2 + $0xd8] sm:$0xff] %vm279, 0.0
      %309 = vst.msk [vmem:[#allocation2 + $0xe0] sm:$0xff] %vm279, 0.0
      %310 = vst.msk [vmem:[#allocation2 + $0xe8] sm:$0x3] %vm282, 0.0
      %311 = vst.msk [vmem:[#allocation2 + $0xf0] sm:$0xff] %vm279, 0.0
      %312 = vst.msk [vmem:[#allocation2 + $0xf8] sm:$0xff] %vm279, 0.0
      %313 = vst.msk [vmem:[#allocation2 + $0x100] sm:$0x3] %vm282, 0.0
      %314 = vst.msk [vmem:[#allocation2 + $0x108] sm:$0xff] %vm279, 0.0
      %315 = vst.msk [vmem:[#allocation2 + $0x110] sm:$0xff] %vm279, 0.0
      %316 = vst.msk [vmem:[#allocation2 + $0x118] sm:$0x3] %vm282, 0.0
      %317 = vst.msk [vmem:[#allocation2 + $0x120] sm:$0xff] %vm279, 0.0
      %318 = vst.msk [vmem:[#allocation2 + $0x128] sm:$0xff] %vm279, 0.0
      %319 = vst.msk [vmem:[#allocation2 + $0x130] sm:$0x3] %vm282, 0.0
      %320 = vst.msk [vmem:[#allocation2 + $0x138] sm:$0xff] %vm279, 0.0
      %321 = vst.msk [vmem:[#allocation2 + $0x140] sm:$0xff] %vm279, 0.0
      %322 = vst.msk [vmem:[#allocation2 + $0x148] sm:$0x3] %vm282, 0.0
      %323 = vst.msk [vmem:[#allocation2 + $0x150] sm:$0xff] %vm279, 0.0
      %324 = vst.msk [vmem:[#allocation2 + $0x158] sm:$0xff] %vm279, 0.0
      %325 = vst.msk [vmem:[#allocation2 + $0x160] sm:$0x3] %vm282, 0.0
      %326 = vst.msk [vmem:[#allocation2 + $0x168] sm:$0xff] %vm279, 0.0
      %327 = vst.msk [vmem:[#allocation2 + $0x170] sm:$0xff] %vm279, 0.0
      %328 = vst.msk [vmem:[#allocation2 + $0x178] sm:$0x3] %vm282, 0.0
      %329 = vst.msk [vmem:[#allocation2 + $0x180] sm:$0xff] %vm279, 0.0
      %330 = vst.msk [vmem:[#allocation2 + $0x188] sm:$0xff] %vm279, 0.0
      %331 = vst.msk [vmem:[#allocation2 + $0x190] sm:$0x3] %vm282, 0.0
      %332 = vst.msk [vmem:[#allocation2 + $0x198] sm:$0xff] %vm279, 0.0
      %333 = vst.msk [vmem:[#allocation2 + $0x1a0] sm:$0xff] %vm279, 0.0
      %334 = vst.msk [vmem:[#allocation2 + $0x1a8] sm:$0x3] %vm282, 0.0
      %v335 = vld [vmem:[%s273] sm:$0xff]
      %v336 = vld [vmem:[%s273 + $0x8] sm:$0xff]
      %v337 = vld [vmem:[%s273 + $0x10] sm:$0xff]
      %v338 = vld [vmem:[%s273 + $0x18] sm:$0xff]
      %v339 = vld [vmem:[%s273 + $0x20] sm:$0xff]
      %v340 = vld [vmem:[%s273 + $0x28] sm:$0xff]
      %v341 = vld [vmem:[%s273 + $0x30] sm:$0xff]
      %v342 = vld [vmem:[%s273 + $0x38] sm:$0xff]
      %v343 = vld [vmem:[%s273 + $0x40] sm:$0xff]
      %v344 = vld [vmem:[%s273 + $0x48] sm:$0xff]
      %v345 = vld [vmem:[%s273 + $0x50] sm:$0xff]
      %v346 = vld [vmem:[%s273 + $0x58] sm:$0xff]
      %v347 = vld [vmem:[%s273 + $0x60] sm:$0xff]
      %v348 = vld [vmem:[%s273 + $0x68] sm:$0xff]
      %v349 = vld [vmem:[%s273 + $0x70] sm:$0xff]
      %v350 = vld [vmem:[%s273 + $0x78] sm:$0xff]
      %v351 = vld [vmem:[%s273 + $0x80] sm:$0xff]
      %v352 = vld [vmem:[%s273 + $0x88] sm:$0xff]
      %v353 = vld [vmem:[%s273 + $0x90] sm:$0xff]
      %v354 = vld [vmem:[%s273 + $0x98] sm:$0xff]
      %v355 = vld [vmem:[%s273 + $0xa0] sm:$0xff]
      %v356 = vld [vmem:[%s273 + $0xa8] sm:$0xff]
      %v357 = vld [vmem:[%s273 + $0xb0] sm:$0xff]
      %v358 = vld [vmem:[%s273 + $0xb8] sm:$0xff]
      %v359 = vld [vmem:[%s273 + $0xc0] sm:$0xff]
      %v360 = vld [vmem:[%s273 + $0xc8] sm:$0xff]
      %v361 = vld [vmem:[%s273 + $0xd0] sm:$0xff]
      %v362 = vld [vmem:[%s273 + $0xd8] sm:$0xff]
      %v363 = vld [vmem:[%s273 + $0xe0] sm:$0xff]
      %v364 = vld [vmem:[%s273 + $0xe8] sm:$0xff]
      %v365 = vld [vmem:[%s273 + $0xf0] sm:$0xff]
      %v366 = vld [vmem:[%s273 + $0xf8] sm:$0xff]
      %s367 = scalar_lea.vmem [#allocation2], 24
      %368 = vst.msk [vmem:[%s367 + $0x1] sm:$0xff] %vm279, %v335
      %369 = vst.msk [vmem:[%s367 + $0x9] sm:$0xff] %vm279, %v336
      %370 = vst.msk [vmem:[%s367 + $0x19] sm:$0xff] %vm279, %v337
      %371 = vst.msk [vmem:[%s367 + $0x21] sm:$0xff] %vm279, %v338
      %372 = vst.msk [vmem:[%s367 + $0x31] sm:$0xff] %vm279, %v339
      %373 = vst.msk [vmem:[%s367 + $0x39] sm:$0xff] %vm279, %v340
      %374 = vst.msk [vmem:[%s367 + $0x49] sm:$0xff] %vm279, %v341
      %375 = vst.msk [vmem:[%s367 + $0x51] sm:$0xff] %vm279, %v342
      %376 = vst.msk [vmem:[%s367 + $0x61] sm:$0xff] %vm279, %v343
      %377 = vst.msk [vmem:[%s367 + $0x69] sm:$0xff] %vm279, %v344
      %378 = vst.msk [vmem:[%s367 + $0x79] sm:$0xff] %vm279, %v345
      %379 = vst.msk [vmem:[%s367 + $0x81] sm:$0xff] %vm279, %v346
      %380 = vst.msk [vmem:[%s367 + $0x91] sm:$0xff] %vm279, %v347
      %381 = vst.msk [vmem:[%s367 + $0x99] sm:$0xff] %vm279, %v348
      %382 = vst.msk [vmem:[%s367 + $0xa9] sm:$0xff] %vm279, %v349
      %383 = vst.msk [vmem:[%s367 + $0xb1] sm:$0xff] %vm279, %v350
      %384 = vst.msk [vmem:[%s367 + $0xc1] sm:$0xff] %vm279, %v351
      %385 = vst.msk [vmem:[%s367 + $0xc9] sm:$0xff] %vm279, %v352
      %386 = vst.msk [vmem:[%s367 + $0xd9] sm:$0xff] %vm279, %v353
      %387 = vst.msk [vmem:[%s367 + $0xe1] sm:$0xff] %vm279, %v354
      %388 = vst.msk [vmem:[%s367 + $0xf1] sm:$0xff] %vm279, %v355
      %389 = vst.msk [vmem:[%s367 + $0xf9] sm:$0xff] %vm279, %v356
      %390 = vst.msk [vmem:[%s367 + $0x109] sm:$0xff] %vm279, %v357
      %391 = vst.msk [vmem:[%s367 + $0x111] sm:$0xff] %vm279, %v358
      %392 = vst.msk [vmem:[%s367 + $0x121] sm:$0xff] %vm279, %v359
      %393 = vst.msk [vmem:[%s367 + $0x129] sm:$0xff] %vm279, %v360
      %394 = vst.msk [vmem:[%s367 + $0x139] sm:$0xff] %vm279, %v361
      %395 = vst.msk [vmem:[%s367 + $0x141] sm:$0xff] %vm279, %v362
      %396 = vst.msk [vmem:[%s367 + $0x151] sm:$0xff] %vm279, %v363
      %397 = vst.msk [vmem:[%s367 + $0x159] sm:$0xff] %vm279, %v364
      %398 = vst.msk [vmem:[%s367 + $0x169] sm:$0xff] %vm279, %v365
      %399 = vst.msk [vmem:[%s367 + $0x171] sm:$0xff] %vm279, %v366
      %v400 = vld [vmem:[#allocation2] sm:$0xff]
      %v401 = vld [vmem:[#allocation2 + $0x8] sm:$0xff]
      %v402 = vld [vmem:[#allocation2 + $0x18] sm:$0xff]
      %v403 = vld [vmem:[#allocation2 + $0x20] sm:$0xff]
      %v404 = vld [vmem:[#allocation2 + $0x30] sm:$0xff]
      %v405 = vld [vmem:[#allocation2 + $0x38] sm:$0xff]
      %v406 = vld [vmem:[#allocation2 + $0x48] sm:$0xff]
      %v407 = vld [vmem:[#allocation2 + $0x50] sm:$0xff]
      %v408 = vld [vmem:[#allocation2 + $0x60] sm:$0xff]
      %v409 = vld [vmem:[#allocation2 + $0x68] sm:$0xff]
      %v410 = vld [vmem:[#allocation2 + $0x78] sm:$0xff]
      %v411 = vld [vmem:[#allocation2 + $0x80] sm:$0xff]
      %v412 = vld [vmem:[#allocation2 + $0x90] sm:$0xff]
      %v413 = vld [vmem:[#allocation2 + $0x98] sm:$0xff]
      %v414 = vld [vmem:[#allocation2 + $0xa8] sm:$0xff]
      %v415 = vld [vmem:[#allocation2 + $0xb0] sm:$0xff]
      %v416 = vld [vmem:[#allocation2 + $0xc0] sm:$0xff]
      %v417 = vld [vmem:[#allocation2 + $0xc8] sm:$0xff]
      %v418 = vld [vmem:[#allocation2 + $0xd8] sm:$0xff]
      %v419 = vld [vmem:[#allocation2 + $0xe0] sm:$0xff]
      %v420 = vld [vmem:[#allocation2 + $0xf0] sm:$0xff]
      %v421 = vld [vmem:[#allocation2 + $0xf8] sm:$0xff]
      %v422 = vld [vmem:[#allocation2 + $0x108] sm:$0xff]
      %v423 = vld [vmem:[#allocation2 + $0x110] sm:$0xff]
      %v424 = vld [vmem:[#allocation2 + $0x120] sm:$0xff]
      %v425 = vld [vmem:[#allocation2 + $0x128] sm:$0xff]
      %v426 = vld [vmem:[#allocation2 + $0x138] sm:$0xff]
      %v427 = vld [vmem:[#allocation2 + $0x140] sm:$0xff]
      %v428 = vld [vmem:[#allocation2 + $0x150] sm:$0xff]
      %v429 = vld [vmem:[#allocation2 + $0x158] sm:$0xff]
      %v430 = vld [vmem:[#allocation2 + $0x168] sm:$0xff]
      %v431 = vld [vmem:[#allocation2 + $0x170] sm:$0xff]
      %v432 = vld [vmem:[#allocation2 + $0x1] sm:$0xff]
      %v433 = vld [vmem:[#allocation2 + $0x9] sm:$0xff]
      %v434 = vld [vmem:[#allocation2 + $0x19] sm:$0xff]
      %v435 = vld [vmem:[#allocation2 + $0x21] sm:$0xff]
      %v436 = vld [vmem:[#allocation2 + $0x31] sm:$0xff]
      %v437 = vld [vmem:[#allocation2 + $0x39] sm:$0xff]
      %v438 = vld [vmem:[#allocation2 + $0x49] sm:$0xff]
      %v439 = vld [vmem:[#allocation2 + $0x51] sm:$0xff]
      %v440 = vld [vmem:[#allocation2 + $0x61] sm:$0xff]
      %v441 = vld [vmem:[#allocation2 + $0x69] sm:$0xff]
      %v442 = vld [vmem:[#allocation2 + $0x79] sm:$0xff]
      %v443 = vld [vmem:[#allocation2 + $0x81] sm:$0xff]
      %v444 = vld [vmem:[#allocation2 + $0x91] sm:$0xff]
      %v445 = vld [vmem:[#allocation2 + $0x99] sm:$0xff]
      %v446 = vld [vmem:[#allocation2 + $0xa9] sm:$0xff]
      %v447 = vld [vmem:[#allocation2 + $0xb1] sm:$0xff]
      %v448 = vld [vmem:[#allocation2 + $0xc1] sm:$0xff]
      %v449 = vld [vmem:[#allocation2 + $0xc9] sm:$0xff]
      %v450 = vld [vmem:[#allocation2 + $0xd9] sm:$0xff]
      %v451 = vld [vmem:[#allocation2 + $0xe1] sm:$0xff]
      %v452 = vld [vmem:[#allocation2 + $0xf1] sm:$0xff]
      %v453 = vld [vmem:[#allocation2 + $0xf9] sm:$0xff]
      %v454 = vld [vmem:[#allocation2 + $0x109] sm:$0xff]
      %v455 = vld [vmem:[#allocation2 + $0x111] sm:$0xff]
      %v456 = vld [vmem:[#allocation2 + $0x121] sm:$0xff]
      %v457 = vld [vmem:[#allocation2 + $0x129] sm:$0xff]
      %v458 = vld [vmem:[#allocation2 + $0x139] sm:$0xff]
      %v459 = vld [vmem:[#allocation2 + $0x141] sm:$0xff]
      %v460 = vld [vmem:[#allocation2 + $0x151] sm:$0xff]
      %v461 = vld [vmem:[#allocation2 + $0x159] sm:$0xff]
      %v462 = vld [vmem:[#allocation2 + $0x169] sm:$0xff]
      %v463 = vld [vmem:[#allocation2 + $0x171] sm:$0xff]
      %v464 = vld [vmem:[#allocation2 + $0x2] sm:$0xff]
      %v465 = vld [vmem:[#allocation2 + $0xa] sm:$0xff]
      %v466 = vld [vmem:[#allocation2 + $0x1a] sm:$0xff]
      %v467 = vld [vmem:[#allocation2 + $0x22] sm:$0xff]
      %v468 = vld [vmem:[#allocation2 + $0x32] sm:$0xff]
      %v469 = vld [vmem:[#allocation2 + $0x3a] sm:$0xff]
      %v470 = vld [vmem:[#allocation2 + $0x4a] sm:$0xff]
      %v471 = vld [vmem:[#allocation2 + $0x52] sm:$0xff]
      %v472 = vld [vmem:[#allocation2 + $0x62] sm:$0xff]
      %v473 = vld [vmem:[#allocation2 + $0x6a] sm:$0xff]
      %v474 = vld [vmem:[#allocation2 + $0x7a] sm:$0xff]
      %v475 = vld [vmem:[#allocation2 + $0x82] sm:$0xff]
      %v476 = vld [vmem:[#allocation2 + $0x92] sm:$0xff]
      %v477 = vld [vmem:[#allocation2 + $0x9a] sm:$0xff]
      %v478 = vld [vmem:[#allocation2 + $0xaa] sm:$0xff]
      %v479 = vld [vmem:[#allocation2 + $0xb2] sm:$0xff]
      %v480 = vld [vmem:[#allocation2 + $0xc2] sm:$0xff]
      %v481 = vld [vmem:[#allocation2 + $0xca] sm:$0xff]
      %v482 = vld [vmem:[#allocation2 + $0xda] sm:$0xff]
      %v483 = vld [vmem:[#allocation2 + $0xe2] sm:$0xff]
      %v484 = vld [vmem:[#allocation2 + $0xf2] sm:$0xff]
      %v485 = vld [vmem:[#allocation2 + $0xfa] sm:$0xff]
      %v486 = vld [vmem:[#allocation2 + $0x10a] sm:$0xff]
      %v487 = vld [vmem:[#allocation2 + $0x112] sm:$0xff]
      %v488 = vld [vmem:[#allocation2 + $0x122] sm:$0xff]
      %v489 = vld [vmem:[#allocation2 + $0x12a] sm:$0xff]
      %v490 = vld [vmem:[#allocation2 + $0x13a] sm:$0xff]
      %v491 = vld [vmem:[#allocation2 + $0x142] sm:$0xff]
      %v492 = vld [vmem:[#allocation2 + $0x152] sm:$0xff]
      %v493 = vld [vmem:[#allocation2 + $0x15a] sm:$0xff]
      %v494 = vld [vmem:[#allocation2 + $0x16a] sm:$0xff]
      %v495 = vld [vmem:[#allocation2 + $0x172] sm:$0xff]
      %v496 = vld [vmem:[%s367] sm:$0xff]
      %v497 = vld [vmem:[%s367 + $0x8] sm:$0xff]
      %v498 = vld [vmem:[%s367 + $0x18] sm:$0xff]
      %v499 = vld [vmem:[%s367 + $0x20] sm:$0xff]
      %v500 = vld [vmem:[%s367 + $0x30] sm:$0xff]
      %v501 = vld [vmem:[%s367 + $0x38] sm:$0xff]
      %v502 = vld [vmem:[%s367 + $0x48] sm:$0xff]
      %v503 = vld [vmem:[%s367 + $0x50] sm:$0xff]
      %v504 = vld [vmem:[%s367 + $0x60] sm:$0xff]
      %v505 = vld [vmem:[%s367 + $0x68] sm:$0xff]
      %v506 = vld [vmem:[%s367 + $0x78] sm:$0xff]
      %v507 = vld [vmem:[%s367 + $0x80] sm:$0xff]
      %v508 = vld [vmem:[%s367 + $0x90] sm:$0xff]
      %v509 = vld [vmem:[%s367 + $0x98] sm:$0xff]
      %v510 = vld [vmem:[%s367 + $0xa8] sm:$0xff]
      %v511 = vld [vmem:[%s367 + $0xb0] sm:$0xff]
      %v512 = vld [vmem:[%s367 + $0xc0] sm:$0xff]
      %v513 = vld [vmem:[%s367 + $0xc8] sm:$0xff]
      %v514 = vld [vmem:[%s367 + $0xd8] sm:$0xff]
      %v515 = vld [vmem:[%s367 + $0xe0] sm:$0xff]
      %v516 = vld [vmem:[%s367 + $0xf0] sm:$0xff]
      %v517 = vld [vmem:[%s367 + $0xf8] sm:$0xff]
      %v518 = vld [vmem:[%s367 + $0x108] sm:$0xff]
      %v519 = vld [vmem:[%s367 + $0x110] sm:$0xff]
      %v520 = vld [vmem:[%s367 + $0x120] sm:$0xff]
      %v521 = vld [vmem:[%s367 + $0x128] sm:$0xff]
      %v522 = vld [vmem:[%s367 + $0x138] sm:$0xff]
      %v523 = vld [vmem:[%s367 + $0x140] sm:$0xff]
      %v524 = vld [vmem:[%s367 + $0x150] sm:$0xff]
      %v525 = vld [vmem:[%s367 + $0x158] sm:$0xff]
      %v526 = vld [vmem:[%s367 + $0x168] sm:$0xff]
      %v527 = vld [vmem:[%s367 + $0x170] sm:$0xff]
      %v528 = vld [vmem:[%s367 + $0x1] sm:$0xff]
      %v529 = vld [vmem:[%s367 + $0x9] sm:$0xff]
      %v530 = vld [vmem:[%s367 + $0x19] sm:$0xff]
      %v531 = vld [vmem:[%s367 + $0x21] sm:$0xff]
      %v532 = vld [vmem:[%s367 + $0x31] sm:$0xff]
      %v533 = vld [vmem:[%s367 + $0x39] sm:$0xff]
      %v534 = vld [vmem:[%s367 + $0x49] sm:$0xff]
      %v535 = vld [vmem:[%s367 + $0x51] sm:$0xff]
      %v536 = vld [vmem:[%s367 + $0x61] sm:$0xff]
      %v537 = vld [vmem:[%s367 + $0x69] sm:$0xff]
      %v538 = vld [vmem:[%s367 + $0x79] sm:$0xff]
      %v539 = vld [vmem:[%s367 + $0x81] sm:$0xff]
      %v540 = vld [vmem:[%s367 + $0x91] sm:$0xff]
      %v541 = vld [vmem:[%s367 + $0x99] sm:$0xff]
      %v542 = vld [vmem:[%s367 + $0xa9] sm:$0xff]
      %v543 = vld [vmem:[%s367 + $0xb1] sm:$0xff]
      %v544 = vld [vmem:[%s367 + $0xc1] sm:$0xff]
      %v545 = vld [vmem:[%s367 + $0xc9] sm:$0xff]
      %v546 = vld [vmem:[%s367 + $0xd9] sm:$0xff]
      %v547 = vld [vmem:[%s367 + $0xe1] sm:$0xff]
      %v548 = vld [vmem:[%s367 + $0xf1] sm:$0xff]
      %v549 = vld [vmem:[%s367 + $0xf9] sm:$0xff]
      %v550 = vld [vmem:[%s367 + $0x109] sm:$0xff]
      %v551 = vld [vmem:[%s367 + $0x111] sm:$0xff]
      %v552 = vld [vmem:[%s367 + $0x121] sm:$0xff]
      %v553 = vld [vmem:[%s367 + $0x129] sm:$0xff]
      %v554 = vld [vmem:[%s367 + $0x139] sm:$0xff]
      %v555 = vld [vmem:[%s367 + $0x141] sm:$0xff]
      %v556 = vld [vmem:[%s367 + $0x151] sm:$0xff]
      %v557 = vld [vmem:[%s367 + $0x159] sm:$0xff]
      %v558 = vld [vmem:[%s367 + $0x169] sm:$0xff]
      %v559 = vld [vmem:[%s367 + $0x171] sm:$0xff]
      %v560 = vld [vmem:[%s367 + $0x2] sm:$0xff]
      %v561 = vld [vmem:[%s367 + $0xa] sm:$0xff]
      %v562 = vld [vmem:[%s367 + $0x1a] sm:$0xff]
      %v563 = vld [vmem:[%s367 + $0x22] sm:$0xff]
      %v564 = vld [vmem:[%s367 + $0x32] sm:$0xff]
      %v565 = vld [vmem:[%s367 + $0x3a] sm:$0xff]
      %v566 = vld [vmem:[%s367 + $0x4a] sm:$0xff]
      %v567 = vld [vmem:[%s367 + $0x52] sm:$0xff]
      %v568 = vld [vmem:[%s367 + $0x62] sm:$0xff]
      %v569 = vld [vmem:[%s367 + $0x6a] sm:$0xff]
      %v570 = vld [vmem:[%s367 + $0x7a] sm:$0xff]
      %v571 = vld [vmem:[%s367 + $0x82] sm:$0xff]
      %v572 = vld [vmem:[%s367 + $0x92] sm:$0xff]
      %v573 = vld [vmem:[%s367 + $0x9a] sm:$0xff]
      %v574 = vld [vmem:[%s367 + $0xaa] sm:$0xff]
      %v575 = vld [vmem:[%s367 + $0xb2] sm:$0xff]
      %v576 = vld [vmem:[%s367 + $0xc2] sm:$0xff]
      %v577 = vld [vmem:[%s367 + $0xca] sm:$0xff]
      %v578 = vld [vmem:[%s367 + $0xda] sm:$0xff]
      %v579 = vld [vmem:[%s367 + $0xe2] sm:$0xff]
      %v580 = vld [vmem:[%s367 + $0xf2] sm:$0xff]
      %v581 = vld [vmem:[%s367 + $0xfa] sm:$0xff]
      %v582 = vld [vmem:[%s367 + $0x10a] sm:$0xff]
      %v583 = vld [vmem:[%s367 + $0x112] sm:$0xff]
      %v584 = vld [vmem:[%s367 + $0x122] sm:$0xff]
      %v585 = vld [vmem:[%s367 + $0x12a] sm:$0xff]
      %v586 = vld [vmem:[%s367 + $0x13a] sm:$0xff]
      %v587 = vld [vmem:[%s367 + $0x142] sm:$0xff]
      %v588 = vld [vmem:[%s367 + $0x152] sm:$0xff]
      %v589 = vld [vmem:[%s367 + $0x15a] sm:$0xff]
      %v590 = vld [vmem:[%s367 + $0x16a] sm:$0xff]
      %v591 = vld [vmem:[%s367 + $0x172] sm:$0xff]
      %s592 = scalar_lea.vmem [#allocation2], 48
      %v593 = vld [vmem:[%s592] sm:$0xff]
      %v594 = vld [vmem:[%s592 + $0x8] sm:$0xff]
      %v595 = vld [vmem:[%s592 + $0x18] sm:$0xff]
      %v596 = vld [vmem:[%s592 + $0x20] sm:$0xff]
      %v597 = vld [vmem:[%s592 + $0x30] sm:$0xff]
      %v598 = vld [vmem:[%s592 + $0x38] sm:$0xff]
      %v599 = vld [vmem:[%s592 + $0x48] sm:$0xff]
      %v600 = vld [vmem:[%s592 + $0x50] sm:$0xff]
      %v601 = vld [vmem:[%s592 + $0x60] sm:$0xff]
      %v602 = vld [vmem:[%s592 + $0x68] sm:$0xff]
      %v603 = vld [vmem:[%s592 + $0x78] sm:$0xff]
      %v604 = vld [vmem:[%s592 + $0x80] sm:$0xff]
      %v605 = vld [vmem:[%s592 + $0x90] sm:$0xff]
      %v606 = vld [vmem:[%s592 + $0x98] sm:$0xff]
      %v607 = vld [vmem:[%s592 + $0xa8] sm:$0xff]
      %v608 = vld [vmem:[%s592 + $0xb0] sm:$0xff]
      %v609 = vld [vmem:[%s592 + $0xc0] sm:$0xff]
      %v610 = vld [vmem:[%s592 + $0xc8] sm:$0xff]
      %v611 = vld [vmem:[%s592 + $0xd8] sm:$0xff]
      %v612 = vld [vmem:[%s592 + $0xe0] sm:$0xff]
      %v613 = vld [vmem:[%s592 + $0xf0] sm:$0xff]
      %v614 = vld [vmem:[%s592 + $0xf8] sm:$0xff]
      %v615 = vld [vmem:[%s592 + $0x108] sm:$0xff]
      %v616 = vld [vmem:[%s592 + $0x110] sm:$0xff]
      %v617 = vld [vmem:[%s592 + $0x120] sm:$0xff]
      %v618 = vld [vmem:[%s592 + $0x128] sm:$0xff]
      %v619 = vld [vmem:[%s592 + $0x138] sm:$0xff]
      %v620 = vld [vmem:[%s592 + $0x140] sm:$0xff]
      %v621 = vld [vmem:[%s592 + $0x150] sm:$0xff]
      %v622 = vld [vmem:[%s592 + $0x158] sm:$0xff]
      %v623 = vld [vmem:[%s592 + $0x168] sm:$0xff]
      %v624 = vld [vmem:[%s592 + $0x170] sm:$0xff]
      %v625 = vld [vmem:[%s592 + $0x1] sm:$0xff]
      %v626 = vld [vmem:[%s592 + $0x9] sm:$0xff]
      %v627 = vld [vmem:[%s592 + $0x19] sm:$0xff]
      %v628 = vld [vmem:[%s592 + $0x21] sm:$0xff]
      %v629 = vld [vmem:[%s592 + $0x31] sm:$0xff]
      %v630 = vld [vmem:[%s592 + $0x39] sm:$0xff]
      %v631 = vld [vmem:[%s592 + $0x49] sm:$0xff]
      %v632 = vld [vmem:[%s592 + $0x51] sm:$0xff]
      %v633 = vld [vmem:[%s592 + $0x61] sm:$0xff]
      %v634 = vld [vmem:[%s592 + $0x69] sm:$0xff]
      %v635 = vld [vmem:[%s592 + $0x79] sm:$0xff]
      %v636 = vld [vmem:[%s592 + $0x81] sm:$0xff]
      %v637 = vld [vmem:[%s592 + $0x91] sm:$0xff]
      %v638 = vld [vmem:[%s592 + $0x99] sm:$0xff]
      %v639 = vld [vmem:[%s592 + $0xa9] sm:$0xff]
      %v640 = vld [vmem:[%s592 + $0xb1] sm:$0xff]
      %v641 = vld [vmem:[%s592 + $0xc1] sm:$0xff]
      %v642 = vld [vmem:[%s592 + $0xc9] sm:$0xff]
      %v643 = vld [vmem:[%s592 + $0xd9] sm:$0xff]
      %v644 = vld [vmem:[%s592 + $0xe1] sm:$0xff]
      %v645 = vld [vmem:[%s592 + $0xf1] sm:$0xff]
      %v646 = vld [vmem:[%s592 + $0xf9] sm:$0xff]
      %v647 = vld [vmem:[%s592 + $0x109] sm:$0xff]
      %v648 = vld [vmem:[%s592 + $0x111] sm:$0xff]
      %v649 = vld [vmem:[%s592 + $0x121] sm:$0xff]
      %v650 = vld [vmem:[%s592 + $0x129] sm:$0xff]
      %v651 = vld [vmem:[%s592 + $0x139] sm:$0xff]
      %v652 = vld [vmem:[%s592 + $0x141] sm:$0xff]
      %v653 = vld [vmem:[%s592 + $0x151] sm:$0xff]
      %v654 = vld [vmem:[%s592 + $0x159] sm:$0xff]
      %v655 = vld [vmem:[%s592 + $0x169] sm:$0xff]
      %v656 = vld [vmem:[%s592 + $0x171] sm:$0xff]
      %v657 = vld [vmem:[%s592 + $0x2] sm:$0xff]
      %v658 = vld [vmem:[%s592 + $0xa] sm:$0xff]
      %v659 = vld [vmem:[%s592 + $0x1a] sm:$0xff]
      %v660 = vld [vmem:[%s592 + $0x22] sm:$0xff]
      %v661 = vld [vmem:[%s592 + $0x32] sm:$0xff]
      %v662 = vld [vmem:[%s592 + $0x3a] sm:$0xff]
      %v663 = vld [vmem:[%s592 + $0x4a] sm:$0xff]
      %v664 = vld [vmem:[%s592 + $0x52] sm:$0xff]
      %v665 = vld [vmem:[%s592 + $0x62] sm:$0xff]
      %v666 = vld [vmem:[%s592 + $0x6a] sm:$0xff]
      %v667 = vld [vmem:[%s592 + $0x7a] sm:$0xff]
      %v668 = vld [vmem:[%s592 + $0x82] sm:$0xff]
      %v669 = vld [vmem:[%s592 + $0x92] sm:$0xff]
      %v670 = vld [vmem:[%s592 + $0x9a] sm:$0xff]
      %v671 = vld [vmem:[%s592 + $0xaa] sm:$0xff]
      %v672 = vld [vmem:[%s592 + $0xb2] sm:$0xff]
      %v673 = vld [vmem:[%s592 + $0xc2] sm:$0xff]
      %v674 = vld [vmem:[%s592 + $0xca] sm:$0xff]
      %v675 = vld [vmem:[%s592 + $0xda] sm:$0xff]
      %v676 = vld [vmem:[%s592 + $0xe2] sm:$0xff]
      %v677 = vld [vmem:[%s592 + $0xf2] sm:$0xff]
      %v678 = vld [vmem:[%s592 + $0xfa] sm:$0xff]
      %v679 = vld [vmem:[%s592 + $0x10a] sm:$0xff]
      %v680 = vld [vmem:[%s592 + $0x112] sm:$0xff]
      %v681 = vld [vmem:[%s592 + $0x122] sm:$0xff]
      %v682 = vld [vmem:[%s592 + $0x12a] sm:$0xff]
      %v683 = vld [vmem:[%s592 + $0x13a] sm:$0xff]
      %v684 = vld [vmem:[%s592 + $0x142] sm:$0xff]
      %v685 = vld [vmem:[%s592 + $0x152] sm:$0xff]
      %v686 = vld [vmem:[%s592 + $0x15a] sm:$0xff]
      %v687 = vld [vmem:[%s592 + $0x16a] sm:$0xff]
      %v688 = vld [vmem:[%s592 + $0x172] sm:$0xff]
      %721 = vrot.lane.b32.xlu0 %v432, 8
      %v722 = vpop.permute.xlu0 %721
      %723 = vrot.lane.b32.xlu0 %v433, 8
      %v724 = vpop.permute.xlu0 %723
      %725 = vrot.lane.b32.xlu0 %v434, 8
      %v726 = vpop.permute.xlu0 %725
      %727 = vrot.lane.b32.xlu0 %v435, 8
      %v728 = vpop.permute.xlu0 %727
      %729 = vrot.lane.b32.xlu0 %v436, 8
      %v730 = vpop.permute.xlu0 %729
      %731 = vrot.lane.b32.xlu0 %v437, 8
      %v732 = vpop.permute.xlu0 %731
      %733 = vrot.lane.b32.xlu0 %v438, 8
      %v734 = vpop.permute.xlu0 %733
      %735 = vrot.lane.b32.xlu0 %v439, 8
      %v736 = vpop.permute.xlu0 %735
      %737 = vrot.lane.b32.xlu0 %v440, 8
      %v738 = vpop.permute.xlu0 %737
      %739 = vrot.lane.b32.xlu0 %v441, 8
      %v740 = vpop.permute.xlu0 %739
      %741 = vrot.lane.b32.xlu0 %v442, 8
      %v742 = vpop.permute.xlu0 %741
      %743 = vrot.lane.b32.xlu0 %v443, 8
      %v744 = vpop.permute.xlu0 %743
      %745 = vrot.lane.b32.xlu0 %v444, 8
      %v746 = vpop.permute.xlu0 %745
      %747 = vrot.lane.b32.xlu0 %v445, 8
      %v748 = vpop.permute.xlu0 %747
      %749 = vrot.lane.b32.xlu0 %v446, 8
      %v750 = vpop.permute.xlu0 %749
      %751 = vrot.lane.b32.xlu0 %v447, 8
      %v752 = vpop.permute.xlu0 %751
      %753 = vrot.lane.b32.xlu0 %v448, 8
      %v754 = vpop.permute.xlu0 %753
      %755 = vrot.lane.b32.xlu0 %v449, 8
      %v756 = vpop.permute.xlu0 %755
      %757 = vrot.lane.b32.xlu0 %v450, 8
      %v758 = vpop.permute.xlu0 %757
      %759 = vrot.lane.b32.xlu0 %v451, 8
      %v760 = vpop.permute.xlu0 %759
      %761 = vrot.lane.b32.xlu0 %v452, 8
      %v762 = vpop.permute.xlu0 %761
      %763 = vrot.lane.b32.xlu0 %v453, 8
      %v764 = vpop.permute.xlu0 %763
      %765 = vrot.lane.b32.xlu0 %v454, 8
      %v766 = vpop.permute.xlu0 %765
      %767 = vrot.lane.b32.xlu0 %v455, 8
      %v768 = vpop.permute.xlu0 %767
      %769 = vrot.lane.b32.xlu0 %v456, 8
      %v770 = vpop.permute.xlu0 %769
      %771 = vrot.lane.b32.xlu0 %v457, 8
      %v772 = vpop.permute.xlu0 %771
      %773 = vrot.lane.b32.xlu0 %v458, 8
      %v774 = vpop.permute.xlu0 %773
      %775 = vrot.lane.b32.xlu0 %v459, 8
      %v776 = vpop.permute.xlu0 %775
      %777 = vrot.lane.b32.xlu0 %v460, 8
      %v778 = vpop.permute.xlu0 %777
      %779 = vrot.lane.b32.xlu0 %v461, 8
      %v780 = vpop.permute.xlu0 %779
      %781 = vrot.lane.b32.xlu0 %v462, 8
      %v782 = vpop.permute.xlu0 %781
      %783 = vrot.lane.b32.xlu0 %v463, 8
      %v784 = vpop.permute.xlu0 %783
      %849 = vrot.lane.b32.xlu0 %v464, 16
      %v850 = vpop.permute.xlu0 %849
      %851 = vrot.lane.b32.xlu0 %v465, 16
      %v852 = vpop.permute.xlu0 %851
      %853 = vrot.lane.b32.xlu0 %v466, 16
      %v854 = vpop.permute.xlu0 %853
      %855 = vrot.lane.b32.xlu0 %v467, 16
      %v856 = vpop.permute.xlu0 %855
      %857 = vrot.lane.b32.xlu0 %v468, 16
      %v858 = vpop.permute.xlu0 %857
      %859 = vrot.lane.b32.xlu0 %v469, 16
      %v860 = vpop.permute.xlu0 %859
      %861 = vrot.lane.b32.xlu0 %v470, 16
      %v862 = vpop.permute.xlu0 %861
      %863 = vrot.lane.b32.xlu0 %v471, 16
      %v864 = vpop.permute.xlu0 %863
      %865 = vrot.lane.b32.xlu0 %v472, 16
      %v866 = vpop.permute.xlu0 %865
      %867 = vrot.lane.b32.xlu0 %v473, 16
      %v868 = vpop.permute.xlu0 %867
      %869 = vrot.lane.b32.xlu0 %v474, 16
      %v870 = vpop.permute.xlu0 %869
      %871 = vrot.lane.b32.xlu0 %v475, 16
      %v872 = vpop.permute.xlu0 %871
      %873 = vrot.lane.b32.xlu0 %v476, 16
      %v874 = vpop.permute.xlu0 %873
      %875 = vrot.lane.b32.xlu0 %v477, 16
      %v876 = vpop.permute.xlu0 %875
      %877 = vrot.lane.b32.xlu0 %v478, 16
      %v878 = vpop.permute.xlu0 %877
      %879 = vrot.lane.b32.xlu0 %v479, 16
      %v880 = vpop.permute.xlu0 %879
      %881 = vrot.lane.b32.xlu0 %v480, 16
      %v882 = vpop.permute.xlu0 %881
      %883 = vrot.lane.b32.xlu0 %v481, 16
      %v884 = vpop.permute.xlu0 %883
      %885 = vrot.lane.b32.xlu0 %v482, 16
      %v886 = vpop.permute.xlu0 %885
      %887 = vrot.lane.b32.xlu0 %v483, 16
      %v888 = vpop.permute.xlu0 %887
      %889 = vrot.lane.b32.xlu0 %v484, 16
      %v890 = vpop.permute.xlu0 %889
      %891 = vrot.lane.b32.xlu0 %v485, 16
      %v892 = vpop.permute.xlu0 %891
      %893 = vrot.lane.b32.xlu0 %v486, 16
      %v894 = vpop.permute.xlu0 %893
      %895 = vrot.lane.b32.xlu0 %v487, 16
      %v896 = vpop.permute.xlu0 %895
      %897 = vrot.lane.b32.xlu0 %v488, 16
      %v898 = vpop.permute.xlu0 %897
      %899 = vrot.lane.b32.xlu0 %v489, 16
      %v900 = vpop.permute.xlu0 %899
      %901 = vrot.lane.b32.xlu0 %v490, 16
      %v902 = vpop.permute.xlu0 %901
      %903 = vrot.lane.b32.xlu0 %v491, 16
      %v904 = vpop.permute.xlu0 %903
      %905 = vrot.lane.b32.xlu0 %v492, 16
      %v906 = vpop.permute.xlu0 %905
      %907 = vrot.lane.b32.xlu0 %v493, 16
      %v908 = vpop.permute.xlu0 %907
      %909 = vrot.lane.b32.xlu0 %v494, 16
      %v910 = vpop.permute.xlu0 %909
      %911 = vrot.lane.b32.xlu0 %v495, 16
      %v912 = vpop.permute.xlu0 %911
      %977 = vrot.lane.b32.xlu0 %v496, 24
      %v978 = vpop.permute.xlu0 %977
      %979 = vrot.lane.b32.xlu0 %v497, 24
      %v980 = vpop.permute.xlu0 %979
      %981 = vrot.lane.b32.xlu0 %v498, 24
      %v982 = vpop.permute.xlu0 %981
      %983 = vrot.lane.b32.xlu0 %v499, 24
      %v984 = vpop.permute.xlu0 %983
      %985 = vrot.lane.b32.xlu0 %v500, 24
      %v986 = vpop.permute.xlu0 %985
      %987 = vrot.lane.b32.xlu0 %v501, 24
      %v988 = vpop.permute.xlu0 %987
      %989 = vrot.lane.b32.xlu0 %v502, 24
      %v990 = vpop.permute.xlu0 %989
      %991 = vrot.lane.b32.xlu0 %v503, 24
      %v992 = vpop.permute.xlu0 %991
      %993 = vrot.lane.b32.xlu0 %v504, 24
      %v994 = vpop.permute.xlu0 %993
      %995 = vrot.lane.b32.xlu0 %v505, 24
      %v996 = vpop.permute.xlu0 %995
      %997 = vrot.lane.b32.xlu0 %v506, 24
      %v998 = vpop.permute.xlu0 %997
      %999 = vrot.lane.b32.xlu0 %v507, 24
      %v1000 = vpop.permute.xlu0 %999
      %1001 = vrot.lane.b32.xlu0 %v508, 24
      %v1002 = vpop.permute.xlu0 %1001
      %1003 = vrot.lane.b32.xlu0 %v509, 24
      %v1004 = vpop.permute.xlu0 %1003
      %1005 = vrot.lane.b32.xlu0 %v510, 24
      %v1006 = vpop.permute.xlu0 %1005
      %1007 = vrot.lane.b32.xlu0 %v511, 24
      %v1008 = vpop.permute.xlu0 %1007
      %1009 = vrot.lane.b32.xlu0 %v512, 24
      %v1010 = vpop.permute.xlu0 %1009
      %1011 = vrot.lane.b32.xlu0 %v513, 24
      %v1012 = vpop.permute.xlu0 %1011
      %1013 = vrot.lane.b32.xlu0 %v514, 24
      %v1014 = vpop.permute.xlu0 %1013
      %1015 = vrot.lane.b32.xlu0 %v515, 24
      %v1016 = vpop.permute.xlu0 %1015
      %1017 = vrot.lane.b32.xlu0 %v516, 24
      %v1018 = vpop.permute.xlu0 %1017
      %1019 = vrot.lane.b32.xlu0 %v517, 24
      %v1020 = vpop.permute.xlu0 %1019
      %1021 = vrot.lane.b32.xlu0 %v518, 24
      %v1022 = vpop.permute.xlu0 %1021
      %1023 = vrot.lane.b32.xlu0 %v519, 24
      %v1024 = vpop.permute.xlu0 %1023
      %1025 = vrot.lane.b32.xlu0 %v520, 24
      %v1026 = vpop.permute.xlu0 %1025
      %1027 = vrot.lane.b32.xlu0 %v521, 24
      %v1028 = vpop.permute.xlu0 %1027
      %1029 = vrot.lane.b32.xlu0 %v522, 24
      %v1030 = vpop.permute.xlu0 %1029
      %1031 = vrot.lane.b32.xlu0 %v523, 24
      %v1032 = vpop.permute.xlu0 %1031
      %1033 = vrot.lane.b32.xlu0 %v524, 24
      %v1034 = vpop.permute.xlu0 %1033
      %1035 = vrot.lane.b32.xlu0 %v525, 24
      %v1036 = vpop.permute.xlu0 %1035
      %1037 = vrot.lane.b32.xlu0 %v526, 24
      %v1038 = vpop.permute.xlu0 %1037
      %1039 = vrot.lane.b32.xlu0 %v527, 24
      %v1040 = vpop.permute.xlu0 %1039
      %1105 = vrot.lane.b32.xlu0 %v528, 32
      %v1106 = vpop.permute.xlu0 %1105
      %1107 = vrot.lane.b32.xlu0 %v529, 32
      %v1108 = vpop.permute.xlu0 %1107
      %1109 = vrot.lane.b32.xlu0 %v530, 32
      %v1110 = vpop.permute.xlu0 %1109
      %1111 = vrot.lane.b32.xlu0 %v531, 32
      %v1112 = vpop.permute.xlu0 %1111
      %1113 = vrot.lane.b32.xlu0 %v532, 32
      %v1114 = vpop.permute.xlu0 %1113
      %1115 = vrot.lane.b32.xlu0 %v533, 32
      %v1116 = vpop.permute.xlu0 %1115
      %1117 = vrot.lane.b32.xlu0 %v534, 32
      %v1118 = vpop.permute.xlu0 %1117
      %1119 = vrot.lane.b32.xlu0 %v535, 32
      %v1120 = vpop.permute.xlu0 %1119
      %1121 = vrot.lane.b32.xlu0 %v536, 32
      %v1122 = vpop.permute.xlu0 %1121
      %1123 = vrot.lane.b32.xlu0 %v537, 32
      %v1124 = vpop.permute.xlu0 %1123
      %1125 = vrot.lane.b32.xlu0 %v538, 32
      %v1126 = vpop.permute.xlu0 %1125
      %1127 = vrot.lane.b32.xlu0 %v539, 32
      %v1128 = vpop.permute.xlu0 %1127
      %1129 = vrot.lane.b32.xlu0 %v540, 32
      %v1130 = vpop.permute.xlu0 %1129
      %1131 = vrot.lane.b32.xlu0 %v541, 32
      %v1132 = vpop.permute.xlu0 %1131
      %1133 = vrot.lane.b32.xlu0 %v542, 32
      %v1134 = vpop.permute.xlu0 %1133
      %1135 = vrot.lane.b32.xlu0 %v543, 32
      %v1136 = vpop.permute.xlu0 %1135
      %1137 = vrot.lane.b32.xlu0 %v544, 32
      %v1138 = vpop.permute.xlu0 %1137
      %1139 = vrot.lane.b32.xlu0 %v545, 32
      %v1140 = vpop.permute.xlu0 %1139
      %1141 = vrot.lane.b32.xlu0 %v546, 32
      %v1142 = vpop.permute.xlu0 %1141
      %1143 = vrot.lane.b32.xlu0 %v547, 32
      %v1144 = vpop.permute.xlu0 %1143
      %1145 = vrot.lane.b32.xlu0 %v548, 32
      %v1146 = vpop.permute.xlu0 %1145
      %1147 = vrot.lane.b32.xlu0 %v549, 32
      %v1148 = vpop.permute.xlu0 %1147
      %1149 = vrot.lane.b32.xlu0 %v550, 32
      %v1150 = vpop.permute.xlu0 %1149
      %1151 = vrot.lane.b32.xlu0 %v551, 32
      %v1152 = vpop.permute.xlu0 %1151
      %1153 = vrot.lane.b32.xlu0 %v552, 32
      %v1154 = vpop.permute.xlu0 %1153
      %1155 = vrot.lane.b32.xlu0 %v553, 32
      %v1156 = vpop.permute.xlu0 %1155
      %1157 = vrot.lane.b32.xlu0 %v554, 32
      %v1158 = vpop.permute.xlu0 %1157
      %1159 = vrot.lane.b32.xlu0 %v555, 32
      %v1160 = vpop.permute.xlu0 %1159
      %1161 = vrot.lane.b32.xlu0 %v556, 32
      %v1162 = vpop.permute.xlu0 %1161
      %1163 = vrot.lane.b32.xlu0 %v557, 32
      %v1164 = vpop.permute.xlu0 %1163
      %1165 = vrot.lane.b32.xlu0 %v558, 32
      %v1166 = vpop.permute.xlu0 %1165
      %1167 = vrot.lane.b32.xlu0 %v559, 32
      %v1168 = vpop.permute.xlu0 %1167
      %1233 = vrot.lane.b32.xlu0 %v560, 40
      %v1234 = vpop.permute.xlu0 %1233
      %1235 = vrot.lane.b32.xlu0 %v561, 40
      %v1236 = vpop.permute.xlu0 %1235
      %1237 = vrot.lane.b32.xlu0 %v562, 40
      %v1238 = vpop.permute.xlu0 %1237
      %1239 = vrot.lane.b32.xlu0 %v563, 40
      %v1240 = vpop.permute.xlu0 %1239
      %1241 = vrot.lane.b32.xlu0 %v564, 40
      %v1242 = vpop.permute.xlu0 %1241
      %1243 = vrot.lane.b32.xlu0 %v565, 40
      %v1244 = vpop.permute.xlu0 %1243
      %1245 = vrot.lane.b32.xlu0 %v566, 40
      %v1246 = vpop.permute.xlu0 %1245
      %1247 = vrot.lane.b32.xlu0 %v567, 40
      %v1248 = vpop.permute.xlu0 %1247
      %1249 = vrot.lane.b32.xlu0 %v568, 40
      %v1250 = vpop.permute.xlu0 %1249
      %1251 = vrot.lane.b32.xlu0 %v569, 40
      %v1252 = vpop.permute.xlu0 %1251
      %1253 = vrot.lane.b32.xlu0 %v570, 40
      %v1254 = vpop.permute.xlu0 %1253
      %1255 = vrot.lane.b32.xlu0 %v571, 40
      %v1256 = vpop.permute.xlu0 %1255
      %1257 = vrot.lane.b32.xlu0 %v572, 40
      %v1258 = vpop.permute.xlu0 %1257
      %1259 = vrot.lane.b32.xlu0 %v573, 40
      %v1260 = vpop.permute.xlu0 %1259
      %1261 = vrot.lane.b32.xlu0 %v574, 40
      %v1262 = vpop.permute.xlu0 %1261
      %1263 = vrot.lane.b32.xlu0 %v575, 40
      %v1264 = vpop.permute.xlu0 %1263
      %1265 = vrot.lane.b32.xlu0 %v576, 40
      %v1266 = vpop.permute.xlu0 %1265
      %1267 = vrot.lane.b32.xlu0 %v577, 40
      %v1268 = vpop.permute.xlu0 %1267
      %1269 = vrot.lane.b32.xlu0 %v578, 40
      %v1270 = vpop.permute.xlu0 %1269
      %1271 = vrot.lane.b32.xlu0 %v579, 40
      %v1272 = vpop.permute.xlu0 %1271
      %1273 = vrot.lane.b32.xlu0 %v580, 40
      %v1274 = vpop.permute.xlu0 %1273
      %1275 = vrot.lane.b32.xlu0 %v581, 40
      %v1276 = vpop.permute.xlu0 %1275
      %1277 = vrot.lane.b32.xlu0 %v582, 40
      %v1278 = vpop.permute.xlu0 %1277
      %1279 = vrot.lane.b32.xlu0 %v583, 40
      %v1280 = vpop.permute.xlu0 %1279
      %1281 = vrot.lane.b32.xlu0 %v584, 40
      %v1282 = vpop.permute.xlu0 %1281
      %1283 = vrot.lane.b32.xlu0 %v585, 40
      %v1284 = vpop.permute.xlu0 %1283
      %1285 = vrot.lane.b32.xlu0 %v586, 40
      %v1286 = vpop.permute.xlu0 %1285
      %1287 = vrot.lane.b32.xlu0 %v587, 40
      %v1288 = vpop.permute.xlu0 %1287
      %1289 = vrot.lane.b32.xlu0 %v588, 40
      %v1290 = vpop.permute.xlu0 %1289
      %1291 = vrot.lane.b32.xlu0 %v589, 40
      %v1292 = vpop.permute.xlu0 %1291
      %1293 = vrot.lane.b32.xlu0 %v590, 40
      %v1294 = vpop.permute.xlu0 %1293
      %1295 = vrot.lane.b32.xlu0 %v591, 40
      %v1296 = vpop.permute.xlu0 %1295
      %1361 = vrot.lane.b32.xlu0 %v593, 48
      %v1362 = vpop.permute.xlu0 %1361
      %1363 = vrot.lane.b32.xlu0 %v594, 48
      %v1364 = vpop.permute.xlu0 %1363
      %1365 = vrot.lane.b32.xlu0 %v595, 48
      %v1366 = vpop.permute.xlu0 %1365
      %1367 = vrot.lane.b32.xlu0 %v596, 48
      %v1368 = vpop.permute.xlu0 %1367
      %1369 = vrot.lane.b32.xlu0 %v597, 48
      %v1370 = vpop.permute.xlu0 %1369
      %1371 = vrot.lane.b32.xlu0 %v598, 48
      %v1372 = vpop.permute.xlu0 %1371
      %1373 = vrot.lane.b32.xlu0 %v599, 48
      %v1374 = vpop.permute.xlu0 %1373
      %1375 = vrot.lane.b32.xlu0 %v600, 48
      %v1376 = vpop.permute.xlu0 %1375
      %1377 = vrot.lane.b32.xlu0 %v601, 48
      %v1378 = vpop.permute.xlu0 %1377
      %1379 = vrot.lane.b32.xlu0 %v602, 48
      %v1380 = vpop.permute.xlu0 %1379
      %1381 = vrot.lane.b32.xlu0 %v603, 48
      %v1382 = vpop.permute.xlu0 %1381
      %1383 = vrot.lane.b32.xlu0 %v604, 48
      %v1384 = vpop.permute.xlu0 %1383
      %1385 = vrot.lane.b32.xlu0 %v605, 48
      %v1386 = vpop.permute.xlu0 %1385
      %1387 = vrot.lane.b32.xlu0 %v606, 48
      %v1388 = vpop.permute.xlu0 %1387
      %1389 = vrot.lane.b32.xlu0 %v607, 48
      %v1390 = vpop.permute.xlu0 %1389
      %1391 = vrot.lane.b32.xlu0 %v608, 48
      %v1392 = vpop.permute.xlu0 %1391
      %1393 = vrot.lane.b32.xlu0 %v609, 48
      %v1394 = vpop.permute.xlu0 %1393
      %1395 = vrot.lane.b32.xlu0 %v610, 48
      %v1396 = vpop.permute.xlu0 %1395
      %1397 = vrot.lane.b32.xlu0 %v611, 48
      %v1398 = vpop.permute.xlu0 %1397
      %1399 = vrot.lane.b32.xlu0 %v612, 48
      %v1400 = vpop.permute.xlu0 %1399
      %1401 = vrot.lane.b32.xlu0 %v613, 48
      %v1402 = vpop.permute.xlu0 %1401
      %1403 = vrot.lane.b32.xlu0 %v614, 48
      %v1404 = vpop.permute.xlu0 %1403
      %1405 = vrot.lane.b32.xlu0 %v615, 48
      %v1406 = vpop.permute.xlu0 %1405
      %1407 = vrot.lane.b32.xlu0 %v616, 48
      %v1408 = vpop.permute.xlu0 %1407
      %1409 = vrot.lane.b32.xlu0 %v617, 48
      %v1410 = vpop.permute.xlu0 %1409
      %1411 = vrot.lane.b32.xlu0 %v618, 48
      %v1412 = vpop.permute.xlu0 %1411
      %1413 = vrot.lane.b32.xlu0 %v619, 48
      %v1414 = vpop.permute.xlu0 %1413
      %1415 = vrot.lane.b32.xlu0 %v620, 48
      %v1416 = vpop.permute.xlu0 %1415
      %1417 = vrot.lane.b32.xlu0 %v621, 48
      %v1418 = vpop.permute.xlu0 %1417
      %1419 = vrot.lane.b32.xlu0 %v622, 48
      %v1420 = vpop.permute.xlu0 %1419
      %1421 = vrot.lane.b32.xlu0 %v623, 48
      %v1422 = vpop.permute.xlu0 %1421
      %1423 = vrot.lane.b32.xlu0 %v624, 48
      %v1424 = vpop.permute.xlu0 %1423
      %1489 = vrot.lane.b32.xlu0 %v625, 56
      %v1490 = vpop.permute.xlu0 %1489
      %1491 = vrot.lane.b32.xlu0 %v626, 56
      %v1492 = vpop.permute.xlu0 %1491
      %1493 = vrot.lane.b32.xlu0 %v627, 56
      %v1494 = vpop.permute.xlu0 %1493
      %1495 = vrot.lane.b32.xlu0 %v628, 56
      %v1496 = vpop.permute.xlu0 %1495
      %1497 = vrot.lane.b32.xlu0 %v629, 56
      %v1498 = vpop.permute.xlu0 %1497
      %1499 = vrot.lane.b32.xlu0 %v630, 56
      %v1500 = vpop.permute.xlu0 %1499
      %1501 = vrot.lane.b32.xlu0 %v631, 56
      %v1502 = vpop.permute.xlu0 %1501
      %1503 = vrot.lane.b32.xlu0 %v632, 56
      %v1504 = vpop.permute.xlu0 %1503
      %1505 = vrot.lane.b32.xlu0 %v633, 56
      %v1506 = vpop.permute.xlu0 %1505
      %1507 = vrot.lane.b32.xlu0 %v634, 56
      %v1508 = vpop.permute.xlu0 %1507
      %1509 = vrot.lane.b32.xlu0 %v635, 56
      %v1510 = vpop.permute.xlu0 %1509
      %1511 = vrot.lane.b32.xlu0 %v636, 56
      %v1512 = vpop.permute.xlu0 %1511
      %1513 = vrot.lane.b32.xlu0 %v637, 56
      %v1514 = vpop.permute.xlu0 %1513
      %1515 = vrot.lane.b32.xlu0 %v638, 56
      %v1516 = vpop.permute.xlu0 %1515
      %1517 = vrot.lane.b32.xlu0 %v639, 56
      %v1518 = vpop.permute.xlu0 %1517
      %1519 = vrot.lane.b32.xlu0 %v640, 56
      %v1520 = vpop.permute.xlu0 %1519
      %1521 = vrot.lane.b32.xlu0 %v641, 56
      %v1522 = vpop.permute.xlu0 %1521
      %1523 = vrot.lane.b32.xlu0 %v642, 56
      %v1524 = vpop.permute.xlu0 %1523
      %1525 = vrot.lane.b32.xlu0 %v643, 56
      %v1526 = vpop.permute.xlu0 %1525
      %1527 = vrot.lane.b32.xlu0 %v644, 56
      %v1528 = vpop.permute.xlu0 %1527
      %1529 = vrot.lane.b32.xlu0 %v645, 56
      %v1530 = vpop.permute.xlu0 %1529
      %1531 = vrot.lane.b32.xlu0 %v646, 56
      %v1532 = vpop.permute.xlu0 %1531
      %1533 = vrot.lane.b32.xlu0 %v647, 56
      %v1534 = vpop.permute.xlu0 %1533
      %1535 = vrot.lane.b32.xlu0 %v648, 56
      %v1536 = vpop.permute.xlu0 %1535
      %1537 = vrot.lane.b32.xlu0 %v649, 56
      %v1538 = vpop.permute.xlu0 %1537
      %1539 = vrot.lane.b32.xlu0 %v650, 56
      %v1540 = vpop.permute.xlu0 %1539
      %1541 = vrot.lane.b32.xlu0 %v651, 56
      %v1542 = vpop.permute.xlu0 %1541
      %1543 = vrot.lane.b32.xlu0 %v652, 56
      %v1544 = vpop.permute.xlu0 %1543
      %1545 = vrot.lane.b32.xlu0 %v653, 56
      %v1546 = vpop.permute.xlu0 %1545
      %1547 = vrot.lane.b32.xlu0 %v654, 56
      %v1548 = vpop.permute.xlu0 %1547
      %1549 = vrot.lane.b32.xlu0 %v655, 56
      %v1550 = vpop.permute.xlu0 %1549
      %1551 = vrot.lane.b32.xlu0 %v656, 56
      %v1552 = vpop.permute.xlu0 %1551
      %1617 = vrot.lane.b32.xlu0 %v657, 64
      %v1618 = vpop.permute.xlu0 %1617
      %1619 = vrot.lane.b32.xlu0 %v658, 64
      %v1620 = vpop.permute.xlu0 %1619
      %1621 = vrot.lane.b32.xlu0 %v659, 64
      %v1622 = vpop.permute.xlu0 %1621
      %1623 = vrot.lane.b32.xlu0 %v660, 64
      %v1624 = vpop.permute.xlu0 %1623
      %1625 = vrot.lane.b32.xlu0 %v661, 64
      %v1626 = vpop.permute.xlu0 %1625
      %1627 = vrot.lane.b32.xlu0 %v662, 64
      %v1628 = vpop.permute.xlu0 %1627
      %1629 = vrot.lane.b32.xlu0 %v663, 64
      %v1630 = vpop.permute.xlu0 %1629
      %1631 = vrot.lane.b32.xlu0 %v664, 64
      %v1632 = vpop.permute.xlu0 %1631
      %1633 = vrot.lane.b32.xlu0 %v665, 64
      %v1634 = vpop.permute.xlu0 %1633
      %1635 = vrot.lane.b32.xlu0 %v666, 64
      %v1636 = vpop.permute.xlu0 %1635
      %1637 = vrot.lane.b32.xlu0 %v667, 64
      %v1638 = vpop.permute.xlu0 %1637
      %1639 = vrot.lane.b32.xlu0 %v668, 64
      %v1640 = vpop.permute.xlu0 %1639
      %1641 = vrot.lane.b32.xlu0 %v669, 64
      %v1642 = vpop.permute.xlu0 %1641
      %1643 = vrot.lane.b32.xlu0 %v670, 64
      %v1644 = vpop.permute.xlu0 %1643
      %1645 = vrot.lane.b32.xlu0 %v671, 64
      %v1646 = vpop.permute.xlu0 %1645
      %1647 = vrot.lane.b32.xlu0 %v672, 64
      %v1648 = vpop.permute.xlu0 %1647
      %1649 = vrot.lane.b32.xlu0 %v673, 64
      %v1650 = vpop.permute.xlu0 %1649
      %1651 = vrot.lane.b32.xlu0 %v674, 64
      %v1652 = vpop.permute.xlu0 %1651
      %1653 = vrot.lane.b32.xlu0 %v675, 64
      %v1654 = vpop.permute.xlu0 %1653
      %1655 = vrot.lane.b32.xlu0 %v676, 64
      %v1656 = vpop.permute.xlu0 %1655
      %1657 = vrot.lane.b32.xlu0 %v677, 64
      %v1658 = vpop.permute.xlu0 %1657
      %1659 = vrot.lane.b32.xlu0 %v678, 64
      %v1660 = vpop.permute.xlu0 %1659
      %1661 = vrot.lane.b32.xlu0 %v679, 64
      %v1662 = vpop.permute.xlu0 %1661
      %1663 = vrot.lane.b32.xlu0 %v680, 64
      %v1664 = vpop.permute.xlu0 %1663
      %1665 = vrot.lane.b32.xlu0 %v681, 64
      %v1666 = vpop.permute.xlu0 %1665
      %1667 = vrot.lane.b32.xlu0 %v682, 64
      %v1668 = vpop.permute.xlu0 %1667
      %1669 = vrot.lane.b32.xlu0 %v683, 64
      %v1670 = vpop.permute.xlu0 %1669
      %1671 = vrot.lane.b32.xlu0 %v684, 64
      %v1672 = vpop.permute.xlu0 %1671
      %1673 = vrot.lane.b32.xlu0 %v685, 64
      %v1674 = vpop.permute.xlu0 %1673
      %1675 = vrot.lane.b32.xlu0 %v686, 64
      %v1676 = vpop.permute.xlu0 %1675
      %1677 = vrot.lane.b32.xlu0 %v687, 64
      %v1678 = vpop.permute.xlu0 %1677
      %1679 = vrot.lane.b32.xlu0 %v688, 64
      %v1680 = vpop.permute.xlu0 %1679
      %v1713 = vsel %vm279, %v400, %v722
      %v1714 = vsel %vm279, %v401, %v724
      %v1715 = vsel %vm279, %v402, %v726
      %v1716 = vsel %vm279, %v403, %v728
      %v1717 = vsel %vm279, %v404, %v730
      %v1718 = vsel %vm279, %v405, %v732
      %v1719 = vsel %vm279, %v406, %v734
      %v1720 = vsel %vm279, %v407, %v736
      %v1721 = vsel %vm279, %v408, %v738
      %v1722 = vsel %vm279, %v409, %v740
      %v1723 = vsel %vm279, %v410, %v742
      %v1724 = vsel %vm279, %v411, %v744
      %v1725 = vsel %vm279, %v412, %v746
      %v1726 = vsel %vm279, %v413, %v748
      %v1727 = vsel %vm279, %v414, %v750
      %v1728 = vsel %vm279, %v415, %v752
      %v1729 = vsel %vm279, %v416, %v754
      %v1730 = vsel %vm279, %v417, %v756
      %v1731 = vsel %vm279, %v418, %v758
      %v1732 = vsel %vm279, %v419, %v760
      %v1733 = vsel %vm279, %v420, %v762
      %v1734 = vsel %vm279, %v421, %v764
      %v1735 = vsel %vm279, %v422, %v766
      %v1736 = vsel %vm279, %v423, %v768
      %v1737 = vsel %vm279, %v424, %v770
      %v1738 = vsel %vm279, %v425, %v772
      %v1739 = vsel %vm279, %v426, %v774
      %v1740 = vsel %vm279, %v427, %v776
      %v1741 = vsel %vm279, %v428, %v778
      %v1742 = vsel %vm279, %v429, %v780
      %v1743 = vsel %vm279, %v430, %v782
      %v1744 = vsel %vm279, %v431, %v784
      %vm1745 = vcmask 130048
      %v1746 = vsel %vm1745, %v1713, %v850
      %v1747 = vsel %vm1745, %v1714, %v852
      %v1748 = vsel %vm1745, %v1715, %v854
      %v1749 = vsel %vm1745, %v1716, %v856
      %v1750 = vsel %vm1745, %v1717, %v858
      %v1751 = vsel %vm1745, %v1718, %v860
      %v1752 = vsel %vm1745, %v1719, %v862
      %v1753 = vsel %vm1745, %v1720, %v864
      %v1754 = vsel %vm1745, %v1721, %v866
      %v1755 = vsel %vm1745, %v1722, %v868
      %v1756 = vsel %vm1745, %v1723, %v870
      %v1757 = vsel %vm1745, %v1724, %v872
      %v1758 = vsel %vm1745, %v1725, %v874
      %v1759 = vsel %vm1745, %v1726, %v876
      %v1760 = vsel %vm1745, %v1727, %v878
      %v1761 = vsel %vm1745, %v1728, %v880
      %v1762 = vsel %vm1745, %v1729, %v882
      %v1763 = vsel %vm1745, %v1730, %v884
      %v1764 = vsel %vm1745, %v1731, %v886
      %v1765 = vsel %vm1745, %v1732, %v888
      %v1766 = vsel %vm1745, %v1733, %v890
      %v1767 = vsel %vm1745, %v1734, %v892
      %v1768 = vsel %vm1745, %v1735, %v894
      %v1769 = vsel %vm1745, %v1736, %v896
      %v1770 = vsel %vm1745, %v1737, %v898
      %v1771 = vsel %vm1745, %v1738, %v900
      %v1772 = vsel %vm1745, %v1739, %v902
      %v1773 = vsel %vm1745, %v1740, %v904
      %v1774 = vsel %vm1745, %v1741, %v906
      %v1775 = vsel %vm1745, %v1742, %v908
      %v1776 = vsel %vm1745, %v1743, %v910
      %v1777 = vsel %vm1745, %v1744, %v912
      %vm1778 = vcmask 195584
      %v1779 = vsel %vm1778, %v1746, %v978
      %v1780 = vsel %vm1778, %v1747, %v980
      %v1781 = vsel %vm1778, %v1748, %v982
      %v1782 = vsel %vm1778, %v1749, %v984
      %v1783 = vsel %vm1778, %v1750, %v986
      %v1784 = vsel %vm1778, %v1751, %v988
      %v1785 = vsel %vm1778, %v1752, %v990
      %v1786 = vsel %vm1778, %v1753, %v992
      %v1787 = vsel %vm1778, %v1754, %v994
      %v1788 = vsel %vm1778, %v1755, %v996
      %v1789 = vsel %vm1778, %v1756, %v998
      %v1790 = vsel %vm1778, %v1757, %v1000
      %v1791 = vsel %vm1778, %v1758, %v1002
      %v1792 = vsel %vm1778, %v1759, %v1004
      %v1793 = vsel %vm1778, %v1760, %v1006
      %v1794 = vsel %vm1778, %v1761, %v1008
      %v1795 = vsel %vm1778, %v1762, %v1010
      %v1796 = vsel %vm1778, %v1763, %v1012
      %v1797 = vsel %vm1778, %v1764, %v1014
      %v1798 = vsel %vm1778, %v1765, %v1016
      %v1799 = vsel %vm1778, %v1766, %v1018
      %v1800 = vsel %vm1778, %v1767, %v1020
      %v1801 = vsel %vm1778, %v1768, %v1022
      %v1802 = vsel %vm1778, %v1769, %v1024
      %v1803 = vsel %vm1778, %v1770, %v1026
      %v1804 = vsel %vm1778, %v1771, %v1028
      %v1805 = vsel %vm1778, %v1772, %v1030
      %v1806 = vsel %vm1778, %v1773, %v1032
      %v1807 = vsel %vm1778, %v1774, %v1034
      %v1808 = vsel %vm1778, %v1775, %v1036
      %v1809 = vsel %vm1778, %v1776, %v1038
      %v1810 = vsel %vm1778, %v1777, %v1040
      %vm1811 = vcmask 261120
      %v1812 = vsel %vm1811, %v1779, %v1106
      %v1813 = vsel %vm1811, %v1780, %v1108
      %v1814 = vsel %vm1811, %v1781, %v1110
      %v1815 = vsel %vm1811, %v1782, %v1112
      %v1816 = vsel %vm1811, %v1783, %v1114
      %v1817 = vsel %vm1811, %v1784, %v1116
      %v1818 = vsel %vm1811, %v1785, %v1118
      %v1819 = vsel %vm1811, %v1786, %v1120
      %v1820 = vsel %vm1811, %v1787, %v1122
      %v1821 = vsel %vm1811, %v1788, %v1124
      %v1822 = vsel %vm1811, %v1789, %v1126
      %v1823 = vsel %vm1811, %v1790, %v1128
      %v1824 = vsel %vm1811, %v1791, %v1130
      %v1825 = vsel %vm1811, %v1792, %v1132
      %v1826 = vsel %vm1811, %v1793, %v1134
      %v1827 = vsel %vm1811, %v1794, %v1136
      %v1828 = vsel %vm1811, %v1795, %v1138
      %v1829 = vsel %vm1811, %v1796, %v1140
      %v1830 = vsel %vm1811, %v1797, %v1142
      %v1831 = vsel %vm1811, %v1798, %v1144
      %v1832 = vsel %vm1811, %v1799, %v1146
      %v1833 = vsel %vm1811, %v1800, %v1148
      %v1834 = vsel %vm1811, %v1801, %v1150
      %v1835 = vsel %vm1811, %v1802, %v1152
      %v1836 = vsel %vm1811, %v1803, %v1154
      %v1837 = vsel %vm1811, %v1804, %v1156
      %v1838 = vsel %vm1811, %v1805, %v1158
      %v1839 = vsel %vm1811, %v1806, %v1160
      %v1840 = vsel %vm1811, %v1807, %v1162
      %v1841 = vsel %vm1811, %v1808, %v1164
      %v1842 = vsel %vm1811, %v1809, %v1166
      %v1843 = vsel %vm1811, %v1810, %v1168
      %vm1844 = vcmask 326656
      %v1845 = vsel %vm1844, %v1812, %v1234
      %v1846 = vsel %vm1844, %v1813, %v1236
      %v1847 = vsel %vm1844, %v1814, %v1238
      %v1848 = vsel %vm1844, %v1815, %v1240
      %v1849 = vsel %vm1844, %v1816, %v1242
      %v1850 = vsel %vm1844, %v1817, %v1244
      %v1851 = vsel %vm1844, %v1818, %v1246
      %v1852 = vsel %vm1844, %v1819, %v1248
      %v1853 = vsel %vm1844, %v1820, %v1250
      %v1854 = vsel %vm1844, %v1821, %v1252
      %v1855 = vsel %vm1844, %v1822, %v1254
      %v1856 = vsel %vm1844, %v1823, %v1256
      %v1857 = vsel %vm1844, %v1824, %v1258
      %v1858 = vsel %vm1844, %v1825, %v1260
      %v1859 = vsel %vm1844, %v1826, %v1262
      %v1860 = vsel %vm1844, %v1827, %v1264
      %v1861 = vsel %vm1844, %v1828, %v1266
      %v1862 = vsel %vm1844, %v1829, %v1268
      %v1863 = vsel %vm1844, %v1830, %v1270
      %v1864 = vsel %vm1844, %v1831, %v1272
      %v1865 = vsel %vm1844, %v1832, %v1274
      %v1866 = vsel %vm1844, %v1833, %v1276
      %v1867 = vsel %vm1844, %v1834, %v1278
      %v1868 = vsel %vm1844, %v1835, %v1280
      %v1869 = vsel %vm1844, %v1836, %v1282
      %v1870 = vsel %vm1844, %v1837, %v1284
      %v1871 = vsel %vm1844, %v1838, %v1286
      %v1872 = vsel %vm1844, %v1839, %v1288
      %v1873 = vsel %vm1844, %v1840, %v1290
      %v1874 = vsel %vm1844, %v1841, %v1292
      %v1875 = vsel %vm1844, %v1842, %v1294
      %v1876 = vsel %vm1844, %v1843, %v1296
      %vm1877 = vcmask 392192
      %v1878 = vsel %vm1877, %v1845, %v1362
      %v1879 = vsel %vm1877, %v1846, %v1364
      %v1880 = vsel %vm1877, %v1847, %v1366
      %v1881 = vsel %vm1877, %v1848, %v1368
      %v1882 = vsel %vm1877, %v1849, %v1370
      %v1883 = vsel %vm1877, %v1850, %v1372
      %v1884 = vsel %vm1877, %v1851, %v1374
      %v1885 = vsel %vm1877, %v1852, %v1376
      %v1886 = vsel %vm1877, %v1853, %v1378
      %v1887 = vsel %vm1877, %v1854, %v1380
      %v1888 = vsel %vm1877, %v1855, %v1382
      %v1889 = vsel %vm1877, %v1856, %v1384
      %v1890 = vsel %vm1877, %v1857, %v1386
      %v1891 = vsel %vm1877, %v1858, %v1388
      %v1892 = vsel %vm1877, %v1859, %v1390
      %v1893 = vsel %vm1877, %v1860, %v1392
      %v1894 = vsel %vm1877, %v1861, %v1394
      %v1895 = vsel %vm1877, %v1862, %v1396
      %v1896 = vsel %vm1877, %v1863, %v1398
      %v1897 = vsel %vm1877, %v1864, %v1400
      %v1898 = vsel %vm1877, %v1865, %v1402
      %v1899 = vsel %vm1877, %v1866, %v1404
      %v1900 = vsel %vm1877, %v1867, %v1406
      %v1901 = vsel %vm1877, %v1868, %v1408
      %v1902 = vsel %vm1877, %v1869, %v1410
      %v1903 = vsel %vm1877, %v1870, %v1412
      %v1904 = vsel %vm1877, %v1871, %v1414
      %v1905 = vsel %vm1877, %v1872, %v1416
      %v1906 = vsel %vm1877, %v1873, %v1418
      %v1907 = vsel %vm1877, %v1874, %v1420
      %v1908 = vsel %vm1877, %v1875, %v1422
      %v1909 = vsel %vm1877, %v1876, %v1424
      %vm1910 = vcmask 457728
      %v1911 = vsel %vm1910, %v1878, %v1490
      %v1912 = vsel %vm1910, %v1879, %v1492
      %v1913 = vsel %vm1910, %v1880, %v1494
      %v1914 = vsel %vm1910, %v1881, %v1496
      %v1915 = vsel %vm1910, %v1882, %v1498
      %v1916 = vsel %vm1910, %v1883, %v1500
      %v1917 = vsel %vm1910, %v1884, %v1502
      %v1918 = vsel %vm1910, %v1885, %v1504
      %v1919 = vsel %vm1910, %v1886, %v1506
      %v1920 = vsel %vm1910, %v1887, %v1508
      %v1921 = vsel %vm1910, %v1888, %v1510
      %v1922 = vsel %vm1910, %v1889, %v1512
      %v1923 = vsel %vm1910, %v1890, %v1514
      %v1924 = vsel %vm1910, %v1891, %v1516
      %v1925 = vsel %vm1910, %v1892, %v1518
      %v1926 = vsel %vm1910, %v1893, %v1520
      %v1927 = vsel %vm1910, %v1894, %v1522
      %v1928 = vsel %vm1910, %v1895, %v1524
      %v1929 = vsel %vm1910, %v1896, %v1526
      %v1930 = vsel %vm1910, %v1897, %v1528
      %v1931 = vsel %vm1910, %v1898, %v1530
      %v1932 = vsel %vm1910, %v1899, %v1532
      %v1933 = vsel %vm1910, %v1900, %v1534
      %v1934 = vsel %vm1910, %v1901, %v1536
      %v1935 = vsel %vm1910, %v1902, %v1538
      %v1936 = vsel %vm1910, %v1903, %v1540
      %v1937 = vsel %vm1910, %v1904, %v1542
      %v1938 = vsel %vm1910, %v1905, %v1544
      %v1939 = vsel %vm1910, %v1906, %v1546
      %v1940 = vsel %vm1910, %v1907, %v1548
      %v1941 = vsel %vm1910, %v1908, %v1550
      %v1942 = vsel %vm1910, %v1909, %v1552
      %vm1943 = vcmask 523264
      %v1944 = vsel %vm1943, %v1911, %v1618
      %v1945 = vsel %vm1943, %v1912, %v1620
      %v1946 = vsel %vm1943, %v1913, %v1622
      %v1947 = vsel %vm1943, %v1914, %v1624
      %v1948 = vsel %vm1943, %v1915, %v1626
      %v1949 = vsel %vm1943, %v1916, %v1628
      %v1950 = vsel %vm1943, %v1917, %v1630
      %v1951 = vsel %vm1943, %v1918, %v1632
      %v1952 = vsel %vm1943, %v1919, %v1634
      %v1953 = vsel %vm1943, %v1920, %v1636
      %v1954 = vsel %vm1943, %v1921, %v1638
      %v1955 = vsel %vm1943, %v1922, %v1640
      %v1956 = vsel %vm1943, %v1923, %v1642
      %v1957 = vsel %vm1943, %v1924, %v1644
      %v1958 = vsel %vm1943, %v1925, %v1646
      %v1959 = vsel %vm1943, %v1926, %v1648
      %v1960 = vsel %vm1943, %v1927, %v1650
      %v1961 = vsel %vm1943, %v1928, %v1652
      %v1962 = vsel %vm1943, %v1929, %v1654
      %v1963 = vsel %vm1943, %v1930, %v1656
      %v1964 = vsel %vm1943, %v1931, %v1658
      %v1965 = vsel %vm1943, %v1932, %v1660
      %v1966 = vsel %vm1943, %v1933, %v1662
      %v1967 = vsel %vm1943, %v1934, %v1664
      %v1968 = vsel %vm1943, %v1935, %v1666
      %v1969 = vsel %vm1943, %v1936, %v1668
      %v1970 = vsel %vm1943, %v1937, %v1670
      %v1971 = vsel %vm1943, %v1938, %v1672
      %v1972 = vsel %vm1943, %v1939, %v1674
      %v1973 = vsel %vm1943, %v1940, %v1676
      %v1974 = vsel %vm1943, %v1941, %v1678
      %v1975 = vsel %vm1943, %v1942, %v1680
      %v1976 = vld [vmem:[%s1] sm:$0xff]
      %v1977 = vld [vmem:[%s1 + $0x8] sm:$0xff]
      %v1978 = vld [vmem:[%s1 + $0x10] sm:$0xff]
      %v1979 = vld [vmem:[%s1 + $0x18] sm:$0xff]
      %v1980 = vld [vmem:[%s1 + $0x20] sm:$0xff]
      %v1981 = vld [vmem:[%s1 + $0x28] sm:$0xff]
      %v1982 = vld [vmem:[%s1 + $0x30] sm:$0xff]
      %v1983 = vld [vmem:[%s1 + $0x38] sm:$0xff]
      %v1984 = vld [vmem:[%s1 + $0x40] sm:$0xff]
      %v1985 = vld [vmem:[%s2] sm:$0x1]
      %v1987 = vlaneseq
      %v1988 = vshrl.u32 %v1987, 7
      %v1989 = vsub.s32 0, %v1988
      %v1990 = vrot.slane %v1985, %v1989
      %vm1992 = vcmask 588800
      %v1994 = vsel %vm1992, %v1944, 0
      %v1997 = vsel %vm1992, %v1945, 0
      %v2000 = vsel %vm1992, %v1946, 0
      %v2003 = vsel %vm1992, %v1947, 0
      %v2006 = vsel %vm1992, %v1948, 0
      %v2009 = vsel %vm1992, %v1949, 0
      %v2012 = vsel %vm1992, %v1950, 0
      %v2015 = vsel %vm1992, %v1951, 0
      %v2018 = vsel %vm1992, %v1952, 0
      %v2021 = vsel %vm1992, %v1953, 0
      %v2024 = vsel %vm1992, %v1954, 0
      %v2027 = vsel %vm1992, %v1955, 0
      %v2030 = vsel %vm1992, %v1956, 0
      %v2033 = vsel %vm1992, %v1957, 0
      %v2036 = vsel %vm1992, %v1958, 0
      %v2039 = vsel %vm1992, %v1959, 0
      %v2042 = vsel %vm1992, %v1960, 0
      %v2045 = vsel %vm1992, %v1961, 0
      %v2048 = vsel %vm1992, %v1962, 0
      %v2051 = vsel %vm1992, %v1963, 0
      %v2054 = vsel %vm1992, %v1964, 0
      %v2057 = vsel %vm1992, %v1965, 0
      %v2060 = vsel %vm1992, %v1966, 0
      %v2063 = vsel %vm1992, %v1967, 0
      %v2066 = vsel %vm1992, %v1968, 0
      %v2069 = vsel %vm1992, %v1969, 0
      %v2072 = vsel %vm1992, %v1970, 0
      %v2075 = vsel %vm1992, %v1971, 0
      %v2078 = vsel %vm1992, %v1972, 0
      %v2081 = vsel %vm1992, %v1973, 0
      %v2084 = vsel %vm1992, %v1974, 0
      %v2087 = vsel %vm1992, %v1975, 0
      %2089 = vmatprep.subr.mxu0 0.0
      %2090 = vmatpush1.msra.mxu0 0.0
      %2091 = vmatprep.subr.mxu0 0.0
      %2092 = vmatpush1.msra.mxu0 0.0
      %2093 = vmatprep.subr.mxu0 0.0
      %2094 = vmatpush1.msra.mxu0 0.0
      %2095 = vmatprep.subr.mxu0 0.0
      %2096 = vmatpush1.msra.mxu0 0.0
      %2097 = vmatprep.subr.mxu0 0.0
      %2098 = vmatpush1.msra.mxu0 0.0
      %2099 = vmatprep.subr.mxu0 0.0
      %2100 = vmatpush1.msra.mxu0 0.0
      %2101 = vmatprep.subr.mxu0 0.0
      %2102 = vmatpush1.msra.mxu0 0.0
      %2103 = vmatprep.subr.mxu0 0.0
      %2104 = vmatpush1.msra.mxu0 %v1984
      %2105 = vmatprep.subr.mxu0 0.0
      %2106 = vmatpush1.msra.mxu0 %v1983
      %2107 = vmatprep.subr.mxu0 0.0
      %2108 = vmatpush1.msra.mxu0 %v1982
      %2109 = vmatprep.subr.mxu0 0.0
      %2110 = vmatpush1.msra.mxu0 %v1981
      %2111 = vmatprep.subr.mxu0 0.0
      %2112 = vmatpush1.msra.mxu0 %v1980
      %2113 = vmatprep.subr.mxu0 0.0
      %2114 = vmatpush1.msra.mxu0 %v1979
      %2115 = vmatprep.subr.mxu0 0.0
      %2116 = vmatpush1.msra.mxu0 %v1978
      %2117 = vmatprep.subr.mxu0 0.0
      %2118 = vmatpush1.msra.mxu0 %v1977
      %2119 = vmatprep.subr.mxu0 0.0
      %2120 = vmatpush1.msra.mxu0 %v1976
      %2121 = vmatprep.subr.mxu0 0.0
      %2122 = vmatpush2.msra.mxu0 0.0
      %2123 = vmatprep.subr.mxu0 0.0
      %2124 = vmatpush2.msra.mxu0 0.0
      %2125 = vmatprep.subr.mxu0 0.0
      %2126 = vmatpush2.msra.mxu0 0.0
      %2127 = vmatprep.subr.mxu0 0.0
      %2128 = vmatpush2.msra.mxu0 0.0
      %2129 = vmatprep.subr.mxu0 0.0
      %2130 = vmatpush2.msra.mxu0 0.0
      %2131 = vmatprep.subr.mxu0 0.0
      %2132 = vmatpush2.msra.mxu0 0.0
      %2133 = vmatprep.subr.mxu0 0.0
      %2134 = vmatpush2.msra.mxu0 0.0
      %2135 = vmatprep.subr.mxu0 0.0
      %2136 = vmatpush2.msra.mxu0 0.0
      %2137 = vmatprep.subr.mxu0 0.0
      %2138 = vmatpush2.msra.mxu0 0.0
      %2139 = vmatprep.subr.mxu0 0.0
      %2140 = vmatpush2.msra.mxu0 0.0
      %2141 = vmatprep.subr.mxu0 0.0
      %2142 = vmatpush2.msra.mxu0 0.0
      %2143 = vmatprep.subr.mxu0 0.0
      %2144 = vmatpush2.msra.mxu0 0.0
      %2145 = vmatprep.subr.mxu0 0.0
      %2146 = vmatpush2.msra.mxu0 0.0
      %2147 = vmatprep.subr.mxu0 0.0
      %2148 = vmatpush2.msra.mxu0 0.0
      %2149 = vmatprep.subr.mxu0 0.0
      %2150 = vmatpush2.msra.mxu0 0.0
      %2151 = vmatprep.subr.mxu0 0.0
      %2152 = vmatpush2.msra.mxu0 0.0
      %2153 = vmatprep.mubr.f32.mxu0 0.0
      %2154 = vmatmul.mubr.f32.gmra.mxu0 %v1994
      %v2155 = vpop.f32.mrf.mxu0
      %v2156 = vadd.f32 %v1990, %v2155
      %v2157 = vpop.f32.mrf.mxu0
      %2158 = vmatprep.mubr.f32.mxu0 0.0
      %2159 = vmatmul.mubr.f32.gmra.mxu0 %v1997
      %v2160 = vpop.f32.mrf.mxu0
      %v2161 = vadd.f32 %v1990, %v2160
      %v2162 = vpop.f32.mrf.mxu0
      %2163 = vmatprep.mubr.f32.mxu0 0.0
      %2164 = vmatmul.mubr.f32.gmra.mxu0 %v2000
      %v2165 = vpop.f32.mrf.mxu0
      %v2166 = vadd.f32 %v1990, %v2165
      %v2167 = vpop.f32.mrf.mxu0
      %2168 = vmatprep.mubr.f32.mxu0 0.0
      %2169 = vmatmul.mubr.f32.gmra.mxu0 %v2003
      %v2170 = vpop.f32.mrf.mxu0
      %v2171 = vadd.f32 %v1990, %v2170
      %v2172 = vpop.f32.mrf.mxu0
      %2173 = vmatprep.mubr.f32.mxu0 0.0
      %2174 = vmatmul.mubr.f32.gmra.mxu0 %v2006
      %v2175 = vpop.f32.mrf.mxu0
      %v2176 = vadd.f32 %v1990, %v2175
      %v2177 = vpop.f32.mrf.mxu0
      %2178 = vmatprep.mubr.f32.mxu0 0.0
      %2179 = vmatmul.mubr.f32.gmra.mxu0 %v2009
      %v2180 = vpop.f32.mrf.mxu0
      %v2181 = vadd.f32 %v1990, %v2180
      %v2182 = vpop.f32.mrf.mxu0
      %2183 = vmatprep.mubr.f32.mxu0 0.0
      %2184 = vmatmul.mubr.f32.gmra.mxu0 %v2012
      %v2185 = vpop.f32.mrf.mxu0
      %v2186 = vadd.f32 %v1990, %v2185
      %v2187 = vpop.f32.mrf.mxu0
      %2188 = vmatprep.mubr.f32.mxu0 0.0
      %2189 = vmatmul.mubr.f32.gmra.mxu0 %v2015
      %v2190 = vpop.f32.mrf.mxu0
      %v2191 = vadd.f32 %v1990, %v2190
      %v2192 = vpop.f32.mrf.mxu0
      %2193 = vmatprep.mubr.f32.mxu0 0.0
      %2194 = vmatmul.mubr.f32.gmra.mxu0 %v2018
      %v2195 = vpop.f32.mrf.mxu0
      %v2196 = vadd.f32 %v1990, %v2195
      %v2197 = vpop.f32.mrf.mxu0
      %2198 = vmatprep.mubr.f32.mxu0 0.0
      %2199 = vmatmul.mubr.f32.gmra.mxu0 %v2021
      %v2200 = vpop.f32.mrf.mxu0
      %v2201 = vadd.f32 %v1990, %v2200
      %v2202 = vpop.f32.mrf.mxu0
      %2203 = vmatprep.mubr.f32.mxu0 0.0
      %2204 = vmatmul.mubr.f32.gmra.mxu0 %v2024
      %v2205 = vpop.f32.mrf.mxu0
      %v2206 = vadd.f32 %v1990, %v2205
      %v2207 = vpop.f32.mrf.mxu0
      %2208 = vmatprep.mubr.f32.mxu0 0.0
      %2209 = vmatmul.mubr.f32.gmra.mxu0 %v2027
      %v2210 = vpop.f32.mrf.mxu0
      %v2211 = vadd.f32 %v1990, %v2210
      %v2212 = vpop.f32.mrf.mxu0
      %2213 = vmatprep.mubr.f32.mxu0 0.0
      %2214 = vmatmul.mubr.f32.gmra.mxu0 %v2030
      %v2215 = vpop.f32.mrf.mxu0
      %v2216 = vadd.f32 %v1990, %v2215
      %v2217 = vpop.f32.mrf.mxu0
      %2218 = vmatprep.mubr.f32.mxu0 0.0
      %2219 = vmatmul.mubr.f32.gmra.mxu0 %v2033
      %v2220 = vpop.f32.mrf.mxu0
      %v2221 = vadd.f32 %v1990, %v2220
      %v2222 = vpop.f32.mrf.mxu0
      %2223 = vmatprep.mubr.f32.mxu0 0.0
      %2224 = vmatmul.mubr.f32.gmra.mxu0 %v2036
      %v2225 = vpop.f32.mrf.mxu0
      %v2226 = vadd.f32 %v1990, %v2225
      %v2227 = vpop.f32.mrf.mxu0
      %2228 = vmatprep.mubr.f32.mxu0 0.0
      %2229 = vmatmul.mubr.f32.gmra.mxu0 %v2039
      %v2230 = vpop.f32.mrf.mxu0
      %v2231 = vadd.f32 %v1990, %v2230
      %v2232 = vpop.f32.mrf.mxu0
      %2233 = vmatprep.mubr.f32.mxu0 0.0
      %2234 = vmatmul.mubr.f32.gmra.mxu0 %v2042
      %v2235 = vpop.f32.mrf.mxu0
      %v2236 = vadd.f32 %v1990, %v2235
      %v2237 = vpop.f32.mrf.mxu0
      %2238 = vmatprep.mubr.f32.mxu0 0.0
      %2239 = vmatmul.mubr.f32.gmra.mxu0 %v2045
      %v2240 = vpop.f32.mrf.mxu0
      %v2241 = vadd.f32 %v1990, %v2240
      %v2242 = vpop.f32.mrf.mxu0
      %2243 = vmatprep.mubr.f32.mxu0 0.0
      %2244 = vmatmul.mubr.f32.gmra.mxu0 %v2048
      %v2245 = vpop.f32.mrf.mxu0
      %v2246 = vadd.f32 %v1990, %v2245
      %v2247 = vpop.f32.mrf.mxu0
      %2248 = vmatprep.mubr.f32.mxu0 0.0
      %2249 = vmatmul.mubr.f32.gmra.mxu0 %v2051
      %v2250 = vpop.f32.mrf.mxu0
      %v2251 = vadd.f32 %v1990, %v2250
      %v2252 = vpop.f32.mrf.mxu0
      %2253 = vmatprep.mubr.f32.mxu0 0.0
      %2254 = vmatmul.mubr.f32.gmra.mxu0 %v2054
      %v2255 = vpop.f32.mrf.mxu0
      %v2256 = vadd.f32 %v1990, %v2255
      %v2257 = vpop.f32.mrf.mxu0
      %2258 = vmatprep.mubr.f32.mxu0 0.0
      %2259 = vmatmul.mubr.f32.gmra.mxu0 %v2057
      %v2260 = vpop.f32.mrf.mxu0
      %v2261 = vadd.f32 %v1990, %v2260
      %v2262 = vpop.f32.mrf.mxu0
      %2263 = vmatprep.mubr.f32.mxu0 0.0
      %2264 = vmatmul.mubr.f32.gmra.mxu0 %v2060
      %v2265 = vpop.f32.mrf.mxu0
      %v2266 = vadd.f32 %v1990, %v2265
      %v2267 = vpop.f32.mrf.mxu0
      %2268 = vmatprep.mubr.f32.mxu0 0.0
      %2269 = vmatmul.mubr.f32.gmra.mxu0 %v2063
      %v2270 = vpop.f32.mrf.mxu0
      %v2271 = vadd.f32 %v1990, %v2270
      %v2272 = vpop.f32.mrf.mxu0
      %2273 = vmatprep.mubr.f32.mxu0 0.0
      %2274 = vmatmul.mubr.f32.gmra.mxu0 %v2066
      %v2275 = vpop.f32.mrf.mxu0
      %v2276 = vadd.f32 %v1990, %v2275
      %v2277 = vpop.f32.mrf.mxu0
      %2278 = vmatprep.mubr.f32.mxu0 0.0
      %2279 = vmatmul.mubr.f32.gmra.mxu0 %v2069
      %v2280 = vpop.f32.mrf.mxu0
      %v2281 = vadd.f32 %v1990, %v2280
      %v2282 = vpop.f32.mrf.mxu0
      %2283 = vmatprep.mubr.f32.mxu0 0.0
      %2284 = vmatmul.mubr.f32.gmra.mxu0 %v2072
      %v2285 = vpop.f32.mrf.mxu0
      %v2286 = vadd.f32 %v1990, %v2285
      %v2287 = vpop.f32.mrf.mxu0
      %2288 = vmatprep.mubr.f32.mxu0 0.0
      %2289 = vmatmul.mubr.f32.gmra.mxu0 %v2075
      %v2290 = vpop.f32.mrf.mxu0
      %v2291 = vadd.f32 %v1990, %v2290
      %v2292 = vpop.f32.mrf.mxu0
      %2293 = vmatprep.mubr.f32.mxu0 0.0
      %2294 = vmatmul.mubr.f32.gmra.mxu0 %v2078
      %v2295 = vpop.f32.mrf.mxu0
      %v2296 = vadd.f32 %v1990, %v2295
      %v2297 = vpop.f32.mrf.mxu0
      %2298 = vmatprep.mubr.f32.mxu0 0.0
      %2299 = vmatmul.mubr.f32.gmra.mxu0 %v2081
      %v2300 = vpop.f32.mrf.mxu0
      %v2301 = vadd.f32 %v1990, %v2300
      %v2302 = vpop.f32.mrf.mxu0
      %2303 = vmatprep.mubr.f32.mxu0 0.0
      %2304 = vmatmul.mubr.f32.gmra.mxu0 %v2084
      %v2305 = vpop.f32.mrf.mxu0
      %v2306 = vadd.f32 %v1990, %v2305
      %v2307 = vpop.f32.mrf.mxu0
      %2308 = vmatprep.mubr.f32.mxu0 0.0
      %2309 = vmatmul.mubr.f32.gmra.mxu0 %v2087
      %v2310 = vpop.f32.mrf.mxu0
      %v2311 = vadd.f32 %v1990, %v2310
      %v2312 = vpop.f32.mrf.mxu0
      %2313 = vdwg.mxu0
      %vm2314 = vcmp.ge.f32.partialorder %v2156, 0.0
      %vm2315 = vcmp.ge.f32.partialorder %v2161, 0.0
      %vm2316 = vcmp.ge.f32.partialorder %v2166, 0.0
      %vm2317 = vcmp.ge.f32.partialorder %v2171, 0.0
      %vm2318 = vcmp.ge.f32.partialorder %v2176, 0.0
      %vm2319 = vcmp.ge.f32.partialorder %v2181, 0.0
      %vm2320 = vcmp.ge.f32.partialorder %v2186, 0.0
      %vm2321 = vcmp.ge.f32.partialorder %v2191, 0.0
      %vm2322 = vcmp.ge.f32.partialorder %v2196, 0.0
      %vm2323 = vcmp.ge.f32.partialorder %v2201, 0.0
      %vm2324 = vcmp.ge.f32.partialorder %v2206, 0.0
      %vm2325 = vcmp.ge.f32.partialorder %v2211, 0.0
      %vm2326 = vcmp.ge.f32.partialorder %v2216, 0.0
      %vm2327 = vcmp.ge.f32.partialorder %v2221, 0.0
      %vm2328 = vcmp.ge.f32.partialorder %v2226, 0.0
      %vm2329 = vcmp.ge.f32.partialorder %v2231, 0.0
      %vm2330 = vcmp.ge.f32.partialorder %v2236, 0.0
      %vm2331 = vcmp.ge.f32.partialorder %v2241, 0.0
      %vm2332 = vcmp.ge.f32.partialorder %v2246, 0.0
      %vm2333 = vcmp.ge.f32.partialorder %v2251, 0.0
      %vm2334 = vcmp.ge.f32.partialorder %v2256, 0.0
      %vm2335 = vcmp.ge.f32.partialorder %v2261, 0.0
      %vm2336 = vcmp.ge.f32.partialorder %v2266, 0.0
      %vm2337 = vcmp.ge.f32.partialorder %v2271, 0.0
      %vm2338 = vcmp.ge.f32.partialorder %v2276, 0.0
      %vm2339 = vcmp.ge.f32.partialorder %v2281, 0.0
      %vm2340 = vcmp.ge.f32.partialorder %v2286, 0.0
      %vm2341 = vcmp.ge.f32.partialorder %v2291, 0.0
      %vm2342 = vcmp.ge.f32.partialorder %v2296, 0.0
      %vm2343 = vcmp.ge.f32.partialorder %v2301, 0.0
      %vm2344 = vcmp.ge.f32.partialorder %v2306, 0.0
      %vm2345 = vcmp.ge.f32.partialorder %v2311, 0.0
      %v2346 = vmul.f32 %v2156, 0.1
      %v2347 = vmul.f32 %v2161, 0.1
      %v2348 = vmul.f32 %v2166, 0.1
      %v2349 = vmul.f32 %v2171, 0.1
      %v2350 = vmul.f32 %v2176, 0.1
      %v2351 = vmul.f32 %v2181, 0.1
      %v2352 = vmul.f32 %v2186, 0.1
      %v2353 = vmul.f32 %v2191, 0.1
      %v2354 = vmul.f32 %v2196, 0.1
      %v2355 = vmul.f32 %v2201, 0.1
      %v2356 = vmul.f32 %v2206, 0.1
      %v2357 = vmul.f32 %v2211, 0.1
      %v2358 = vmul.f32 %v2216, 0.1
      %v2359 = vmul.f32 %v2221, 0.1
      %v2360 = vmul.f32 %v2226, 0.1
      %v2361 = vmul.f32 %v2231, 0.1
      %v2362 = vmul.f32 %v2236, 0.1
      %v2363 = vmul.f32 %v2241, 0.1
      %v2364 = vmul.f32 %v2246, 0.1
      %v2365 = vmul.f32 %v2251, 0.1
      %v2366 = vmul.f32 %v2256, 0.1
      %v2367 = vmul.f32 %v2261, 0.1
      %v2368 = vmul.f32 %v2266, 0.1
      %v2369 = vmul.f32 %v2271, 0.1
      %v2370 = vmul.f32 %v2276, 0.1
      %v2371 = vmul.f32 %v2281, 0.1
      %v2372 = vmul.f32 %v2286, 0.1
      %v2373 = vmul.f32 %v2291, 0.1
      %v2374 = vmul.f32 %v2296, 0.1
      %v2375 = vmul.f32 %v2301, 0.1
      %v2376 = vmul.f32 %v2306, 0.1
      %v2377 = vmul.f32 %v2311, 0.1
      %v2378 = vsel %vm2314, %v2156, %v2346
      %v2379 = vsel %vm2315, %v2161, %v2347
      %v2380 = vsel %vm2316, %v2166, %v2348
      %v2381 = vsel %vm2317, %v2171, %v2349
      %v2382 = vsel %vm2318, %v2176, %v2350
      %v2383 = vsel %vm2319, %v2181, %v2351
      %v2384 = vsel %vm2320, %v2186, %v2352
      %v2385 = vsel %vm2321, %v2191, %v2353
      %v2386 = vsel %vm2322, %v2196, %v2354
      %v2387 = vsel %vm2323, %v2201, %v2355
      %v2388 = vsel %vm2324, %v2206, %v2356
      %v2389 = vsel %vm2325, %v2211, %v2357
      %v2390 = vsel %vm2326, %v2216, %v2358
      %v2391 = vsel %vm2327, %v2221, %v2359
      %v2392 = vsel %vm2328, %v2226, %v2360
      %v2393 = vsel %vm2329, %v2231, %v2361
      %v2394 = vsel %vm2330, %v2236, %v2362
      %v2395 = vsel %vm2331, %v2241, %v2363
      %v2396 = vsel %vm2332, %v2246, %v2364
      %v2397 = vsel %vm2333, %v2251, %v2365
      %v2398 = vsel %vm2334, %v2256, %v2366
      %v2399 = vsel %vm2335, %v2261, %v2367
      %v2400 = vsel %vm2336, %v2266, %v2368
      %v2401 = vsel %vm2337, %v2271, %v2369
      %v2402 = vsel %vm2338, %v2276, %v2370
      %v2403 = vsel %vm2339, %v2281, %v2371
      %v2404 = vsel %vm2340, %v2286, %v2372
      %v2405 = vsel %vm2341, %v2291, %v2373
      %v2406 = vsel %vm2342, %v2296, %v2374
      %v2407 = vsel %vm2343, %v2301, %v2375
      %v2408 = vsel %vm2344, %v2306, %v2376
      %v2409 = vsel %vm2345, %v2311, %v2377
      %vm2410 = vcmask 31744
      %2411 = vst.msk [vmem:[#allocation3] sm:$0xff] %vm2410, 0.0
      %2412 = vst.msk [vmem:[#allocation3 + $0x8] sm:$0xff] %vm2410, 0.0
      %vm2413 = vcmask 25600
      %2414 = vst.msk [vmem:[#allocation3 + $0x10] sm:$0x3] %vm2413, 0.0
      %2415 = vst.msk [vmem:[#allocation3 + $0x18] sm:$0xff] %vm2410, 0.0
      %2416 = vst.msk [vmem:[#allocation3 + $0x20] sm:$0xff] %vm2410, 0.0
      %2417 = vst.msk [vmem:[#allocation3 + $0x28] sm:$0x3] %vm2413, 0.0
      %2418 = vst.msk [vmem:[#allocation3 + $0x30] sm:$0xff] %vm2410, 0.0
      %2419 = vst.msk [vmem:[#allocation3 + $0x38] sm:$0xff] %vm2410, 0.0
      %2420 = vst.msk [vmem:[#allocation3 + $0x40] sm:$0x3] %vm2413, 0.0
      %2421 = vst.msk [vmem:[#allocation3 + $0x48] sm:$0xff] %vm2410, 0.0
      %2422 = vst.msk [vmem:[#allocation3 + $0x50] sm:$0xff] %vm2410, 0.0
      %2423 = vst.msk [vmem:[#allocation3 + $0x58] sm:$0x3] %vm2413, 0.0
      %2424 = vst.msk [vmem:[#allocation3 + $0x60] sm:$0xff] %vm2410, 0.0
      %2425 = vst.msk [vmem:[#allocation3 + $0x68] sm:$0xff] %vm2410, 0.0
      %2426 = vst.msk [vmem:[#allocation3 + $0x70] sm:$0x3] %vm2413, 0.0
      %2427 = vst.msk [vmem:[#allocation3 + $0x78] sm:$0xff] %vm2410, 0.0
      %2428 = vst.msk [vmem:[#allocation3 + $0x80] sm:$0xff] %vm2410, 0.0
      %2429 = vst.msk [vmem:[#allocation3 + $0x88] sm:$0x3] %vm2413, 0.0
      %2430 = vst.msk [vmem:[#allocation3 + $0x90] sm:$0xff] %vm2410, 0.0
      %2431 = vst.msk [vmem:[#allocation3 + $0x98] sm:$0xff] %vm2410, 0.0
      %2432 = vst.msk [vmem:[#allocation3 + $0xa0] sm:$0x3] %vm2413, 0.0
      %2433 = vst.msk [vmem:[#allocation3 + $0xa8] sm:$0xff] %vm2410, 0.0
      %2434 = vst.msk [vmem:[#allocation3 + $0xb0] sm:$0xff] %vm2410, 0.0
      %2435 = vst.msk [vmem:[#allocation3 + $0xb8] sm:$0x3] %vm2413, 0.0
      %2436 = vst.msk [vmem:[#allocation3 + $0xc0] sm:$0xff] %vm2410, 0.0
      %2437 = vst.msk [vmem:[#allocation3 + $0xc8] sm:$0xff] %vm2410, 0.0
      %2438 = vst.msk [vmem:[#allocation3 + $0xd0] sm:$0x3] %vm2413, 0.0
      %2439 = vst.msk [vmem:[#allocation3 + $0xd8] sm:$0xff] %vm2410, 0.0
      %2440 = vst.msk [vmem:[#allocation3 + $0xe0] sm:$0xff] %vm2410, 0.0
      %2441 = vst.msk [vmem:[#allocation3 + $0xe8] sm:$0x3] %vm2413, 0.0
      %2442 = vst.msk [vmem:[#allocation3 + $0xf0] sm:$0xff] %vm2410, 0.0
      %2443 = vst.msk [vmem:[#allocation3 + $0xf8] sm:$0xff] %vm2410, 0.0
      %2444 = vst.msk [vmem:[#allocation3 + $0x100] sm:$0x3] %vm2413, 0.0
      %2445 = vst.msk [vmem:[#allocation3 + $0x108] sm:$0xff] %vm2410, 0.0
      %2446 = vst.msk [vmem:[#allocation3 + $0x110] sm:$0xff] %vm2410, 0.0
      %2447 = vst.msk [vmem:[#allocation3 + $0x118] sm:$0x3] %vm2413, 0.0
      %2448 = vst.msk [vmem:[#allocation3 + $0x120] sm:$0xff] %vm2410, 0.0
      %2449 = vst.msk [vmem:[#allocation3 + $0x128] sm:$0xff] %vm2410, 0.0
      %2450 = vst.msk [vmem:[#allocation3 + $0x130] sm:$0x3] %vm2413, 0.0
      %2451 = vst.msk [vmem:[#allocation3 + $0x138] sm:$0xff] %vm2410, 0.0
      %2452 = vst.msk [vmem:[#allocation3 + $0x140] sm:$0xff] %vm2410, 0.0
      %2453 = vst.msk [vmem:[#allocation3 + $0x148] sm:$0x3] %vm2413, 0.0
      %2454 = vst.msk [vmem:[#allocation3 + $0x150] sm:$0xff] %vm2410, 0.0
      %2455 = vst.msk [vmem:[#allocation3 + $0x158] sm:$0xff] %vm2410, 0.0
      %2456 = vst.msk [vmem:[#allocation3 + $0x160] sm:$0x3] %vm2413, 0.0
      %2457 = vst.msk [vmem:[#allocation3 + $0x168] sm:$0xff] %vm2410, 0.0
      %2458 = vst.msk [vmem:[#allocation3 + $0x170] sm:$0xff] %vm2410, 0.0
      %2459 = vst.msk [vmem:[#allocation3 + $0x178] sm:$0x3] %vm2413, 0.0
      %2460 = vst.msk [vmem:[#allocation3 + $0x180] sm:$0xff] %vm2410, 0.0
      %2461 = vst.msk [vmem:[#allocation3 + $0x188] sm:$0xff] %vm2410, 0.0
      %2462 = vst.msk [vmem:[#allocation3 + $0x190] sm:$0x3] %vm2413, 0.0
      %2463 = vst.msk [vmem:[#allocation3 + $0x198] sm:$0xff] %vm2410, 0.0
      %2464 = vst.msk [vmem:[#allocation3 + $0x1a0] sm:$0xff] %vm2410, 0.0
      %2465 = vst.msk [vmem:[#allocation3 + $0x1a8] sm:$0x3] %vm2413, 0.0
      %2498 = vrot.lane.b32.xlu0 %v2378, 120
      %v2499 = vpop.permute.xlu0 %2498
      %2500 = vrot.lane.b32.xlu0 %v2379, 120
      %v2501 = vpop.permute.xlu0 %2500
      %2502 = vrot.lane.b32.xlu0 %v2380, 120
      %v2503 = vpop.permute.xlu0 %2502
      %2504 = vrot.lane.b32.xlu0 %v2381, 120
      %v2505 = vpop.permute.xlu0 %2504
      %2506 = vrot.lane.b32.xlu0 %v2382, 120
      %v2507 = vpop.permute.xlu0 %2506
      %2508 = vrot.lane.b32.xlu0 %v2383, 120
      %v2509 = vpop.permute.xlu0 %2508
      %2510 = vrot.lane.b32.xlu0 %v2384, 120
      %v2511 = vpop.permute.xlu0 %2510
      %2512 = vrot.lane.b32.xlu0 %v2385, 120
      %v2513 = vpop.permute.xlu0 %2512
      %2514 = vrot.lane.b32.xlu0 %v2386, 120
      %v2515 = vpop.permute.xlu0 %2514
      %2516 = vrot.lane.b32.xlu0 %v2387, 120
      %v2517 = vpop.permute.xlu0 %2516
      %2518 = vrot.lane.b32.xlu0 %v2388, 120
      %v2519 = vpop.permute.xlu0 %2518
      %2520 = vrot.lane.b32.xlu0 %v2389, 120
      %v2521 = vpop.permute.xlu0 %2520
      %2522 = vrot.lane.b32.xlu0 %v2390, 120
      %v2523 = vpop.permute.xlu0 %2522
      %2524 = vrot.lane.b32.xlu0 %v2391, 120
      %v2525 = vpop.permute.xlu0 %2524
      %2526 = vrot.lane.b32.xlu0 %v2392, 120
      %v2527 = vpop.permute.xlu0 %2526
      %2528 = vrot.lane.b32.xlu0 %v2393, 120
      %v2529 = vpop.permute.xlu0 %2528
      %2530 = vrot.lane.b32.xlu0 %v2394, 120
      %v2531 = vpop.permute.xlu0 %2530
      %2532 = vrot.lane.b32.xlu0 %v2395, 120
      %v2533 = vpop.permute.xlu0 %2532
      %2534 = vrot.lane.b32.xlu0 %v2396, 120
      %v2535 = vpop.permute.xlu0 %2534
      %2536 = vrot.lane.b32.xlu0 %v2397, 120
      %v2537 = vpop.permute.xlu0 %2536
      %2538 = vrot.lane.b32.xlu0 %v2398, 120
      %v2539 = vpop.permute.xlu0 %2538
      %2540 = vrot.lane.b32.xlu0 %v2399, 120
      %v2541 = vpop.permute.xlu0 %2540
      %2542 = vrot.lane.b32.xlu0 %v2400, 120
      %v2543 = vpop.permute.xlu0 %2542
      %2544 = vrot.lane.b32.xlu0 %v2401, 120
      %v2545 = vpop.permute.xlu0 %2544
      %2546 = vrot.lane.b32.xlu0 %v2402, 120
      %v2547 = vpop.permute.xlu0 %2546
      %2548 = vrot.lane.b32.xlu0 %v2403, 120
      %v2549 = vpop.permute.xlu0 %2548
      %2550 = vrot.lane.b32.xlu0 %v2404, 120
      %v2551 = vpop.permute.xlu0 %2550
      %2552 = vrot.lane.b32.xlu0 %v2405, 120
      %v2553 = vpop.permute.xlu0 %2552
      %2554 = vrot.lane.b32.xlu0 %v2406, 120
      %v2555 = vpop.permute.xlu0 %2554
      %2556 = vrot.lane.b32.xlu0 %v2407, 120
      %v2557 = vpop.permute.xlu0 %2556
      %2558 = vrot.lane.b32.xlu0 %v2408, 120
      %v2559 = vpop.permute.xlu0 %2558
      %2560 = vrot.lane.b32.xlu0 %v2409, 120
      %v2561 = vpop.permute.xlu0 %2560
      %s2594 = scalar_lea.vmem [#allocation3], 24
      %2595 = vst.msk [vmem:[%s2594 + $0x1] sm:$0xff] %vm2410, %v2499
      %2596 = vst.msk [vmem:[%s2594 + $0x9] sm:$0xff] %vm2410, %v2501
      %2597 = vst.msk [vmem:[%s2594 + $0x19] sm:$0xff] %vm2410, %v2503
      %2598 = vst.msk [vmem:[%s2594 + $0x21] sm:$0xff] %vm2410, %v2505
      %2599 = vst.msk [vmem:[%s2594 + $0x31] sm:$0xff] %vm2410, %v2507
      %2600 = vst.msk [vmem:[%s2594 + $0x39] sm:$0xff] %vm2410, %v2509
      %2601 = vst.msk [vmem:[%s2594 + $0x49] sm:$0xff] %vm2410, %v2511
      %2602 = vst.msk [vmem:[%s2594 + $0x51] sm:$0xff] %vm2410, %v2513
      %2603 = vst.msk [vmem:[%s2594 + $0x61] sm:$0xff] %vm2410, %v2515
      %2604 = vst.msk [vmem:[%s2594 + $0x69] sm:$0xff] %vm2410, %v2517
      %2605 = vst.msk [vmem:[%s2594 + $0x79] sm:$0xff] %vm2410, %v2519
      %2606 = vst.msk [vmem:[%s2594 + $0x81] sm:$0xff] %vm2410, %v2521
      %2607 = vst.msk [vmem:[%s2594 + $0x91] sm:$0xff] %vm2410, %v2523
      %2608 = vst.msk [vmem:[%s2594 + $0x99] sm:$0xff] %vm2410, %v2525
      %2609 = vst.msk [vmem:[%s2594 + $0xa9] sm:$0xff] %vm2410, %v2527
      %2610 = vst.msk [vmem:[%s2594 + $0xb1] sm:$0xff] %vm2410, %v2529
      %2611 = vst.msk [vmem:[%s2594 + $0xc1] sm:$0xff] %vm2410, %v2531
      %2612 = vst.msk [vmem:[%s2594 + $0xc9] sm:$0xff] %vm2410, %v2533
      %2613 = vst.msk [vmem:[%s2594 + $0xd9] sm:$0xff] %vm2410, %v2535
      %2614 = vst.msk [vmem:[%s2594 + $0xe1] sm:$0xff] %vm2410, %v2537
      %2615 = vst.msk [vmem:[%s2594 + $0xf1] sm:$0xff] %vm2410, %v2539
      %2616 = vst.msk [vmem:[%s2594 + $0xf9] sm:$0xff] %vm2410, %v2541
      %2617 = vst.msk [vmem:[%s2594 + $0x109] sm:$0xff] %vm2410, %v2543
      %2618 = vst.msk [vmem:[%s2594 + $0x111] sm:$0xff] %vm2410, %v2545
      %2619 = vst.msk [vmem:[%s2594 + $0x121] sm:$0xff] %vm2410, %v2547
      %2620 = vst.msk [vmem:[%s2594 + $0x129] sm:$0xff] %vm2410, %v2549
      %2621 = vst.msk [vmem:[%s2594 + $0x139] sm:$0xff] %vm2410, %v2551
      %2622 = vst.msk [vmem:[%s2594 + $0x141] sm:$0xff] %vm2410, %v2553
      %2623 = vst.msk [vmem:[%s2594 + $0x151] sm:$0xff] %vm2410, %v2555
      %2624 = vst.msk [vmem:[%s2594 + $0x159] sm:$0xff] %vm2410, %v2557
      %2625 = vst.msk [vmem:[%s2594 + $0x169] sm:$0xff] %vm2410, %v2559
      %2626 = vst.msk [vmem:[%s2594 + $0x171] sm:$0xff] %vm2410, %v2561
      %v2627 = vld [vmem:[#allocation3] sm:$0xff]
      %v2628 = vld [vmem:[#allocation3 + $0x8] sm:$0xff]
      %v2629 = vld [vmem:[#allocation3 + $0x18] sm:$0xff]
      %v2630 = vld [vmem:[#allocation3 + $0x20] sm:$0xff]
      %v2631 = vld [vmem:[#allocation3 + $0x30] sm:$0xff]
      %v2632 = vld [vmem:[#allocation3 + $0x38] sm:$0xff]
      %v2633 = vld [vmem:[#allocation3 + $0x48] sm:$0xff]
      %v2634 = vld [vmem:[#allocation3 + $0x50] sm:$0xff]
      %v2635 = vld [vmem:[#allocation3 + $0x60] sm:$0xff]
      %v2636 = vld [vmem:[#allocation3 + $0x68] sm:$0xff]
      %v2637 = vld [vmem:[#allocation3 + $0x78] sm:$0xff]
      %v2638 = vld [vmem:[#allocation3 + $0x80] sm:$0xff]
      %v2639 = vld [vmem:[#allocation3 + $0x90] sm:$0xff]
      %v2640 = vld [vmem:[#allocation3 + $0x98] sm:$0xff]
      %v2641 = vld [vmem:[#allocation3 + $0xa8] sm:$0xff]
      %v2642 = vld [vmem:[#allocation3 + $0xb0] sm:$0xff]
      %v2643 = vld [vmem:[#allocation3 + $0xc0] sm:$0xff]
      %v2644 = vld [vmem:[#allocation3 + $0xc8] sm:$0xff]
      %v2645 = vld [vmem:[#allocation3 + $0xd8] sm:$0xff]
      %v2646 = vld [vmem:[#allocation3 + $0xe0] sm:$0xff]
      %v2647 = vld [vmem:[#allocation3 + $0xf0] sm:$0xff]
      %v2648 = vld [vmem:[#allocation3 + $0xf8] sm:$0xff]
      %v2649 = vld [vmem:[#allocation3 + $0x108] sm:$0xff]
      %v2650 = vld [vmem:[#allocation3 + $0x110] sm:$0xff]
      %v2651 = vld [vmem:[#allocation3 + $0x120] sm:$0xff]
      %v2652 = vld [vmem:[#allocation3 + $0x128] sm:$0xff]
      %v2653 = vld [vmem:[#allocation3 + $0x138] sm:$0xff]
      %v2654 = vld [vmem:[#allocation3 + $0x140] sm:$0xff]
      %v2655 = vld [vmem:[#allocation3 + $0x150] sm:$0xff]
      %v2656 = vld [vmem:[#allocation3 + $0x158] sm:$0xff]
      %v2657 = vld [vmem:[#allocation3 + $0x168] sm:$0xff]
      %v2658 = vld [vmem:[#allocation3 + $0x170] sm:$0xff]
      %v2659 = vld [vmem:[#allocation3 + $0x1] sm:$0xff]
      %v2660 = vld [vmem:[#allocation3 + $0x9] sm:$0xff]
      %v2661 = vld [vmem:[#allocation3 + $0x19] sm:$0xff]
      %v2662 = vld [vmem:[#allocation3 + $0x21] sm:$0xff]
      %v2663 = vld [vmem:[#allocation3 + $0x31] sm:$0xff]
      %v2664 = vld [vmem:[#allocation3 + $0x39] sm:$0xff]
      %v2665 = vld [vmem:[#allocation3 + $0x49] sm:$0xff]
      %v2666 = vld [vmem:[#allocation3 + $0x51] sm:$0xff]
      %v2667 = vld [vmem:[#allocation3 + $0x61] sm:$0xff]
      %v2668 = vld [vmem:[#allocation3 + $0x69] sm:$0xff]
      %v2669 = vld [vmem:[#allocation3 + $0x79] sm:$0xff]
      %v2670 = vld [vmem:[#allocation3 + $0x81] sm:$0xff]
      %v2671 = vld [vmem:[#allocation3 + $0x91] sm:$0xff]
      %v2672 = vld [vmem:[#allocation3 + $0x99] sm:$0xff]
      %v2673 = vld [vmem:[#allocation3 + $0xa9] sm:$0xff]
      %v2674 = vld [vmem:[#allocation3 + $0xb1] sm:$0xff]
      %v2675 = vld [vmem:[#allocation3 + $0xc1] sm:$0xff]
      %v2676 = vld [vmem:[#allocation3 + $0xc9] sm:$0xff]
      %v2677 = vld [vmem:[#allocation3 + $0xd9] sm:$0xff]
      %v2678 = vld [vmem:[#allocation3 + $0xe1] sm:$0xff]
      %v2679 = vld [vmem:[#allocation3 + $0xf1] sm:$0xff]
      %v2680 = vld [vmem:[#allocation3 + $0xf9] sm:$0xff]
      %v2681 = vld [vmem:[#allocation3 + $0x109] sm:$0xff]
      %v2682 = vld [vmem:[#allocation3 + $0x111] sm:$0xff]
      %v2683 = vld [vmem:[#allocation3 + $0x121] sm:$0xff]
      %v2684 = vld [vmem:[#allocation3 + $0x129] sm:$0xff]
      %v2685 = vld [vmem:[#allocation3 + $0x139] sm:$0xff]
      %v2686 = vld [vmem:[#allocation3 + $0x141] sm:$0xff]
      %v2687 = vld [vmem:[#allocation3 + $0x151] sm:$0xff]
      %v2688 = vld [vmem:[#allocation3 + $0x159] sm:$0xff]
      %v2689 = vld [vmem:[#allocation3 + $0x169] sm:$0xff]
      %v2690 = vld [vmem:[#allocation3 + $0x171] sm:$0xff]
      %v2691 = vld [vmem:[#allocation3 + $0x2] sm:$0xff]
      %v2692 = vld [vmem:[#allocation3 + $0xa] sm:$0xff]
      %v2693 = vld [vmem:[#allocation3 + $0x1a] sm:$0xff]
      %v2694 = vld [vmem:[#allocation3 + $0x22] sm:$0xff]
      %v2695 = vld [vmem:[#allocation3 + $0x32] sm:$0xff]
      %v2696 = vld [vmem:[#allocation3 + $0x3a] sm:$0xff]
      %v2697 = vld [vmem:[#allocation3 + $0x4a] sm:$0xff]
      %v2698 = vld [vmem:[#allocation3 + $0x52] sm:$0xff]
      %v2699 = vld [vmem:[#allocation3 + $0x62] sm:$0xff]
      %v2700 = vld [vmem:[#allocation3 + $0x6a] sm:$0xff]
      %v2701 = vld [vmem:[#allocation3 + $0x7a] sm:$0xff]
      %v2702 = vld [vmem:[#allocation3 + $0x82] sm:$0xff]
      %v2703 = vld [vmem:[#allocation3 + $0x92] sm:$0xff]
      %v2704 = vld [vmem:[#allocation3 + $0x9a] sm:$0xff]
      %v2705 = vld [vmem:[#allocation3 + $0xaa] sm:$0xff]
      %v2706 = vld [vmem:[#allocation3 + $0xb2] sm:$0xff]
      %v2707 = vld [vmem:[#allocation3 + $0xc2] sm:$0xff]
      %v2708 = vld [vmem:[#allocation3 + $0xca] sm:$0xff]
      %v2709 = vld [vmem:[#allocation3 + $0xda] sm:$0xff]
      %v2710 = vld [vmem:[#allocation3 + $0xe2] sm:$0xff]
      %v2711 = vld [vmem:[#allocation3 + $0xf2] sm:$0xff]
      %v2712 = vld [vmem:[#allocation3 + $0xfa] sm:$0xff]
      %v2713 = vld [vmem:[#allocation3 + $0x10a] sm:$0xff]
      %v2714 = vld [vmem:[#allocation3 + $0x112] sm:$0xff]
      %v2715 = vld [vmem:[#allocation3 + $0x122] sm:$0xff]
      %v2716 = vld [vmem:[#allocation3 + $0x12a] sm:$0xff]
      %v2717 = vld [vmem:[#allocation3 + $0x13a] sm:$0xff]
      %v2718 = vld [vmem:[#allocation3 + $0x142] sm:$0xff]
      %v2719 = vld [vmem:[#allocation3 + $0x152] sm:$0xff]
      %v2720 = vld [vmem:[#allocation3 + $0x15a] sm:$0xff]
      %v2721 = vld [vmem:[#allocation3 + $0x16a] sm:$0xff]
      %v2722 = vld [vmem:[#allocation3 + $0x172] sm:$0xff]
      %v2723 = vld [vmem:[%s2594] sm:$0xff]
      %v2724 = vld [vmem:[%s2594 + $0x8] sm:$0xff]
      %v2725 = vld [vmem:[%s2594 + $0x18] sm:$0xff]
      %v2726 = vld [vmem:[%s2594 + $0x20] sm:$0xff]
      %v2727 = vld [vmem:[%s2594 + $0x30] sm:$0xff]
      %v2728 = vld [vmem:[%s2594 + $0x38] sm:$0xff]
      %v2729 = vld [vmem:[%s2594 + $0x48] sm:$0xff]
      %v2730 = vld [vmem:[%s2594 + $0x50] sm:$0xff]
      %v2731 = vld [vmem:[%s2594 + $0x60] sm:$0xff]
      %v2732 = vld [vmem:[%s2594 + $0x68] sm:$0xff]
      %v2733 = vld [vmem:[%s2594 + $0x78] sm:$0xff]
      %v2734 = vld [vmem:[%s2594 + $0x80] sm:$0xff]
      %v2735 = vld [vmem:[%s2594 + $0x90] sm:$0xff]
      %v2736 = vld [vmem:[%s2594 + $0x98] sm:$0xff]
      %v2737 = vld [vmem:[%s2594 + $0xa8] sm:$0xff]
      %v2738 = vld [vmem:[%s2594 + $0xb0] sm:$0xff]
      %v2739 = vld [vmem:[%s2594 + $0xc0] sm:$0xff]
      %v2740 = vld [vmem:[%s2594 + $0xc8] sm:$0xff]
      %v2741 = vld [vmem:[%s2594 + $0xd8] sm:$0xff]
      %v2742 = vld [vmem:[%s2594 + $0xe0] sm:$0xff]
      %v2743 = vld [vmem:[%s2594 + $0xf0] sm:$0xff]
      %v2744 = vld [vmem:[%s2594 + $0xf8] sm:$0xff]
      %v2745 = vld [vmem:[%s2594 + $0x108] sm:$0xff]
      %v2746 = vld [vmem:[%s2594 + $0x110] sm:$0xff]
      %v2747 = vld [vmem:[%s2594 + $0x120] sm:$0xff]
      %v2748 = vld [vmem:[%s2594 + $0x128] sm:$0xff]
      %v2749 = vld [vmem:[%s2594 + $0x138] sm:$0xff]
      %v2750 = vld [vmem:[%s2594 + $0x140] sm:$0xff]
      %v2751 = vld [vmem:[%s2594 + $0x150] sm:$0xff]
      %v2752 = vld [vmem:[%s2594 + $0x158] sm:$0xff]
      %v2753 = vld [vmem:[%s2594 + $0x168] sm:$0xff]
      %v2754 = vld [vmem:[%s2594 + $0x170] sm:$0xff]
      %v2755 = vld [vmem:[%s2594 + $0x1] sm:$0xff]
      %v2756 = vld [vmem:[%s2594 + $0x9] sm:$0xff]
      %v2757 = vld [vmem:[%s2594 + $0x19] sm:$0xff]
      %v2758 = vld [vmem:[%s2594 + $0x21] sm:$0xff]
      %v2759 = vld [vmem:[%s2594 + $0x31] sm:$0xff]
      %v2760 = vld [vmem:[%s2594 + $0x39] sm:$0xff]
      %v2761 = vld [vmem:[%s2594 + $0x49] sm:$0xff]
      %v2762 = vld [vmem:[%s2594 + $0x51] sm:$0xff]
      %v2763 = vld [vmem:[%s2594 + $0x61] sm:$0xff]
      %v2764 = vld [vmem:[%s2594 + $0x69] sm:$0xff]
      %v2765 = vld [vmem:[%s2594 + $0x79] sm:$0xff]
      %v2766 = vld [vmem:[%s2594 + $0x81] sm:$0xff]
      %v2767 = vld [vmem:[%s2594 + $0x91] sm:$0xff]
      %v2768 = vld [vmem:[%s2594 + $0x99] sm:$0xff]
      %v2769 = vld [vmem:[%s2594 + $0xa9] sm:$0xff]
      %v2770 = vld [vmem:[%s2594 + $0xb1] sm:$0xff]
      %v2771 = vld [vmem:[%s2594 + $0xc1] sm:$0xff]
      %v2772 = vld [vmem:[%s2594 + $0xc9] sm:$0xff]
      %v2773 = vld [vmem:[%s2594 + $0xd9] sm:$0xff]
      %v2774 = vld [vmem:[%s2594 + $0xe1] sm:$0xff]
      %v2775 = vld [vmem:[%s2594 + $0xf1] sm:$0xff]
      %v2776 = vld [vmem:[%s2594 + $0xf9] sm:$0xff]
      %v2777 = vld [vmem:[%s2594 + $0x109] sm:$0xff]
      %v2778 = vld [vmem:[%s2594 + $0x111] sm:$0xff]
      %v2779 = vld [vmem:[%s2594 + $0x121] sm:$0xff]
      %v2780 = vld [vmem:[%s2594 + $0x129] sm:$0xff]
      %v2781 = vld [vmem:[%s2594 + $0x139] sm:$0xff]
      %v2782 = vld [vmem:[%s2594 + $0x141] sm:$0xff]
      %v2783 = vld [vmem:[%s2594 + $0x151] sm:$0xff]
      %v2784 = vld [vmem:[%s2594 + $0x159] sm:$0xff]
      %v2785 = vld [vmem:[%s2594 + $0x169] sm:$0xff]
      %v2786 = vld [vmem:[%s2594 + $0x171] sm:$0xff]
      %v2787 = vld [vmem:[%s2594 + $0x2] sm:$0xff]
      %v2788 = vld [vmem:[%s2594 + $0xa] sm:$0xff]
      %v2789 = vld [vmem:[%s2594 + $0x1a] sm:$0xff]
      %v2790 = vld [vmem:[%s2594 + $0x22] sm:$0xff]
      %v2791 = vld [vmem:[%s2594 + $0x32] sm:$0xff]
      %v2792 = vld [vmem:[%s2594 + $0x3a] sm:$0xff]
      %v2793 = vld [vmem:[%s2594 + $0x4a] sm:$0xff]
      %v2794 = vld [vmem:[%s2594 + $0x52] sm:$0xff]
      %v2795 = vld [vmem:[%s2594 + $0x62] sm:$0xff]
      %v2796 = vld [vmem:[%s2594 + $0x6a] sm:$0xff]
      %v2797 = vld [vmem:[%s2594 + $0x7a] sm:$0xff]
      %v2798 = vld [vmem:[%s2594 + $0x82] sm:$0xff]
      %v2799 = vld [vmem:[%s2594 + $0x92] sm:$0xff]
      %v2800 = vld [vmem:[%s2594 + $0x9a] sm:$0xff]
      %v2801 = vld [vmem:[%s2594 + $0xaa] sm:$0xff]
      %v2802 = vld [vmem:[%s2594 + $0xb2] sm:$0xff]
      %v2803 = vld [vmem:[%s2594 + $0xc2] sm:$0xff]
      %v2804 = vld [vmem:[%s2594 + $0xca] sm:$0xff]
      %v2805 = vld [vmem:[%s2594 + $0xda] sm:$0xff]
      %v2806 = vld [vmem:[%s2594 + $0xe2] sm:$0xff]
      %v2807 = vld [vmem:[%s2594 + $0xf2] sm:$0xff]
      %v2808 = vld [vmem:[%s2594 + $0xfa] sm:$0xff]
      %v2809 = vld [vmem:[%s2594 + $0x10a] sm:$0xff]
      %v2810 = vld [vmem:[%s2594 + $0x112] sm:$0xff]
      %v2811 = vld [vmem:[%s2594 + $0x122] sm:$0xff]
      %v2812 = vld [vmem:[%s2594 + $0x12a] sm:$0xff]
      %v2813 = vld [vmem:[%s2594 + $0x13a] sm:$0xff]
      %v2814 = vld [vmem:[%s2594 + $0x142] sm:$0xff]
      %v2815 = vld [vmem:[%s2594 + $0x152] sm:$0xff]
      %v2816 = vld [vmem:[%s2594 + $0x15a] sm:$0xff]
      %v2817 = vld [vmem:[%s2594 + $0x16a] sm:$0xff]
      %v2818 = vld [vmem:[%s2594 + $0x172] sm:$0xff]
      %s2819 = scalar_lea.vmem [#allocation3], 48
      %v2820 = vld [vmem:[%s2819] sm:$0xff]
      %v2821 = vld [vmem:[%s2819 + $0x8] sm:$0xff]
      %v2822 = vld [vmem:[%s2819 + $0x18] sm:$0xff]
      %v2823 = vld [vmem:[%s2819 + $0x20] sm:$0xff]
      %v2824 = vld [vmem:[%s2819 + $0x30] sm:$0xff]
      %v2825 = vld [vmem:[%s2819 + $0x38] sm:$0xff]
      %v2826 = vld [vmem:[%s2819 + $0x48] sm:$0xff]
      %v2827 = vld [vmem:[%s2819 + $0x50] sm:$0xff]
      %v2828 = vld [vmem:[%s2819 + $0x60] sm:$0xff]
      %v2829 = vld [vmem:[%s2819 + $0x68] sm:$0xff]
      %v2830 = vld [vmem:[%s2819 + $0x78] sm:$0xff]
      %v2831 = vld [vmem:[%s2819 + $0x80] sm:$0xff]
      %v2832 = vld [vmem:[%s2819 + $0x90] sm:$0xff]
      %v2833 = vld [vmem:[%s2819 + $0x98] sm:$0xff]
      %v2834 = vld [vmem:[%s2819 + $0xa8] sm:$0xff]
      %v2835 = vld [vmem:[%s2819 + $0xb0] sm:$0xff]
      %v2836 = vld [vmem:[%s2819 + $0xc0] sm:$0xff]
      %v2837 = vld [vmem:[%s2819 + $0xc8] sm:$0xff]
      %v2838 = vld [vmem:[%s2819 + $0xd8] sm:$0xff]
      %v2839 = vld [vmem:[%s2819 + $0xe0] sm:$0xff]
      %v2840 = vld [vmem:[%s2819 + $0xf0] sm:$0xff]
      %v2841 = vld [vmem:[%s2819 + $0xf8] sm:$0xff]
      %v2842 = vld [vmem:[%s2819 + $0x108] sm:$0xff]
      %v2843 = vld [vmem:[%s2819 + $0x110] sm:$0xff]
      %v2844 = vld [vmem:[%s2819 + $0x120] sm:$0xff]
      %v2845 = vld [vmem:[%s2819 + $0x128] sm:$0xff]
      %v2846 = vld [vmem:[%s2819 + $0x138] sm:$0xff]
      %v2847 = vld [vmem:[%s2819 + $0x140] sm:$0xff]
      %v2848 = vld [vmem:[%s2819 + $0x150] sm:$0xff]
      %v2849 = vld [vmem:[%s2819 + $0x158] sm:$0xff]
      %v2850 = vld [vmem:[%s2819 + $0x168] sm:$0xff]
      %v2851 = vld [vmem:[%s2819 + $0x170] sm:$0xff]
      %v2852 = vld [vmem:[%s2819 + $0x1] sm:$0xff]
      %v2853 = vld [vmem:[%s2819 + $0x9] sm:$0xff]
      %v2854 = vld [vmem:[%s2819 + $0x19] sm:$0xff]
      %v2855 = vld [vmem:[%s2819 + $0x21] sm:$0xff]
      %v2856 = vld [vmem:[%s2819 + $0x31] sm:$0xff]
      %v2857 = vld [vmem:[%s2819 + $0x39] sm:$0xff]
      %v2858 = vld [vmem:[%s2819 + $0x49] sm:$0xff]
      %v2859 = vld [vmem:[%s2819 + $0x51] sm:$0xff]
      %v2860 = vld [vmem:[%s2819 + $0x61] sm:$0xff]
      %v2861 = vld [vmem:[%s2819 + $0x69] sm:$0xff]
      %v2862 = vld [vmem:[%s2819 + $0x79] sm:$0xff]
      %v2863 = vld [vmem:[%s2819 + $0x81] sm:$0xff]
      %v2864 = vld [vmem:[%s2819 + $0x91] sm:$0xff]
      %v2865 = vld [vmem:[%s2819 + $0x99] sm:$0xff]
      %v2866 = vld [vmem:[%s2819 + $0xa9] sm:$0xff]
      %v2867 = vld [vmem:[%s2819 + $0xb1] sm:$0xff]
      %v2868 = vld [vmem:[%s2819 + $0xc1] sm:$0xff]
      %v2869 = vld [vmem:[%s2819 + $0xc9] sm:$0xff]
      %v2870 = vld [vmem:[%s2819 + $0xd9] sm:$0xff]
      %v2871 = vld [vmem:[%s2819 + $0xe1] sm:$0xff]
      %v2872 = vld [vmem:[%s2819 + $0xf1] sm:$0xff]
      %v2873 = vld [vmem:[%s2819 + $0xf9] sm:$0xff]
      %v2874 = vld [vmem:[%s2819 + $0x109] sm:$0xff]
      %v2875 = vld [vmem:[%s2819 + $0x111] sm:$0xff]
      %v2876 = vld [vmem:[%s2819 + $0x121] sm:$0xff]
      %v2877 = vld [vmem:[%s2819 + $0x129] sm:$0xff]
      %v2878 = vld [vmem:[%s2819 + $0x139] sm:$0xff]
      %v2879 = vld [vmem:[%s2819 + $0x141] sm:$0xff]
      %v2880 = vld [vmem:[%s2819 + $0x151] sm:$0xff]
      %v2881 = vld [vmem:[%s2819 + $0x159] sm:$0xff]
      %v2882 = vld [vmem:[%s2819 + $0x169] sm:$0xff]
      %v2883 = vld [vmem:[%s2819 + $0x171] sm:$0xff]
      %v2884 = vld [vmem:[%s2819 + $0x2] sm:$0xff]
      %v2885 = vld [vmem:[%s2819 + $0xa] sm:$0xff]
      %v2886 = vld [vmem:[%s2819 + $0x1a] sm:$0xff]
      %v2887 = vld [vmem:[%s2819 + $0x22] sm:$0xff]
      %v2888 = vld [vmem:[%s2819 + $0x32] sm:$0xff]
      %v2889 = vld [vmem:[%s2819 + $0x3a] sm:$0xff]
      %v2890 = vld [vmem:[%s2819 + $0x4a] sm:$0xff]
      %v2891 = vld [vmem:[%s2819 + $0x52] sm:$0xff]
      %v2892 = vld [vmem:[%s2819 + $0x62] sm:$0xff]
      %v2893 = vld [vmem:[%s2819 + $0x6a] sm:$0xff]
      %v2894 = vld [vmem:[%s2819 + $0x7a] sm:$0xff]
      %v2895 = vld [vmem:[%s2819 + $0x82] sm:$0xff]
      %v2896 = vld [vmem:[%s2819 + $0x92] sm:$0xff]
      %v2897 = vld [vmem:[%s2819 + $0x9a] sm:$0xff]
      %v2898 = vld [vmem:[%s2819 + $0xaa] sm:$0xff]
      %v2899 = vld [vmem:[%s2819 + $0xb2] sm:$0xff]
      %v2900 = vld [vmem:[%s2819 + $0xc2] sm:$0xff]
      %v2901 = vld [vmem:[%s2819 + $0xca] sm:$0xff]
      %v2902 = vld [vmem:[%s2819 + $0xda] sm:$0xff]
      %v2903 = vld [vmem:[%s2819 + $0xe2] sm:$0xff]
      %v2904 = vld [vmem:[%s2819 + $0xf2] sm:$0xff]
      %v2905 = vld [vmem:[%s2819 + $0xfa] sm:$0xff]
      %v2906 = vld [vmem:[%s2819 + $0x10a] sm:$0xff]
      %v2907 = vld [vmem:[%s2819 + $0x112] sm:$0xff]
      %v2908 = vld [vmem:[%s2819 + $0x122] sm:$0xff]
      %v2909 = vld [vmem:[%s2819 + $0x12a] sm:$0xff]
      %v2910 = vld [vmem:[%s2819 + $0x13a] sm:$0xff]
      %v2911 = vld [vmem:[%s2819 + $0x142] sm:$0xff]
      %v2912 = vld [vmem:[%s2819 + $0x152] sm:$0xff]
      %v2913 = vld [vmem:[%s2819 + $0x15a] sm:$0xff]
      %v2914 = vld [vmem:[%s2819 + $0x16a] sm:$0xff]
      %v2915 = vld [vmem:[%s2819 + $0x172] sm:$0xff]
      %2948 = vrot.lane.b32.xlu0 %v2659, 4
      %v2949 = vpop.permute.xlu0 %2948
      %2950 = vrot.lane.b32.xlu0 %v2660, 4
      %v2951 = vpop.permute.xlu0 %2950
      %2952 = vrot.lane.b32.xlu0 %v2661, 4
      %v2953 = vpop.permute.xlu0 %2952
      %2954 = vrot.lane.b32.xlu0 %v2662, 4
      %v2955 = vpop.permute.xlu0 %2954
      %2956 = vrot.lane.b32.xlu0 %v2663, 4
      %v2957 = vpop.permute.xlu0 %2956
      %2958 = vrot.lane.b32.xlu0 %v2664, 4
      %v2959 = vpop.permute.xlu0 %2958
      %2960 = vrot.lane.b32.xlu0 %v2665, 4
      %v2961 = vpop.permute.xlu0 %2960
      %2962 = vrot.lane.b32.xlu0 %v2666, 4
      %v2963 = vpop.permute.xlu0 %2962
      %2964 = vrot.lane.b32.xlu0 %v2667, 4
      %v2965 = vpop.permute.xlu0 %2964
      %2966 = vrot.lane.b32.xlu0 %v2668, 4
      %v2967 = vpop.permute.xlu0 %2966
      %2968 = vrot.lane.b32.xlu0 %v2669, 4
      %v2969 = vpop.permute.xlu0 %2968
      %2970 = vrot.lane.b32.xlu0 %v2670, 4
      %v2971 = vpop.permute.xlu0 %2970
      %2972 = vrot.lane.b32.xlu0 %v2671, 4
      %v2973 = vpop.permute.xlu0 %2972
      %2974 = vrot.lane.b32.xlu0 %v2672, 4
      %v2975 = vpop.permute.xlu0 %2974
      %2976 = vrot.lane.b32.xlu0 %v2673, 4
      %v2977 = vpop.permute.xlu0 %2976
      %2978 = vrot.lane.b32.xlu0 %v2674, 4
      %v2979 = vpop.permute.xlu0 %2978
      %2980 = vrot.lane.b32.xlu0 %v2675, 4
      %v2981 = vpop.permute.xlu0 %2980
      %2982 = vrot.lane.b32.xlu0 %v2676, 4
      %v2983 = vpop.permute.xlu0 %2982
      %2984 = vrot.lane.b32.xlu0 %v2677, 4
      %v2985 = vpop.permute.xlu0 %2984
      %2986 = vrot.lane.b32.xlu0 %v2678, 4
      %v2987 = vpop.permute.xlu0 %2986
      %2988 = vrot.lane.b32.xlu0 %v2679, 4
      %v2989 = vpop.permute.xlu0 %2988
      %2990 = vrot.lane.b32.xlu0 %v2680, 4
      %v2991 = vpop.permute.xlu0 %2990
      %2992 = vrot.lane.b32.xlu0 %v2681, 4
      %v2993 = vpop.permute.xlu0 %2992
      %2994 = vrot.lane.b32.xlu0 %v2682, 4
      %v2995 = vpop.permute.xlu0 %2994
      %2996 = vrot.lane.b32.xlu0 %v2683, 4
      %v2997 = vpop.permute.xlu0 %2996
      %2998 = vrot.lane.b32.xlu0 %v2684, 4
      %v2999 = vpop.permute.xlu0 %2998
      %3000 = vrot.lane.b32.xlu0 %v2685, 4
      %v3001 = vpop.permute.xlu0 %3000
      %3002 = vrot.lane.b32.xlu0 %v2686, 4
      %v3003 = vpop.permute.xlu0 %3002
      %3004 = vrot.lane.b32.xlu0 %v2687, 4
      %v3005 = vpop.permute.xlu0 %3004
      %3006 = vrot.lane.b32.xlu0 %v2688, 4
      %v3007 = vpop.permute.xlu0 %3006
      %3008 = vrot.lane.b32.xlu0 %v2689, 4
      %v3009 = vpop.permute.xlu0 %3008
      %3010 = vrot.lane.b32.xlu0 %v2690, 4
      %v3011 = vpop.permute.xlu0 %3010
      %3076 = vrot.lane.b32.xlu0 %v2691, 8
      %v3077 = vpop.permute.xlu0 %3076
      %3078 = vrot.lane.b32.xlu0 %v2692, 8
      %v3079 = vpop.permute.xlu0 %3078
      %3080 = vrot.lane.b32.xlu0 %v2693, 8
      %v3081 = vpop.permute.xlu0 %3080
      %3082 = vrot.lane.b32.xlu0 %v2694, 8
      %v3083 = vpop.permute.xlu0 %3082
      %3084 = vrot.lane.b32.xlu0 %v2695, 8
      %v3085 = vpop.permute.xlu0 %3084
      %3086 = vrot.lane.b32.xlu0 %v2696, 8
      %v3087 = vpop.permute.xlu0 %3086
      %3088 = vrot.lane.b32.xlu0 %v2697, 8
      %v3089 = vpop.permute.xlu0 %3088
      %3090 = vrot.lane.b32.xlu0 %v2698, 8
      %v3091 = vpop.permute.xlu0 %3090
      %3092 = vrot.lane.b32.xlu0 %v2699, 8
      %v3093 = vpop.permute.xlu0 %3092
      %3094 = vrot.lane.b32.xlu0 %v2700, 8
      %v3095 = vpop.permute.xlu0 %3094
      %3096 = vrot.lane.b32.xlu0 %v2701, 8
      %v3097 = vpop.permute.xlu0 %3096
      %3098 = vrot.lane.b32.xlu0 %v2702, 8
      %v3099 = vpop.permute.xlu0 %3098
      %3100 = vrot.lane.b32.xlu0 %v2703, 8
      %v3101 = vpop.permute.xlu0 %3100
      %3102 = vrot.lane.b32.xlu0 %v2704, 8
      %v3103 = vpop.permute.xlu0 %3102
      %3104 = vrot.lane.b32.xlu0 %v2705, 8
      %v3105 = vpop.permute.xlu0 %3104
      %3106 = vrot.lane.b32.xlu0 %v2706, 8
      %v3107 = vpop.permute.xlu0 %3106
      %3108 = vrot.lane.b32.xlu0 %v2707, 8
      %v3109 = vpop.permute.xlu0 %3108
      %3110 = vrot.lane.b32.xlu0 %v2708, 8
      %v3111 = vpop.permute.xlu0 %3110
      %3112 = vrot.lane.b32.xlu0 %v2709, 8
      %v3113 = vpop.permute.xlu0 %3112
      %3114 = vrot.lane.b32.xlu0 %v2710, 8
      %v3115 = vpop.permute.xlu0 %3114
      %3116 = vrot.lane.b32.xlu0 %v2711, 8
      %v3117 = vpop.permute.xlu0 %3116
      %3118 = vrot.lane.b32.xlu0 %v2712, 8
      %v3119 = vpop.permute.xlu0 %3118
      %3120 = vrot.lane.b32.xlu0 %v2713, 8
      %v3121 = vpop.permute.xlu0 %3120
      %3122 = vrot.lane.b32.xlu0 %v2714, 8
      %v3123 = vpop.permute.xlu0 %3122
      %3124 = vrot.lane.b32.xlu0 %v2715, 8
      %v3125 = vpop.permute.xlu0 %3124
      %3126 = vrot.lane.b32.xlu0 %v2716, 8
      %v3127 = vpop.permute.xlu0 %3126
      %3128 = vrot.lane.b32.xlu0 %v2717, 8
      %v3129 = vpop.permute.xlu0 %3128
      %3130 = vrot.lane.b32.xlu0 %v2718, 8
      %v3131 = vpop.permute.xlu0 %3130
      %3132 = vrot.lane.b32.xlu0 %v2719, 8
      %v3133 = vpop.permute.xlu0 %3132
      %3134 = vrot.lane.b32.xlu0 %v2720, 8
      %v3135 = vpop.permute.xlu0 %3134
      %3136 = vrot.lane.b32.xlu0 %v2721, 8
      %v3137 = vpop.permute.xlu0 %3136
      %3138 = vrot.lane.b32.xlu0 %v2722, 8
      %v3139 = vpop.permute.xlu0 %3138
      %3204 = vrot.lane.b32.xlu0 %v2723, 12
      %v3205 = vpop.permute.xlu0 %3204
      %3206 = vrot.lane.b32.xlu0 %v2724, 12
      %v3207 = vpop.permute.xlu0 %3206
      %3208 = vrot.lane.b32.xlu0 %v2725, 12
      %v3209 = vpop.permute.xlu0 %3208
      %3210 = vrot.lane.b32.xlu0 %v2726, 12
      %v3211 = vpop.permute.xlu0 %3210
      %3212 = vrot.lane.b32.xlu0 %v2727, 12
      %v3213 = vpop.permute.xlu0 %3212
      %3214 = vrot.lane.b32.xlu0 %v2728, 12
      %v3215 = vpop.permute.xlu0 %3214
      %3216 = vrot.lane.b32.xlu0 %v2729, 12
      %v3217 = vpop.permute.xlu0 %3216
      %3218 = vrot.lane.b32.xlu0 %v2730, 12
      %v3219 = vpop.permute.xlu0 %3218
      %3220 = vrot.lane.b32.xlu0 %v2731, 12
      %v3221 = vpop.permute.xlu0 %3220
      %3222 = vrot.lane.b32.xlu0 %v2732, 12
      %v3223 = vpop.permute.xlu0 %3222
      %3224 = vrot.lane.b32.xlu0 %v2733, 12
      %v3225 = vpop.permute.xlu0 %3224
      %3226 = vrot.lane.b32.xlu0 %v2734, 12
      %v3227 = vpop.permute.xlu0 %3226
      %3228 = vrot.lane.b32.xlu0 %v2735, 12
      %v3229 = vpop.permute.xlu0 %3228
      %3230 = vrot.lane.b32.xlu0 %v2736, 12
      %v3231 = vpop.permute.xlu0 %3230
      %3232 = vrot.lane.b32.xlu0 %v2737, 12
      %v3233 = vpop.permute.xlu0 %3232
      %3234 = vrot.lane.b32.xlu0 %v2738, 12
      %v3235 = vpop.permute.xlu0 %3234
      %3236 = vrot.lane.b32.xlu0 %v2739, 12
      %v3237 = vpop.permute.xlu0 %3236
      %3238 = vrot.lane.b32.xlu0 %v2740, 12
      %v3239 = vpop.permute.xlu0 %3238
      %3240 = vrot.lane.b32.xlu0 %v2741, 12
      %v3241 = vpop.permute.xlu0 %3240
      %3242 = vrot.lane.b32.xlu0 %v2742, 12
      %v3243 = vpop.permute.xlu0 %3242
      %3244 = vrot.lane.b32.xlu0 %v2743, 12
      %v3245 = vpop.permute.xlu0 %3244
      %3246 = vrot.lane.b32.xlu0 %v2744, 12
      %v3247 = vpop.permute.xlu0 %3246
      %3248 = vrot.lane.b32.xlu0 %v2745, 12
      %v3249 = vpop.permute.xlu0 %3248
      %3250 = vrot.lane.b32.xlu0 %v2746, 12
      %v3251 = vpop.permute.xlu0 %3250
      %3252 = vrot.lane.b32.xlu0 %v2747, 12
      %v3253 = vpop.permute.xlu0 %3252
      %3254 = vrot.lane.b32.xlu0 %v2748, 12
      %v3255 = vpop.permute.xlu0 %3254
      %3256 = vrot.lane.b32.xlu0 %v2749, 12
      %v3257 = vpop.permute.xlu0 %3256
      %3258 = vrot.lane.b32.xlu0 %v2750, 12
      %v3259 = vpop.permute.xlu0 %3258
      %3260 = vrot.lane.b32.xlu0 %v2751, 12
      %v3261 = vpop.permute.xlu0 %3260
      %3262 = vrot.lane.b32.xlu0 %v2752, 12
      %v3263 = vpop.permute.xlu0 %3262
      %3264 = vrot.lane.b32.xlu0 %v2753, 12
      %v3265 = vpop.permute.xlu0 %3264
      %3266 = vrot.lane.b32.xlu0 %v2754, 12
      %v3267 = vpop.permute.xlu0 %3266
      %3332 = vrot.lane.b32.xlu0 %v2755, 16
      %v3333 = vpop.permute.xlu0 %3332
      %3334 = vrot.lane.b32.xlu0 %v2756, 16
      %v3335 = vpop.permute.xlu0 %3334
      %3336 = vrot.lane.b32.xlu0 %v2757, 16
      %v3337 = vpop.permute.xlu0 %3336
      %3338 = vrot.lane.b32.xlu0 %v2758, 16
      %v3339 = vpop.permute.xlu0 %3338
      %3340 = vrot.lane.b32.xlu0 %v2759, 16
      %v3341 = vpop.permute.xlu0 %3340
      %3342 = vrot.lane.b32.xlu0 %v2760, 16
      %v3343 = vpop.permute.xlu0 %3342
      %3344 = vrot.lane.b32.xlu0 %v2761, 16
      %v3345 = vpop.permute.xlu0 %3344
      %3346 = vrot.lane.b32.xlu0 %v2762, 16
      %v3347 = vpop.permute.xlu0 %3346
      %3348 = vrot.lane.b32.xlu0 %v2763, 16
      %v3349 = vpop.permute.xlu0 %3348
      %3350 = vrot.lane.b32.xlu0 %v2764, 16
      %v3351 = vpop.permute.xlu0 %3350
      %3352 = vrot.lane.b32.xlu0 %v2765, 16
      %v3353 = vpop.permute.xlu0 %3352
      %3354 = vrot.lane.b32.xlu0 %v2766, 16
      %v3355 = vpop.permute.xlu0 %3354
      %3356 = vrot.lane.b32.xlu0 %v2767, 16
      %v3357 = vpop.permute.xlu0 %3356
      %3358 = vrot.lane.b32.xlu0 %v2768, 16
      %v3359 = vpop.permute.xlu0 %3358
      %3360 = vrot.lane.b32.xlu0 %v2769, 16
      %v3361 = vpop.permute.xlu0 %3360
      %3362 = vrot.lane.b32.xlu0 %v2770, 16
      %v3363 = vpop.permute.xlu0 %3362
      %3364 = vrot.lane.b32.xlu0 %v2771, 16
      %v3365 = vpop.permute.xlu0 %3364
      %3366 = vrot.lane.b32.xlu0 %v2772, 16
      %v3367 = vpop.permute.xlu0 %3366
      %3368 = vrot.lane.b32.xlu0 %v2773, 16
      %v3369 = vpop.permute.xlu0 %3368
      %3370 = vrot.lane.b32.xlu0 %v2774, 16
      %v3371 = vpop.permute.xlu0 %3370
      %3372 = vrot.lane.b32.xlu0 %v2775, 16
      %v3373 = vpop.permute.xlu0 %3372
      %3374 = vrot.lane.b32.xlu0 %v2776, 16
      %v3375 = vpop.permute.xlu0 %3374
      %3376 = vrot.lane.b32.xlu0 %v2777, 16
      %v3377 = vpop.permute.xlu0 %3376
      %3378 = vrot.lane.b32.xlu0 %v2778, 16
      %v3379 = vpop.permute.xlu0 %3378
      %3380 = vrot.lane.b32.xlu0 %v2779, 16
      %v3381 = vpop.permute.xlu0 %3380
      %3382 = vrot.lane.b32.xlu0 %v2780, 16
      %v3383 = vpop.permute.xlu0 %3382
      %3384 = vrot.lane.b32.xlu0 %v2781, 16
      %v3385 = vpop.permute.xlu0 %3384
      %3386 = vrot.lane.b32.xlu0 %v2782, 16
      %v3387 = vpop.permute.xlu0 %3386
      %3388 = vrot.lane.b32.xlu0 %v2783, 16
      %v3389 = vpop.permute.xlu0 %3388
      %3390 = vrot.lane.b32.xlu0 %v2784, 16
      %v3391 = vpop.permute.xlu0 %3390
      %3392 = vrot.lane.b32.xlu0 %v2785, 16
      %v3393 = vpop.permute.xlu0 %3392
      %3394 = vrot.lane.b32.xlu0 %v2786, 16
      %v3395 = vpop.permute.xlu0 %3394
      %3460 = vrot.lane.b32.xlu0 %v2787, 20
      %v3461 = vpop.permute.xlu0 %3460
      %3462 = vrot.lane.b32.xlu0 %v2788, 20
      %v3463 = vpop.permute.xlu0 %3462
      %3464 = vrot.lane.b32.xlu0 %v2789, 20
      %v3465 = vpop.permute.xlu0 %3464
      %3466 = vrot.lane.b32.xlu0 %v2790, 20
      %v3467 = vpop.permute.xlu0 %3466
      %3468 = vrot.lane.b32.xlu0 %v2791, 20
      %v3469 = vpop.permute.xlu0 %3468
      %3470 = vrot.lane.b32.xlu0 %v2792, 20
      %v3471 = vpop.permute.xlu0 %3470
      %3472 = vrot.lane.b32.xlu0 %v2793, 20
      %v3473 = vpop.permute.xlu0 %3472
      %3474 = vrot.lane.b32.xlu0 %v2794, 20
      %v3475 = vpop.permute.xlu0 %3474
      %3476 = vrot.lane.b32.xlu0 %v2795, 20
      %v3477 = vpop.permute.xlu0 %3476
      %3478 = vrot.lane.b32.xlu0 %v2796, 20
      %v3479 = vpop.permute.xlu0 %3478
      %3480 = vrot.lane.b32.xlu0 %v2797, 20
      %v3481 = vpop.permute.xlu0 %3480
      %3482 = vrot.lane.b32.xlu0 %v2798, 20
      %v3483 = vpop.permute.xlu0 %3482
      %3484 = vrot.lane.b32.xlu0 %v2799, 20
      %v3485 = vpop.permute.xlu0 %3484
      %3486 = vrot.lane.b32.xlu0 %v2800, 20
      %v3487 = vpop.permute.xlu0 %3486
      %3488 = vrot.lane.b32.xlu0 %v2801, 20
      %v3489 = vpop.permute.xlu0 %3488
      %3490 = vrot.lane.b32.xlu0 %v2802, 20
      %v3491 = vpop.permute.xlu0 %3490
      %3492 = vrot.lane.b32.xlu0 %v2803, 20
      %v3493 = vpop.permute.xlu0 %3492
      %3494 = vrot.lane.b32.xlu0 %v2804, 20
      %v3495 = vpop.permute.xlu0 %3494
      %3496 = vrot.lane.b32.xlu0 %v2805, 20
      %v3497 = vpop.permute.xlu0 %3496
      %3498 = vrot.lane.b32.xlu0 %v2806, 20
      %v3499 = vpop.permute.xlu0 %3498
      %3500 = vrot.lane.b32.xlu0 %v2807, 20
      %v3501 = vpop.permute.xlu0 %3500
      %3502 = vrot.lane.b32.xlu0 %v2808, 20
      %v3503 = vpop.permute.xlu0 %3502
      %3504 = vrot.lane.b32.xlu0 %v2809, 20
      %v3505 = vpop.permute.xlu0 %3504
      %3506 = vrot.lane.b32.xlu0 %v2810, 20
      %v3507 = vpop.permute.xlu0 %3506
      %3508 = vrot.lane.b32.xlu0 %v2811, 20
      %v3509 = vpop.permute.xlu0 %3508
      %3510 = vrot.lane.b32.xlu0 %v2812, 20
      %v3511 = vpop.permute.xlu0 %3510
      %3512 = vrot.lane.b32.xlu0 %v2813, 20
      %v3513 = vpop.permute.xlu0 %3512
      %3514 = vrot.lane.b32.xlu0 %v2814, 20
      %v3515 = vpop.permute.xlu0 %3514
      %3516 = vrot.lane.b32.xlu0 %v2815, 20
      %v3517 = vpop.permute.xlu0 %3516
      %3518 = vrot.lane.b32.xlu0 %v2816, 20
      %v3519 = vpop.permute.xlu0 %3518
      %3520 = vrot.lane.b32.xlu0 %v2817, 20
      %v3521 = vpop.permute.xlu0 %3520
      %3522 = vrot.lane.b32.xlu0 %v2818, 20
      %v3523 = vpop.permute.xlu0 %3522
      %3588 = vrot.lane.b32.xlu0 %v2820, 24
      %v3589 = vpop.permute.xlu0 %3588
      %3590 = vrot.lane.b32.xlu0 %v2821, 24
      %v3591 = vpop.permute.xlu0 %3590
      %3592 = vrot.lane.b32.xlu0 %v2822, 24
      %v3593 = vpop.permute.xlu0 %3592
      %3594 = vrot.lane.b32.xlu0 %v2823, 24
      %v3595 = vpop.permute.xlu0 %3594
      %3596 = vrot.lane.b32.xlu0 %v2824, 24
      %v3597 = vpop.permute.xlu0 %3596
      %3598 = vrot.lane.b32.xlu0 %v2825, 24
      %v3599 = vpop.permute.xlu0 %3598
      %3600 = vrot.lane.b32.xlu0 %v2826, 24
      %v3601 = vpop.permute.xlu0 %3600
      %3602 = vrot.lane.b32.xlu0 %v2827, 24
      %v3603 = vpop.permute.xlu0 %3602
      %3604 = vrot.lane.b32.xlu0 %v2828, 24
      %v3605 = vpop.permute.xlu0 %3604
      %3606 = vrot.lane.b32.xlu0 %v2829, 24
      %v3607 = vpop.permute.xlu0 %3606
      %3608 = vrot.lane.b32.xlu0 %v2830, 24
      %v3609 = vpop.permute.xlu0 %3608
      %3610 = vrot.lane.b32.xlu0 %v2831, 24
      %v3611 = vpop.permute.xlu0 %3610
      %3612 = vrot.lane.b32.xlu0 %v2832, 24
      %v3613 = vpop.permute.xlu0 %3612
      %3614 = vrot.lane.b32.xlu0 %v2833, 24
      %v3615 = vpop.permute.xlu0 %3614
      %3616 = vrot.lane.b32.xlu0 %v2834, 24
      %v3617 = vpop.permute.xlu0 %3616
      %3618 = vrot.lane.b32.xlu0 %v2835, 24
      %v3619 = vpop.permute.xlu0 %3618
      %3620 = vrot.lane.b32.xlu0 %v2836, 24
      %v3621 = vpop.permute.xlu0 %3620
      %3622 = vrot.lane.b32.xlu0 %v2837, 24
      %v3623 = vpop.permute.xlu0 %3622
      %3624 = vrot.lane.b32.xlu0 %v2838, 24
      %v3625 = vpop.permute.xlu0 %3624
      %3626 = vrot.lane.b32.xlu0 %v2839, 24
      %v3627 = vpop.permute.xlu0 %3626
      %3628 = vrot.lane.b32.xlu0 %v2840, 24
      %v3629 = vpop.permute.xlu0 %3628
      %3630 = vrot.lane.b32.xlu0 %v2841, 24
      %v3631 = vpop.permute.xlu0 %3630
      %3632 = vrot.lane.b32.xlu0 %v2842, 24
      %v3633 = vpop.permute.xlu0 %3632
      %3634 = vrot.lane.b32.xlu0 %v2843, 24
      %v3635 = vpop.permute.xlu0 %3634
      %3636 = vrot.lane.b32.xlu0 %v2844, 24
      %v3637 = vpop.permute.xlu0 %3636
      %3638 = vrot.lane.b32.xlu0 %v2845, 24
      %v3639 = vpop.permute.xlu0 %3638
      %3640 = vrot.lane.b32.xlu0 %v2846, 24
      %v3641 = vpop.permute.xlu0 %3640
      %3642 = vrot.lane.b32.xlu0 %v2847, 24
      %v3643 = vpop.permute.xlu0 %3642
      %3644 = vrot.lane.b32.xlu0 %v2848, 24
      %v3645 = vpop.permute.xlu0 %3644
      %3646 = vrot.lane.b32.xlu0 %v2849, 24
      %v3647 = vpop.permute.xlu0 %3646
      %3648 = vrot.lane.b32.xlu0 %v2850, 24
      %v3649 = vpop.permute.xlu0 %3648
      %3650 = vrot.lane.b32.xlu0 %v2851, 24
      %v3651 = vpop.permute.xlu0 %3650
      %3716 = vrot.lane.b32.xlu0 %v2852, 28
      %v3717 = vpop.permute.xlu0 %3716
      %3718 = vrot.lane.b32.xlu0 %v2853, 28
      %v3719 = vpop.permute.xlu0 %3718
      %3720 = vrot.lane.b32.xlu0 %v2854, 28
      %v3721 = vpop.permute.xlu0 %3720
      %3722 = vrot.lane.b32.xlu0 %v2855, 28
      %v3723 = vpop.permute.xlu0 %3722
      %3724 = vrot.lane.b32.xlu0 %v2856, 28
      %v3725 = vpop.permute.xlu0 %3724
      %3726 = vrot.lane.b32.xlu0 %v2857, 28
      %v3727 = vpop.permute.xlu0 %3726
      %3728 = vrot.lane.b32.xlu0 %v2858, 28
      %v3729 = vpop.permute.xlu0 %3728
      %3730 = vrot.lane.b32.xlu0 %v2859, 28
      %v3731 = vpop.permute.xlu0 %3730
      %3732 = vrot.lane.b32.xlu0 %v2860, 28
      %v3733 = vpop.permute.xlu0 %3732
      %3734 = vrot.lane.b32.xlu0 %v2861, 28
      %v3735 = vpop.permute.xlu0 %3734
      %3736 = vrot.lane.b32.xlu0 %v2862, 28
      %v3737 = vpop.permute.xlu0 %3736
      %3738 = vrot.lane.b32.xlu0 %v2863, 28
      %v3739 = vpop.permute.xlu0 %3738
      %3740 = vrot.lane.b32.xlu0 %v2864, 28
      %v3741 = vpop.permute.xlu0 %3740
      %3742 = vrot.lane.b32.xlu0 %v2865, 28
      %v3743 = vpop.permute.xlu0 %3742
      %3744 = vrot.lane.b32.xlu0 %v2866, 28
      %v3745 = vpop.permute.xlu0 %3744
      %3746 = vrot.lane.b32.xlu0 %v2867, 28
      %v3747 = vpop.permute.xlu0 %3746
      %3748 = vrot.lane.b32.xlu0 %v2868, 28
      %v3749 = vpop.permute.xlu0 %3748
      %3750 = vrot.lane.b32.xlu0 %v2869, 28
      %v3751 = vpop.permute.xlu0 %3750
      %3752 = vrot.lane.b32.xlu0 %v2870, 28
      %v3753 = vpop.permute.xlu0 %3752
      %3754 = vrot.lane.b32.xlu0 %v2871, 28
      %v3755 = vpop.permute.xlu0 %3754
      %3756 = vrot.lane.b32.xlu0 %v2872, 28
      %v3757 = vpop.permute.xlu0 %3756
      %3758 = vrot.lane.b32.xlu0 %v2873, 28
      %v3759 = vpop.permute.xlu0 %3758
      %3760 = vrot.lane.b32.xlu0 %v2874, 28
      %v3761 = vpop.permute.xlu0 %3760
      %3762 = vrot.lane.b32.xlu0 %v2875, 28
      %v3763 = vpop.permute.xlu0 %3762
      %3764 = vrot.lane.b32.xlu0 %v2876, 28
      %v3765 = vpop.permute.xlu0 %3764
      %3766 = vrot.lane.b32.xlu0 %v2877, 28
      %v3767 = vpop.permute.xlu0 %3766
      %3768 = vrot.lane.b32.xlu0 %v2878, 28
      %v3769 = vpop.permute.xlu0 %3768
      %3770 = vrot.lane.b32.xlu0 %v2879, 28
      %v3771 = vpop.permute.xlu0 %3770
      %3772 = vrot.lane.b32.xlu0 %v2880, 28
      %v3773 = vpop.permute.xlu0 %3772
      %3774 = vrot.lane.b32.xlu0 %v2881, 28
      %v3775 = vpop.permute.xlu0 %3774
      %3776 = vrot.lane.b32.xlu0 %v2882, 28
      %v3777 = vpop.permute.xlu0 %3776
      %3778 = vrot.lane.b32.xlu0 %v2883, 28
      %v3779 = vpop.permute.xlu0 %3778
      %3844 = vrot.lane.b32.xlu0 %v2884, 32
      %v3845 = vpop.permute.xlu0 %3844
      %3846 = vrot.lane.b32.xlu0 %v2885, 32
      %v3847 = vpop.permute.xlu0 %3846
      %3848 = vrot.lane.b32.xlu0 %v2886, 32
      %v3849 = vpop.permute.xlu0 %3848
      %3850 = vrot.lane.b32.xlu0 %v2887, 32
      %v3851 = vpop.permute.xlu0 %3850
      %3852 = vrot.lane.b32.xlu0 %v2888, 32
      %v3853 = vpop.permute.xlu0 %3852
      %3854 = vrot.lane.b32.xlu0 %v2889, 32
      %v3855 = vpop.permute.xlu0 %3854
      %3856 = vrot.lane.b32.xlu0 %v2890, 32
      %v3857 = vpop.permute.xlu0 %3856
      %3858 = vrot.lane.b32.xlu0 %v2891, 32
      %v3859 = vpop.permute.xlu0 %3858
      %3860 = vrot.lane.b32.xlu0 %v2892, 32
      %v3861 = vpop.permute.xlu0 %3860
      %3862 = vrot.lane.b32.xlu0 %v2893, 32
      %v3863 = vpop.permute.xlu0 %3862
      %3864 = vrot.lane.b32.xlu0 %v2894, 32
      %v3865 = vpop.permute.xlu0 %3864
      %3866 = vrot.lane.b32.xlu0 %v2895, 32
      %v3867 = vpop.permute.xlu0 %3866
      %3868 = vrot.lane.b32.xlu0 %v2896, 32
      %v3869 = vpop.permute.xlu0 %3868
      %3870 = vrot.lane.b32.xlu0 %v2897, 32
      %v3871 = vpop.permute.xlu0 %3870
      %3872 = vrot.lane.b32.xlu0 %v2898, 32
      %v3873 = vpop.permute.xlu0 %3872
      %3874 = vrot.lane.b32.xlu0 %v2899, 32
      %v3875 = vpop.permute.xlu0 %3874
      %3876 = vrot.lane.b32.xlu0 %v2900, 32
      %v3877 = vpop.permute.xlu0 %3876
      %3878 = vrot.lane.b32.xlu0 %v2901, 32
      %v3879 = vpop.permute.xlu0 %3878
      %3880 = vrot.lane.b32.xlu0 %v2902, 32
      %v3881 = vpop.permute.xlu0 %3880
      %3882 = vrot.lane.b32.xlu0 %v2903, 32
      %v3883 = vpop.permute.xlu0 %3882
      %3884 = vrot.lane.b32.xlu0 %v2904, 32
      %v3885 = vpop.permute.xlu0 %3884
      %3886 = vrot.lane.b32.xlu0 %v2905, 32
      %v3887 = vpop.permute.xlu0 %3886
      %3888 = vrot.lane.b32.xlu0 %v2906, 32
      %v3889 = vpop.permute.xlu0 %3888
      %3890 = vrot.lane.b32.xlu0 %v2907, 32
      %v3891 = vpop.permute.xlu0 %3890
      %3892 = vrot.lane.b32.xlu0 %v2908, 32
      %v3893 = vpop.permute.xlu0 %3892
      %3894 = vrot.lane.b32.xlu0 %v2909, 32
      %v3895 = vpop.permute.xlu0 %3894
      %3896 = vrot.lane.b32.xlu0 %v2910, 32
      %v3897 = vpop.permute.xlu0 %3896
      %3898 = vrot.lane.b32.xlu0 %v2911, 32
      %v3899 = vpop.permute.xlu0 %3898
      %3900 = vrot.lane.b32.xlu0 %v2912, 32
      %v3901 = vpop.permute.xlu0 %3900
      %3902 = vrot.lane.b32.xlu0 %v2913, 32
      %v3903 = vpop.permute.xlu0 %3902
      %3904 = vrot.lane.b32.xlu0 %v2914, 32
      %v3905 = vpop.permute.xlu0 %3904
      %3906 = vrot.lane.b32.xlu0 %v2915, 32
      %v3907 = vpop.permute.xlu0 %3906
      %v3940 = vsel %vm2410, %v2627, %v2949
      %v3941 = vsel %vm2410, %v2628, %v2951
      %v3942 = vsel %vm2410, %v2629, %v2953
      %v3943 = vsel %vm2410, %v2630, %v2955
      %v3944 = vsel %vm2410, %v2631, %v2957
      %v3945 = vsel %vm2410, %v2632, %v2959
      %v3946 = vsel %vm2410, %v2633, %v2961
      %v3947 = vsel %vm2410, %v2634, %v2963
      %v3948 = vsel %vm2410, %v2635, %v2965
      %v3949 = vsel %vm2410, %v2636, %v2967
      %v3950 = vsel %vm2410, %v2637, %v2969
      %v3951 = vsel %vm2410, %v2638, %v2971
      %v3952 = vsel %vm2410, %v2639, %v2973
      %v3953 = vsel %vm2410, %v2640, %v2975
      %v3954 = vsel %vm2410, %v2641, %v2977
      %v3955 = vsel %vm2410, %v2642, %v2979
      %v3956 = vsel %vm2410, %v2643, %v2981
      %v3957 = vsel %vm2410, %v2644, %v2983
      %v3958 = vsel %vm2410, %v2645, %v2985
      %v3959 = vsel %vm2410, %v2646, %v2987
      %v3960 = vsel %vm2410, %v2647, %v2989
      %v3961 = vsel %vm2410, %v2648, %v2991
      %v3962 = vsel %vm2410, %v2649, %v2993
      %v3963 = vsel %vm2410, %v2650, %v2995
      %v3964 = vsel %vm2410, %v2651, %v2997
      %v3965 = vsel %vm2410, %v2652, %v2999
      %v3966 = vsel %vm2410, %v2653, %v3001
      %v3967 = vsel %vm2410, %v2654, %v3003
      %v3968 = vsel %vm2410, %v2655, %v3005
      %v3969 = vsel %vm2410, %v2656, %v3007
      %v3970 = vsel %vm2410, %v2657, %v3009
      %v3971 = vsel %vm2410, %v2658, %v3011
      %v3972 = vsel %vm279, %v3940, %v3077
      %v3973 = vsel %vm279, %v3941, %v3079
      %v3974 = vsel %vm279, %v3942, %v3081
      %v3975 = vsel %vm279, %v3943, %v3083
      %v3976 = vsel %vm279, %v3944, %v3085
      %v3977 = vsel %vm279, %v3945, %v3087
      %v3978 = vsel %vm279, %v3946, %v3089
      %v3979 = vsel %vm279, %v3947, %v3091
      %v3980 = vsel %vm279, %v3948, %v3093
      %v3981 = vsel %vm279, %v3949, %v3095
      %v3982 = vsel %vm279, %v3950, %v3097
      %v3983 = vsel %vm279, %v3951, %v3099
      %v3984 = vsel %vm279, %v3952, %v3101
      %v3985 = vsel %vm279, %v3953, %v3103
      %v3986 = vsel %vm279, %v3954, %v3105
      %v3987 = vsel %vm279, %v3955, %v3107
      %v3988 = vsel %vm279, %v3956, %v3109
      %v3989 = vsel %vm279, %v3957, %v3111
      %v3990 = vsel %vm279, %v3958, %v3113
      %v3991 = vsel %vm279, %v3959, %v3115
      %v3992 = vsel %vm279, %v3960, %v3117
      %v3993 = vsel %vm279, %v3961, %v3119
      %v3994 = vsel %vm279, %v3962, %v3121
      %v3995 = vsel %vm279, %v3963, %v3123
      %v3996 = vsel %vm279, %v3964, %v3125
      %v3997 = vsel %vm279, %v3965, %v3127
      %v3998 = vsel %vm279, %v3966, %v3129
      %v3999 = vsel %vm279, %v3967, %v3131
      %v4000 = vsel %vm279, %v3968, %v3133
      %v4001 = vsel %vm279, %v3969, %v3135
      %v4002 = vsel %vm279, %v3970, %v3137
      %v4003 = vsel %vm279, %v3971, %v3139
      %vm4004 = vcmask 97280
      %v4005 = vsel %vm4004, %v3972, %v3205
      %v4006 = vsel %vm4004, %v3973, %v3207
      %v4007 = vsel %vm4004, %v3974, %v3209
      %v4008 = vsel %vm4004, %v3975, %v3211
      %v4009 = vsel %vm4004, %v3976, %v3213
      %v4010 = vsel %vm4004, %v3977, %v3215
      %v4011 = vsel %vm4004, %v3978, %v3217
      %v4012 = vsel %vm4004, %v3979, %v3219
      %v4013 = vsel %vm4004, %v3980, %v3221
      %v4014 = vsel %vm4004, %v3981, %v3223
      %v4015 = vsel %vm4004, %v3982, %v3225
      %v4016 = vsel %vm4004, %v3983, %v3227
      %v4017 = vsel %vm4004, %v3984, %v3229
      %v4018 = vsel %vm4004, %v3985, %v3231
      %v4019 = vsel %vm4004, %v3986, %v3233
      %v4020 = vsel %vm4004, %v3987, %v3235
      %v4021 = vsel %vm4004, %v3988, %v3237
      %v4022 = vsel %vm4004, %v3989, %v3239
      %v4023 = vsel %vm4004, %v3990, %v3241
      %v4024 = vsel %vm4004, %v3991, %v3243
      %v4025 = vsel %vm4004, %v3992, %v3245
      %v4026 = vsel %vm4004, %v3993, %v3247
      %v4027 = vsel %vm4004, %v3994, %v3249
      %v4028 = vsel %vm4004, %v3995, %v3251
      %v4029 = vsel %vm4004, %v3996, %v3253
      %v4030 = vsel %vm4004, %v3997, %v3255
      %v4031 = vsel %vm4004, %v3998, %v3257
      %v4032 = vsel %vm4004, %v3999, %v3259
      %v4033 = vsel %vm4004, %v4000, %v3261
      %v4034 = vsel %vm4004, %v4001, %v3263
      %v4035 = vsel %vm4004, %v4002, %v3265
      %v4036 = vsel %vm4004, %v4003, %v3267
      %v4037 = vsel %vm1745, %v4005, %v3333
      %v4038 = vsel %vm1745, %v4006, %v3335
      %v4039 = vsel %vm1745, %v4007, %v3337
      %v4040 = vsel %vm1745, %v4008, %v3339
      %v4041 = vsel %vm1745, %v4009, %v3341
      %v4042 = vsel %vm1745, %v4010, %v3343
      %v4043 = vsel %vm1745, %v4011, %v3345
      %v4044 = vsel %vm1745, %v4012, %v3347
      %v4045 = vsel %vm1745, %v4013, %v3349
      %v4046 = vsel %vm1745, %v4014, %v3351
      %v4047 = vsel %vm1745, %v4015, %v3353
      %v4048 = vsel %vm1745, %v4016, %v3355
      %v4049 = vsel %vm1745, %v4017, %v3357
      %v4050 = vsel %vm1745, %v4018, %v3359
      %v4051 = vsel %vm1745, %v4019, %v3361
      %v4052 = vsel %vm1745, %v4020, %v3363
      %v4053 = vsel %vm1745, %v4021, %v3365
      %v4054 = vsel %vm1745, %v4022, %v3367
      %v4055 = vsel %vm1745, %v4023, %v3369
      %v4056 = vsel %vm1745, %v4024, %v3371
      %v4057 = vsel %vm1745, %v4025, %v3373
      %v4058 = vsel %vm1745, %v4026, %v3375
      %v4059 = vsel %vm1745, %v4027, %v3377
      %v4060 = vsel %vm1745, %v4028, %v3379
      %v4061 = vsel %vm1745, %v4029, %v3381
      %v4062 = vsel %vm1745, %v4030, %v3383
      %v4063 = vsel %vm1745, %v4031, %v3385
      %v4064 = vsel %vm1745, %v4032, %v3387
      %v4065 = vsel %vm1745, %v4033, %v3389
      %v4066 = vsel %vm1745, %v4034, %v3391
      %v4067 = vsel %vm1745, %v4035, %v3393
      %v4068 = vsel %vm1745, %v4036, %v3395
      %vm4069 = vcmask 162816
      %v4070 = vsel %vm4069, %v4037, %v3461
      %v4071 = vsel %vm4069, %v4038, %v3463
      %v4072 = vsel %vm4069, %v4039, %v3465
      %v4073 = vsel %vm4069, %v4040, %v3467
      %v4074 = vsel %vm4069, %v4041, %v3469
      %v4075 = vsel %vm4069, %v4042, %v3471
      %v4076 = vsel %vm4069, %v4043, %v3473
      %v4077 = vsel %vm4069, %v4044, %v3475
      %v4078 = vsel %vm4069, %v4045, %v3477
      %v4079 = vsel %vm4069, %v4046, %v3479
      %v4080 = vsel %vm4069, %v4047, %v3481
      %v4081 = vsel %vm4069, %v4048, %v3483
      %v4082 = vsel %vm4069, %v4049, %v3485
      %v4083 = vsel %vm4069, %v4050, %v3487
      %v4084 = vsel %vm4069, %v4051, %v3489
      %v4085 = vsel %vm4069, %v4052, %v3491
      %v4086 = vsel %vm4069, %v4053, %v3493
      %v4087 = vsel %vm4069, %v4054, %v3495
      %v4088 = vsel %vm4069, %v4055, %v3497
      %v4089 = vsel %vm4069, %v4056, %v3499
      %v4090 = vsel %vm4069, %v4057, %v3501
      %v4091 = vsel %vm4069, %v4058, %v3503
      %v4092 = vsel %vm4069, %v4059, %v3505
      %v4093 = vsel %vm4069, %v4060, %v3507
      %v4094 = vsel %vm4069, %v4061, %v3509
      %v4095 = vsel %vm4069, %v4062, %v3511
      %v4096 = vsel %vm4069, %v4063, %v3513
      %v4097 = vsel %vm4069, %v4064, %v3515
      %v4098 = vsel %vm4069, %v4065, %v3517
      %v4099 = vsel %vm4069, %v4066, %v3519
      %v4100 = vsel %vm4069, %v4067, %v3521
      %v4101 = vsel %vm4069, %v4068, %v3523
      %v4102 = vsel %vm1778, %v4070, %v3589
      %v4103 = vsel %vm1778, %v4071, %v3591
      %v4104 = vsel %vm1778, %v4072, %v3593
      %v4105 = vsel %vm1778, %v4073, %v3595
      %v4106 = vsel %vm1778, %v4074, %v3597
      %v4107 = vsel %vm1778, %v4075, %v3599
      %v4108 = vsel %vm1778, %v4076, %v3601
      %v4109 = vsel %vm1778, %v4077, %v3603
      %v4110 = vsel %vm1778, %v4078, %v3605
      %v4111 = vsel %vm1778, %v4079, %v3607
      %v4112 = vsel %vm1778, %v4080, %v3609
      %v4113 = vsel %vm1778, %v4081, %v3611
      %v4114 = vsel %vm1778, %v4082, %v3613
      %v4115 = vsel %vm1778, %v4083, %v3615
      %v4116 = vsel %vm1778, %v4084, %v3617
      %v4117 = vsel %vm1778, %v4085, %v3619
      %v4118 = vsel %vm1778, %v4086, %v3621
      %v4119 = vsel %vm1778, %v4087, %v3623
      %v4120 = vsel %vm1778, %v4088, %v3625
      %v4121 = vsel %vm1778, %v4089, %v3627
      %v4122 = vsel %vm1778, %v4090, %v3629
      %v4123 = vsel %vm1778, %v4091, %v3631
      %v4124 = vsel %vm1778, %v4092, %v3633
      %v4125 = vsel %vm1778, %v4093, %v3635
      %v4126 = vsel %vm1778, %v4094, %v3637
      %v4127 = vsel %vm1778, %v4095, %v3639
      %v4128 = vsel %vm1778, %v4096, %v3641
      %v4129 = vsel %vm1778, %v4097, %v3643
      %v4130 = vsel %vm1778, %v4098, %v3645
      %v4131 = vsel %vm1778, %v4099, %v3647
      %v4132 = vsel %vm1778, %v4100, %v3649
      %v4133 = vsel %vm1778, %v4101, %v3651
      %vm4134 = vcmask 228352
      %v4135 = vsel %vm4134, %v4102, %v3717
      %v4136 = vsel %vm4134, %v4103, %v3719
      %v4137 = vsel %vm4134, %v4104, %v3721
      %v4138 = vsel %vm4134, %v4105, %v3723
      %v4139 = vsel %vm4134, %v4106, %v3725
      %v4140 = vsel %vm4134, %v4107, %v3727
      %v4141 = vsel %vm4134, %v4108, %v3729
      %v4142 = vsel %vm4134, %v4109, %v3731
      %v4143 = vsel %vm4134, %v4110, %v3733
      %v4144 = vsel %vm4134, %v4111, %v3735
      %v4145 = vsel %vm4134, %v4112, %v3737
      %v4146 = vsel %vm4134, %v4113, %v3739
      %v4147 = vsel %vm4134, %v4114, %v3741
      %v4148 = vsel %vm4134, %v4115, %v3743
      %v4149 = vsel %vm4134, %v4116, %v3745
      %v4150 = vsel %vm4134, %v4117, %v3747
      %v4151 = vsel %vm4134, %v4118, %v3749
      %v4152 = vsel %vm4134, %v4119, %v3751
      %v4153 = vsel %vm4134, %v4120, %v3753
      %v4154 = vsel %vm4134, %v4121, %v3755
      %v4155 = vsel %vm4134, %v4122, %v3757
      %v4156 = vsel %vm4134, %v4123, %v3759
      %v4157 = vsel %vm4134, %v4124, %v3761
      %v4158 = vsel %vm4134, %v4125, %v3763
      %v4159 = vsel %vm4134, %v4126, %v3765
      %v4160 = vsel %vm4134, %v4127, %v3767
      %v4161 = vsel %vm4134, %v4128, %v3769
      %v4162 = vsel %vm4134, %v4129, %v3771
      %v4163 = vsel %vm4134, %v4130, %v3773
      %v4164 = vsel %vm4134, %v4131, %v3775
      %v4165 = vsel %vm4134, %v4132, %v3777
      %v4166 = vsel %vm4134, %v4133, %v3779
      %v4167 = vsel %vm1811, %v4135, %v3845
      %v4168 = vsel %vm1811, %v4136, %v3847
      %v4169 = vsel %vm1811, %v4137, %v3849
      %v4170 = vsel %vm1811, %v4138, %v3851
      %v4171 = vsel %vm1811, %v4139, %v3853
      %v4172 = vsel %vm1811, %v4140, %v3855
      %v4173 = vsel %vm1811, %v4141, %v3857
      %v4174 = vsel %vm1811, %v4142, %v3859
      %v4175 = vsel %vm1811, %v4143, %v3861
      %v4176 = vsel %vm1811, %v4144, %v3863
      %v4177 = vsel %vm1811, %v4145, %v3865
      %v4178 = vsel %vm1811, %v4146, %v3867
      %v4179 = vsel %vm1811, %v4147, %v3869
      %v4180 = vsel %vm1811, %v4148, %v3871
      %v4181 = vsel %vm1811, %v4149, %v3873
      %v4182 = vsel %vm1811, %v4150, %v3875
      %v4183 = vsel %vm1811, %v4151, %v3877
      %v4184 = vsel %vm1811, %v4152, %v3879
      %v4185 = vsel %vm1811, %v4153, %v3881
      %v4186 = vsel %vm1811, %v4154, %v3883
      %v4187 = vsel %vm1811, %v4155, %v3885
      %v4188 = vsel %vm1811, %v4156, %v3887
      %v4189 = vsel %vm1811, %v4157, %v3889
      %v4190 = vsel %vm1811, %v4158, %v3891
      %v4191 = vsel %vm1811, %v4159, %v3893
      %v4192 = vsel %vm1811, %v4160, %v3895
      %v4193 = vsel %vm1811, %v4161, %v3897
      %v4194 = vsel %vm1811, %v4162, %v3899
      %v4195 = vsel %vm1811, %v4163, %v3901
      %v4196 = vsel %vm1811, %v4164, %v3903
      %v4197 = vsel %vm1811, %v4165, %v3905
      %v4198 = vsel %vm1811, %v4166, %v3907
      %v4199 = vld [vmem:[%s3] sm:$0xff]
      %v4200 = vld [vmem:[%s3 + $0x8] sm:$0xff]
      %v4201 = vld [vmem:[%s3 + $0x10] sm:$0xff]
      %v4202 = vld [vmem:[%s3 + $0x18] sm:$0xff]
      %v4203 = vld [vmem:[%s3 + $0x20] sm:$0xf]
      %v4204 = vld [vmem:[%s4] sm:$0x1]
      %v4206 = vlaneseq
      %v4207 = vshrl.u32 %v4206, 7
      %v4208 = vsub.s32 0, %v4207
      %v4209 = vrot.slane %v4204, %v4208
      %vm4211 = vcmask 293888
      %v4213 = vsel %vm4211, %v4167, 0
      %v4216 = vsel %vm4211, %v4168, 0
      %v4219 = vsel %vm4211, %v4169, 0
      %v4222 = vsel %vm4211, %v4170, 0
      %v4225 = vsel %vm4211, %v4171, 0
      %v4228 = vsel %vm4211, %v4172, 0
      %v4231 = vsel %vm4211, %v4173, 0
      %v4234 = vsel %vm4211, %v4174, 0
      %v4237 = vsel %vm4211, %v4175, 0
      %v4240 = vsel %vm4211, %v4176, 0
      %v4243 = vsel %vm4211, %v4177, 0
      %v4246 = vsel %vm4211, %v4178, 0
      %v4249 = vsel %vm4211, %v4179, 0
      %v4252 = vsel %vm4211, %v4180, 0
      %v4255 = vsel %vm4211, %v4181, 0
      %v4258 = vsel %vm4211, %v4182, 0
      %v4261 = vsel %vm4211, %v4183, 0
      %v4264 = vsel %vm4211, %v4184, 0
      %v4267 = vsel %vm4211, %v4185, 0
      %v4270 = vsel %vm4211, %v4186, 0
      %v4273 = vsel %vm4211, %v4187, 0
      %v4276 = vsel %vm4211, %v4188, 0
      %v4279 = vsel %vm4211, %v4189, 0
      %v4282 = vsel %vm4211, %v4190, 0
      %v4285 = vsel %vm4211, %v4191, 0
      %v4288 = vsel %vm4211, %v4192, 0
      %v4291 = vsel %vm4211, %v4193, 0
      %v4294 = vsel %vm4211, %v4194, 0
      %v4297 = vsel %vm4211, %v4195, 0
      %v4300 = vsel %vm4211, %v4196, 0
      %v4303 = vsel %vm4211, %v4197, 0
      %v4306 = vsel %vm4211, %v4198, 0
      %vm4308 = vcmask 1043456
      %v4310 = vsel %vm4308, %v4203, 0
      %4312 = vmatprep.subr.mxu0 0.0
      %4313 = vmatpush1.msra.mxu0 0.0
      %4314 = vmatprep.subr.mxu0 0.0
      %4315 = vmatpush1.msra.mxu0 0.0
      %4316 = vmatprep.subr.mxu0 0.0
      %4317 = vmatpush1.msra.mxu0 0.0
      %4318 = vmatprep.subr.mxu0 0.0
      %4319 = vmatpush1.msra.mxu0 0.0
      %4320 = vmatprep.subr.mxu0 0.0
      %4321 = vmatpush1.msra.mxu0 0.0
      %4322 = vmatprep.subr.mxu0 0.0
      %4323 = vmatpush1.msra.mxu0 0.0
      %4324 = vmatprep.subr.mxu0 0.0
      %4325 = vmatpush1.msra.mxu0 0.0
      %4326 = vmatprep.subr.mxu0 0.0
      %4327 = vmatpush1.msra.mxu0 0.0
      %4328 = vmatprep.subr.mxu0 0.0
      %4329 = vmatpush1.msra.mxu0 0.0
      %4330 = vmatprep.subr.mxu0 0.0
      %4331 = vmatpush1.msra.mxu0 0.0
      %4332 = vmatprep.subr.mxu0 0.0
      %4333 = vmatpush1.msra.mxu0 0.0
      %4334 = vmatprep.subr.mxu0 0.0
      %4335 = vmatpush1.msra.mxu0 %v4310
      %4336 = vmatprep.subr.mxu0 0.0
      %4337 = vmatpush1.msra.mxu0 %v4202
      %4338 = vmatprep.subr.mxu0 0.0
      %4339 = vmatpush1.msra.mxu0 %v4201
      %4340 = vmatprep.subr.mxu0 0.0
      %4341 = vmatpush1.msra.mxu0 %v4200
      %4342 = vmatprep.subr.mxu0 0.0
      %4343 = vmatpush1.msra.mxu0 %v4199
      %4344 = vmatprep.subr.mxu0 0.0
      %4345 = vmatpush2.msra.mxu0 0.0
      %4346 = vmatprep.subr.mxu0 0.0
      %4347 = vmatpush2.msra.mxu0 0.0
      %4348 = vmatprep.subr.mxu0 0.0
      %4349 = vmatpush2.msra.mxu0 0.0
      %4350 = vmatprep.subr.mxu0 0.0
      %4351 = vmatpush2.msra.mxu0 0.0
      %4352 = vmatprep.subr.mxu0 0.0
      %4353 = vmatpush2.msra.mxu0 0.0
      %4354 = vmatprep.subr.mxu0 0.0
      %4355 = vmatpush2.msra.mxu0 0.0
      %4356 = vmatprep.subr.mxu0 0.0
      %4357 = vmatpush2.msra.mxu0 0.0
      %4358 = vmatprep.subr.mxu0 0.0
      %4359 = vmatpush2.msra.mxu0 0.0
      %4360 = vmatprep.subr.mxu0 0.0
      %4361 = vmatpush2.msra.mxu0 0.0
      %4362 = vmatprep.subr.mxu0 0.0
      %4363 = vmatpush2.msra.mxu0 0.0
      %4364 = vmatprep.subr.mxu0 0.0
      %4365 = vmatpush2.msra.mxu0 0.0
      %4366 = vmatprep.subr.mxu0 0.0
      %4367 = vmatpush2.msra.mxu0 0.0
      %4368 = vmatprep.subr.mxu0 0.0
      %4369 = vmatpush2.msra.mxu0 0.0
      %4370 = vmatprep.subr.mxu0 0.0
      %4371 = vmatpush2.msra.mxu0 0.0
      %4372 = vmatprep.subr.mxu0 0.0
      %4373 = vmatpush2.msra.mxu0 0.0
      %4374 = vmatprep.subr.mxu0 0.0
      %4375 = vmatpush2.msra.mxu0 0.0
      %4376 = vmatprep.mubr.f32.mxu0 0.0
      %4377 = vmatmul.mubr.f32.gmra.mxu0 %v4213
      %v4378 = vpop.f32.mrf.mxu0
      %v4379 = vadd.f32 %v4209, %v4378
      %v4380 = vpop.f32.mrf.mxu0
      %4381 = vmatprep.mubr.f32.mxu0 0.0
      %4382 = vmatmul.mubr.f32.gmra.mxu0 %v4216
      %v4383 = vpop.f32.mrf.mxu0
      %v4384 = vadd.f32 %v4209, %v4383
      %v4385 = vpop.f32.mrf.mxu0
      %4386 = vmatprep.mubr.f32.mxu0 0.0
      %4387 = vmatmul.mubr.f32.gmra.mxu0 %v4219
      %v4388 = vpop.f32.mrf.mxu0
      %v4389 = vadd.f32 %v4209, %v4388
      %v4390 = vpop.f32.mrf.mxu0
      %4391 = vmatprep.mubr.f32.mxu0 0.0
      %4392 = vmatmul.mubr.f32.gmra.mxu0 %v4222
      %v4393 = vpop.f32.mrf.mxu0
      %v4394 = vadd.f32 %v4209, %v4393
      %v4395 = vpop.f32.mrf.mxu0
      %4396 = vmatprep.mubr.f32.mxu0 0.0
      %4397 = vmatmul.mubr.f32.gmra.mxu0 %v4225
      %v4398 = vpop.f32.mrf.mxu0
      %v4399 = vadd.f32 %v4209, %v4398
      %v4400 = vpop.f32.mrf.mxu0
      %4401 = vmatprep.mubr.f32.mxu0 0.0
      %4402 = vmatmul.mubr.f32.gmra.mxu0 %v4228
      %v4403 = vpop.f32.mrf.mxu0
      %v4404 = vadd.f32 %v4209, %v4403
      %v4405 = vpop.f32.mrf.mxu0
      %4406 = vmatprep.mubr.f32.mxu0 0.0
      %4407 = vmatmul.mubr.f32.gmra.mxu0 %v4231
      %v4408 = vpop.f32.mrf.mxu0
      %v4409 = vadd.f32 %v4209, %v4408
      %v4410 = vpop.f32.mrf.mxu0
      %4411 = vmatprep.mubr.f32.mxu0 0.0
      %4412 = vmatmul.mubr.f32.gmra.mxu0 %v4234
      %v4413 = vpop.f32.mrf.mxu0
      %v4414 = vadd.f32 %v4209, %v4413
      %v4415 = vpop.f32.mrf.mxu0
      %4416 = vmatprep.mubr.f32.mxu0 0.0
      %4417 = vmatmul.mubr.f32.gmra.mxu0 %v4237
      %v4418 = vpop.f32.mrf.mxu0
      %v4419 = vadd.f32 %v4209, %v4418
      %v4420 = vpop.f32.mrf.mxu0
      %4421 = vmatprep.mubr.f32.mxu0 0.0
      %4422 = vmatmul.mubr.f32.gmra.mxu0 %v4240
      %v4423 = vpop.f32.mrf.mxu0
      %v4424 = vadd.f32 %v4209, %v4423
      %v4425 = vpop.f32.mrf.mxu0
      %4426 = vmatprep.mubr.f32.mxu0 0.0
      %4427 = vmatmul.mubr.f32.gmra.mxu0 %v4243
      %v4428 = vpop.f32.mrf.mxu0
      %v4429 = vadd.f32 %v4209, %v4428
      %v4430 = vpop.f32.mrf.mxu0
      %4431 = vmatprep.mubr.f32.mxu0 0.0
      %4432 = vmatmul.mubr.f32.gmra.mxu0 %v4246
      %v4433 = vpop.f32.mrf.mxu0
      %v4434 = vadd.f32 %v4209, %v4433
      %v4435 = vpop.f32.mrf.mxu0
      %4436 = vmatprep.mubr.f32.mxu0 0.0
      %4437 = vmatmul.mubr.f32.gmra.mxu0 %v4249
      %v4438 = vpop.f32.mrf.mxu0
      %v4439 = vadd.f32 %v4209, %v4438
      %v4440 = vpop.f32.mrf.mxu0
      %4441 = vmatprep.mubr.f32.mxu0 0.0
      %4442 = vmatmul.mubr.f32.gmra.mxu0 %v4252
      %v4443 = vpop.f32.mrf.mxu0
      %v4444 = vadd.f32 %v4209, %v4443
      %v4445 = vpop.f32.mrf.mxu0
      %4446 = vmatprep.mubr.f32.mxu0 0.0
      %4447 = vmatmul.mubr.f32.gmra.mxu0 %v4255
      %v4448 = vpop.f32.mrf.mxu0
      %v4449 = vadd.f32 %v4209, %v4448
      %v4450 = vpop.f32.mrf.mxu0
      %4451 = vmatprep.mubr.f32.mxu0 0.0
      %4452 = vmatmul.mubr.f32.gmra.mxu0 %v4258
      %v4453 = vpop.f32.mrf.mxu0
      %v4454 = vadd.f32 %v4209, %v4453
      %v4455 = vpop.f32.mrf.mxu0
      %4456 = vmatprep.mubr.f32.mxu0 0.0
      %4457 = vmatmul.mubr.f32.gmra.mxu0 %v4261
      %v4458 = vpop.f32.mrf.mxu0
      %v4459 = vadd.f32 %v4209, %v4458
      %v4460 = vpop.f32.mrf.mxu0
      %4461 = vmatprep.mubr.f32.mxu0 0.0
      %4462 = vmatmul.mubr.f32.gmra.mxu0 %v4264
      %v4463 = vpop.f32.mrf.mxu0
      %v4464 = vadd.f32 %v4209, %v4463
      %v4465 = vpop.f32.mrf.mxu0
      %4466 = vmatprep.mubr.f32.mxu0 0.0
      %4467 = vmatmul.mubr.f32.gmra.mxu0 %v4267
      %v4468 = vpop.f32.mrf.mxu0
      %v4469 = vadd.f32 %v4209, %v4468
      %v4470 = vpop.f32.mrf.mxu0
      %4471 = vmatprep.mubr.f32.mxu0 0.0
      %4472 = vmatmul.mubr.f32.gmra.mxu0 %v4270
      %v4473 = vpop.f32.mrf.mxu0
      %v4474 = vadd.f32 %v4209, %v4473
      %v4475 = vpop.f32.mrf.mxu0
      %4476 = vmatprep.mubr.f32.mxu0 0.0
      %4477 = vmatmul.mubr.f32.gmra.mxu0 %v4273
      %v4478 = vpop.f32.mrf.mxu0
      %v4479 = vadd.f32 %v4209, %v4478
      %v4480 = vpop.f32.mrf.mxu0
      %4481 = vmatprep.mubr.f32.mxu0 0.0
      %4482 = vmatmul.mubr.f32.gmra.mxu0 %v4276
      %v4483 = vpop.f32.mrf.mxu0
      %v4484 = vadd.f32 %v4209, %v4483
      %v4485 = vpop.f32.mrf.mxu0
      %4486 = vmatprep.mubr.f32.mxu0 0.0
      %4487 = vmatmul.mubr.f32.gmra.mxu0 %v4279
      %v4488 = vpop.f32.mrf.mxu0
      %v4489 = vadd.f32 %v4209, %v4488
      %v4490 = vpop.f32.mrf.mxu0
      %4491 = vmatprep.mubr.f32.mxu0 0.0
      %4492 = vmatmul.mubr.f32.gmra.mxu0 %v4282
      %v4493 = vpop.f32.mrf.mxu0
      %v4494 = vadd.f32 %v4209, %v4493
      %v4495 = vpop.f32.mrf.mxu0
      %4496 = vmatprep.mubr.f32.mxu0 0.0
      %4497 = vmatmul.mubr.f32.gmra.mxu0 %v4285
      %v4498 = vpop.f32.mrf.mxu0
      %v4499 = vadd.f32 %v4209, %v4498
      %v4500 = vpop.f32.mrf.mxu0
      %4501 = vmatprep.mubr.f32.mxu0 0.0
      %4502 = vmatmul.mubr.f32.gmra.mxu0 %v4288
      %v4503 = vpop.f32.mrf.mxu0
      %v4504 = vadd.f32 %v4209, %v4503
      %v4505 = vpop.f32.mrf.mxu0
      %4506 = vmatprep.mubr.f32.mxu0 0.0
      %4507 = vmatmul.mubr.f32.gmra.mxu0 %v4291
      %v4508 = vpop.f32.mrf.mxu0
      %v4509 = vadd.f32 %v4209, %v4508
      %v4510 = vpop.f32.mrf.mxu0
      %4511 = vmatprep.mubr.f32.mxu0 0.0
      %4512 = vmatmul.mubr.f32.gmra.mxu0 %v4294
      %v4513 = vpop.f32.mrf.mxu0
      %v4514 = vadd.f32 %v4209, %v4513
      %v4515 = vpop.f32.mrf.mxu0
      %4516 = vmatprep.mubr.f32.mxu0 0.0
      %4517 = vmatmul.mubr.f32.gmra.mxu0 %v4297
      %v4518 = vpop.f32.mrf.mxu0
      %v4519 = vadd.f32 %v4209, %v4518
      %v4520 = vpop.f32.mrf.mxu0
      %4521 = vmatprep.mubr.f32.mxu0 0.0
      %4522 = vmatmul.mubr.f32.gmra.mxu0 %v4300
      %v4523 = vpop.f32.mrf.mxu0
      %v4524 = vadd.f32 %v4209, %v4523
      %v4525 = vpop.f32.mrf.mxu0
      %4526 = vmatprep.mubr.f32.mxu0 0.0
      %4527 = vmatmul.mubr.f32.gmra.mxu0 %v4303
      %v4528 = vpop.f32.mrf.mxu0
      %v4529 = vadd.f32 %v4209, %v4528
      %v4530 = vpop.f32.mrf.mxu0
      %4531 = vmatprep.mubr.f32.mxu0 0.0
      %4532 = vmatmul.mubr.f32.gmra.mxu0 %v4306
      %v4533 = vpop.f32.mrf.mxu0
      %v4534 = vadd.f32 %v4209, %v4533
      %v4535 = vpop.f32.mrf.mxu0
      %4536 = vdwg.mxu0
      %vm4537 = vcmp.ge.f32.partialorder %v4379, 0.0
      %vm4538 = vcmp.ge.f32.partialorder %v4384, 0.0
      %vm4539 = vcmp.ge.f32.partialorder %v4389, 0.0
      %vm4540 = vcmp.ge.f32.partialorder %v4394, 0.0
      %vm4541 = vcmp.ge.f32.partialorder %v4399, 0.0
      %vm4542 = vcmp.ge.f32.partialorder %v4404, 0.0
      %vm4543 = vcmp.ge.f32.partialorder %v4409, 0.0
      %vm4544 = vcmp.ge.f32.partialorder %v4414, 0.0
      %vm4545 = vcmp.ge.f32.partialorder %v4419, 0.0
      %vm4546 = vcmp.ge.f32.partialorder %v4424, 0.0
      %vm4547 = vcmp.ge.f32.partialorder %v4429, 0.0
      %vm4548 = vcmp.ge.f32.partialorder %v4434, 0.0
      %vm4549 = vcmp.ge.f32.partialorder %v4439, 0.0
      %vm4550 = vcmp.ge.f32.partialorder %v4444, 0.0
      %vm4551 = vcmp.ge.f32.partialorder %v4449, 0.0
      %vm4552 = vcmp.ge.f32.partialorder %v4454, 0.0
      %vm4553 = vcmp.ge.f32.partialorder %v4459, 0.0
      %vm4554 = vcmp.ge.f32.partialorder %v4464, 0.0
      %vm4555 = vcmp.ge.f32.partialorder %v4469, 0.0
      %vm4556 = vcmp.ge.f32.partialorder %v4474, 0.0
      %vm4557 = vcmp.ge.f32.partialorder %v4479, 0.0
      %vm4558 = vcmp.ge.f32.partialorder %v4484, 0.0
      %vm4559 = vcmp.ge.f32.partialorder %v4489, 0.0
      %vm4560 = vcmp.ge.f32.partialorder %v4494, 0.0
      %vm4561 = vcmp.ge.f32.partialorder %v4499, 0.0
      %vm4562 = vcmp.ge.f32.partialorder %v4504, 0.0
      %vm4563 = vcmp.ge.f32.partialorder %v4509, 0.0
      %vm4564 = vcmp.ge.f32.partialorder %v4514, 0.0
      %vm4565 = vcmp.ge.f32.partialorder %v4519, 0.0
      %vm4566 = vcmp.ge.f32.partialorder %v4524, 0.0
      %vm4567 = vcmp.ge.f32.partialorder %v4529, 0.0
      %vm4568 = vcmp.ge.f32.partialorder %v4534, 0.0
      %v4569 = vmul.f32 %v4379, 0.1
      %v4570 = vmul.f32 %v4384, 0.1
      %v4571 = vmul.f32 %v4389, 0.1
      %v4572 = vmul.f32 %v4394, 0.1
      %v4573 = vmul.f32 %v4399, 0.1
      %v4574 = vmul.f32 %v4404, 0.1
      %v4575 = vmul.f32 %v4409, 0.1
      %v4576 = vmul.f32 %v4414, 0.1
      %v4577 = vmul.f32 %v4419, 0.1
      %v4578 = vmul.f32 %v4424, 0.1
      %v4579 = vmul.f32 %v4429, 0.1
      %v4580 = vmul.f32 %v4434, 0.1
      %v4581 = vmul.f32 %v4439, 0.1
      %v4582 = vmul.f32 %v4444, 0.1
      %v4583 = vmul.f32 %v4449, 0.1
      %v4584 = vmul.f32 %v4454, 0.1
      %v4585 = vmul.f32 %v4459, 0.1
      %v4586 = vmul.f32 %v4464, 0.1
      %v4587 = vmul.f32 %v4469, 0.1
      %v4588 = vmul.f32 %v4474, 0.1
      %v4589 = vmul.f32 %v4479, 0.1
      %v4590 = vmul.f32 %v4484, 0.1
      %v4591 = vmul.f32 %v4489, 0.1
      %v4592 = vmul.f32 %v4494, 0.1
      %v4593 = vmul.f32 %v4499, 0.1
      %v4594 = vmul.f32 %v4504, 0.1
      %v4595 = vmul.f32 %v4509, 0.1
      %v4596 = vmul.f32 %v4514, 0.1
      %v4597 = vmul.f32 %v4519, 0.1
      %v4598 = vmul.f32 %v4524, 0.1
      %v4599 = vmul.f32 %v4529, 0.1
      %v4600 = vmul.f32 %v4534, 0.1
      %v4601 = vsel %vm4537, %v4379, %v4569
      %v4602 = vsel %vm4538, %v4384, %v4570
      %v4603 = vsel %vm4539, %v4389, %v4571
      %v4604 = vsel %vm4540, %v4394, %v4572
      %v4605 = vsel %vm4541, %v4399, %v4573
      %v4606 = vsel %vm4542, %v4404, %v4574
      %v4607 = vsel %vm4543, %v4409, %v4575
      %v4608 = vsel %vm4544, %v4414, %v4576
      %v4609 = vsel %vm4545, %v4419, %v4577
      %v4610 = vsel %vm4546, %v4424, %v4578
      %v4611 = vsel %vm4547, %v4429, %v4579
      %v4612 = vsel %vm4548, %v4434, %v4580
      %v4613 = vsel %vm4549, %v4439, %v4581
      %v4614 = vsel %vm4550, %v4444, %v4582
      %v4615 = vsel %vm4551, %v4449, %v4583
      %v4616 = vsel %vm4552, %v4454, %v4584
      %v4617 = vsel %vm4553, %v4459, %v4585
      %v4618 = vsel %vm4554, %v4464, %v4586
      %v4619 = vsel %vm4555, %v4469, %v4587
      %v4620 = vsel %vm4556, %v4474, %v4588
      %v4621 = vsel %vm4557, %v4479, %v4589
      %v4622 = vsel %vm4558, %v4484, %v4590
      %v4623 = vsel %vm4559, %v4489, %v4591
      %v4624 = vsel %vm4560, %v4494, %v4592
      %v4625 = vsel %vm4561, %v4499, %v4593
      %v4626 = vsel %vm4562, %v4504, %v4594
      %v4627 = vsel %vm4563, %v4509, %v4595
      %v4628 = vsel %vm4564, %v4514, %v4596
      %v4629 = vsel %vm4565, %v4519, %v4597
      %v4630 = vsel %vm4566, %v4524, %v4598
      %v4631 = vsel %vm4567, %v4529, %v4599
      %v4632 = vsel %vm4568, %v4534, %v4600
      %4665 = vrot.lane.b32.xlu0 %v4601, 124
      %v4666 = vpop.permute.xlu0 %4665
      %4667 = vrot.lane.b32.xlu0 %v4602, 124
      %v4668 = vpop.permute.xlu0 %4667
      %4669 = vrot.lane.b32.xlu0 %v4603, 124
      %v4670 = vpop.permute.xlu0 %4669
      %4671 = vrot.lane.b32.xlu0 %v4604, 124
      %v4672 = vpop.permute.xlu0 %4671
      %4673 = vrot.lane.b32.xlu0 %v4605, 124
      %v4674 = vpop.permute.xlu0 %4673
      %4675 = vrot.lane.b32.xlu0 %v4606, 124
      %v4676 = vpop.permute.xlu0 %4675
      %4677 = vrot.lane.b32.xlu0 %v4607, 124
      %v4678 = vpop.permute.xlu0 %4677
      %4679 = vrot.lane.b32.xlu0 %v4608, 124
      %v4680 = vpop.permute.xlu0 %4679
      %4681 = vrot.lane.b32.xlu0 %v4609, 124
      %v4682 = vpop.permute.xlu0 %4681
      %4683 = vrot.lane.b32.xlu0 %v4610, 124
      %v4684 = vpop.permute.xlu0 %4683
      %4685 = vrot.lane.b32.xlu0 %v4611, 124
      %v4686 = vpop.permute.xlu0 %4685
      %4687 = vrot.lane.b32.xlu0 %v4612, 124
      %v4688 = vpop.permute.xlu0 %4687
      %4689 = vrot.lane.b32.xlu0 %v4613, 124
      %v4690 = vpop.permute.xlu0 %4689
      %4691 = vrot.lane.b32.xlu0 %v4614, 124
      %v4692 = vpop.permute.xlu0 %4691
      %4693 = vrot.lane.b32.xlu0 %v4615, 124
      %v4694 = vpop.permute.xlu0 %4693
      %4695 = vrot.lane.b32.xlu0 %v4616, 124
      %v4696 = vpop.permute.xlu0 %4695
      %4697 = vrot.lane.b32.xlu0 %v4617, 124
      %v4698 = vpop.permute.xlu0 %4697
      %4699 = vrot.lane.b32.xlu0 %v4618, 124
      %v4700 = vpop.permute.xlu0 %4699
      %4701 = vrot.lane.b32.xlu0 %v4619, 124
      %v4702 = vpop.permute.xlu0 %4701
      %4703 = vrot.lane.b32.xlu0 %v4620, 124
      %v4704 = vpop.permute.xlu0 %4703
      %4705 = vrot.lane.b32.xlu0 %v4621, 124
      %v4706 = vpop.permute.xlu0 %4705
      %4707 = vrot.lane.b32.xlu0 %v4622, 124
      %v4708 = vpop.permute.xlu0 %4707
      %4709 = vrot.lane.b32.xlu0 %v4623, 124
      %v4710 = vpop.permute.xlu0 %4709
      %4711 = vrot.lane.b32.xlu0 %v4624, 124
      %v4712 = vpop.permute.xlu0 %4711
      %4713 = vrot.lane.b32.xlu0 %v4625, 124
      %v4714 = vpop.permute.xlu0 %4713
      %4715 = vrot.lane.b32.xlu0 %v4626, 124
      %v4716 = vpop.permute.xlu0 %4715
      %4717 = vrot.lane.b32.xlu0 %v4627, 124
      %v4718 = vpop.permute.xlu0 %4717
      %4719 = vrot.lane.b32.xlu0 %v4628, 124
      %v4720 = vpop.permute.xlu0 %4719
      %4721 = vrot.lane.b32.xlu0 %v4629, 124
      %v4722 = vpop.permute.xlu0 %4721
      %4723 = vrot.lane.b32.xlu0 %v4630, 124
      %v4724 = vpop.permute.xlu0 %4723
      %4725 = vrot.lane.b32.xlu0 %v4631, 124
      %v4726 = vpop.permute.xlu0 %4725
      %4727 = vrot.lane.b32.xlu0 %v4632, 124
      %v4728 = vpop.permute.xlu0 %4727
      %4761 = vst.msk [vmem:[%s2594 + $0x1] sm:$0xff] %vm2410, %v4666
      %4762 = vst.msk [vmem:[%s2594 + $0x9] sm:$0xff] %vm2410, %v4668
      %4763 = vst.msk [vmem:[%s2594 + $0x19] sm:$0xff] %vm2410, %v4670
      %4764 = vst.msk [vmem:[%s2594 + $0x21] sm:$0xff] %vm2410, %v4672
      %4765 = vst.msk [vmem:[%s2594 + $0x31] sm:$0xff] %vm2410, %v4674
      %4766 = vst.msk [vmem:[%s2594 + $0x39] sm:$0xff] %vm2410, %v4676
      %4767 = vst.msk [vmem:[%s2594 + $0x49] sm:$0xff] %vm2410, %v4678
      %4768 = vst.msk [vmem:[%s2594 + $0x51] sm:$0xff] %vm2410, %v4680
      %4769 = vst.msk [vmem:[%s2594 + $0x61] sm:$0xff] %vm2410, %v4682
      %4770 = vst.msk [vmem:[%s2594 + $0x69] sm:$0xff] %vm2410, %v4684
      %4771 = vst.msk [vmem:[%s2594 + $0x79] sm:$0xff] %vm2410, %v4686
      %4772 = vst.msk [vmem:[%s2594 + $0x81] sm:$0xff] %vm2410, %v4688
      %4773 = vst.msk [vmem:[%s2594 + $0x91] sm:$0xff] %vm2410, %v4690
      %4774 = vst.msk [vmem:[%s2594 + $0x99] sm:$0xff] %vm2410, %v4692
      %4775 = vst.msk [vmem:[%s2594 + $0xa9] sm:$0xff] %vm2410, %v4694
      %4776 = vst.msk [vmem:[%s2594 + $0xb1] sm:$0xff] %vm2410, %v4696
      %4777 = vst.msk [vmem:[%s2594 + $0xc1] sm:$0xff] %vm2410, %v4698
      %4778 = vst.msk [vmem:[%s2594 + $0xc9] sm:$0xff] %vm2410, %v4700
      %4779 = vst.msk [vmem:[%s2594 + $0xd9] sm:$0xff] %vm2410, %v4702
      %4780 = vst.msk [vmem:[%s2594 + $0xe1] sm:$0xff] %vm2410, %v4704
      %4781 = vst.msk [vmem:[%s2594 + $0xf1] sm:$0xff] %vm2410, %v4706
      %4782 = vst.msk [vmem:[%s2594 + $0xf9] sm:$0xff] %vm2410, %v4708
      %4783 = vst.msk [vmem:[%s2594 + $0x109] sm:$0xff] %vm2410, %v4710
      %4784 = vst.msk [vmem:[%s2594 + $0x111] sm:$0xff] %vm2410, %v4712
      %4785 = vst.msk [vmem:[%s2594 + $0x121] sm:$0xff] %vm2410, %v4714
      %4786 = vst.msk [vmem:[%s2594 + $0x129] sm:$0xff] %vm2410, %v4716
      %4787 = vst.msk [vmem:[%s2594 + $0x139] sm:$0xff] %vm2410, %v4718
      %4788 = vst.msk [vmem:[%s2594 + $0x141] sm:$0xff] %vm2410, %v4720
      %4789 = vst.msk [vmem:[%s2594 + $0x151] sm:$0xff] %vm2410, %v4722
      %4790 = vst.msk [vmem:[%s2594 + $0x159] sm:$0xff] %vm2410, %v4724
      %4791 = vst.msk [vmem:[%s2594 + $0x169] sm:$0xff] %vm2410, %v4726
      %4792 = vst.msk [vmem:[%s2594 + $0x171] sm:$0xff] %vm2410, %v4728
      %v4793 = vld [vmem:[#allocation3] sm:$0xff]
      %v4794 = vld [vmem:[#allocation3 + $0x8] sm:$0xff]
      %v4795 = vld [vmem:[#allocation3 + $0x18] sm:$0xff]
      %v4796 = vld [vmem:[#allocation3 + $0x20] sm:$0xff]
      %v4797 = vld [vmem:[#allocation3 + $0x30] sm:$0xff]
      %v4798 = vld [vmem:[#allocation3 + $0x38] sm:$0xff]
      %v4799 = vld [vmem:[#allocation3 + $0x48] sm:$0xff]
      %v4800 = vld [vmem:[#allocation3 + $0x50] sm:$0xff]
      %v4801 = vld [vmem:[#allocation3 + $0x60] sm:$0xff]
      %v4802 = vld [vmem:[#allocation3 + $0x68] sm:$0xff]
      %v4803 = vld [vmem:[#allocation3 + $0x78] sm:$0xff]
      %v4804 = vld [vmem:[#allocation3 + $0x80] sm:$0xff]
      %v4805 = vld [vmem:[#allocation3 + $0x90] sm:$0xff]
      %v4806 = vld [vmem:[#allocation3 + $0x98] sm:$0xff]
      %v4807 = vld [vmem:[#allocation3 + $0xa8] sm:$0xff]
      %v4808 = vld [vmem:[#allocation3 + $0xb0] sm:$0xff]
      %v4809 = vld [vmem:[#allocation3 + $0xc0] sm:$0xff]
      %v4810 = vld [vmem:[#allocation3 + $0xc8] sm:$0xff]
      %v4811 = vld [vmem:[#allocation3 + $0xd8] sm:$0xff]
      %v4812 = vld [vmem:[#allocation3 + $0xe0] sm:$0xff]
      %v4813 = vld [vmem:[#allocation3 + $0xf0] sm:$0xff]
      %v4814 = vld [vmem:[#allocation3 + $0xf8] sm:$0xff]
      %v4815 = vld [vmem:[#allocation3 + $0x108] sm:$0xff]
      %v4816 = vld [vmem:[#allocation3 + $0x110] sm:$0xff]
      %v4817 = vld [vmem:[#allocation3 + $0x120] sm:$0xff]
      %v4818 = vld [vmem:[#allocation3 + $0x128] sm:$0xff]
      %v4819 = vld [vmem:[#allocation3 + $0x138] sm:$0xff]
      %v4820 = vld [vmem:[#allocation3 + $0x140] sm:$0xff]
      %v4821 = vld [vmem:[#allocation3 + $0x150] sm:$0xff]
      %v4822 = vld [vmem:[#allocation3 + $0x158] sm:$0xff]
      %v4823 = vld [vmem:[#allocation3 + $0x168] sm:$0xff]
      %v4824 = vld [vmem:[#allocation3 + $0x170] sm:$0xff]
      %v4825 = vld [vmem:[#allocation3 + $0x1] sm:$0xff]
      %v4826 = vld [vmem:[#allocation3 + $0x9] sm:$0xff]
      %v4827 = vld [vmem:[#allocation3 + $0x19] sm:$0xff]
      %v4828 = vld [vmem:[#allocation3 + $0x21] sm:$0xff]
      %v4829 = vld [vmem:[#allocation3 + $0x31] sm:$0xff]
      %v4830 = vld [vmem:[#allocation3 + $0x39] sm:$0xff]
      %v4831 = vld [vmem:[#allocation3 + $0x49] sm:$0xff]
      %v4832 = vld [vmem:[#allocation3 + $0x51] sm:$0xff]
      %v4833 = vld [vmem:[#allocation3 + $0x61] sm:$0xff]
      %v4834 = vld [vmem:[#allocation3 + $0x69] sm:$0xff]
      %v4835 = vld [vmem:[#allocation3 + $0x79] sm:$0xff]
      %v4836 = vld [vmem:[#allocation3 + $0x81] sm:$0xff]
      %v4837 = vld [vmem:[#allocation3 + $0x91] sm:$0xff]
      %v4838 = vld [vmem:[#allocation3 + $0x99] sm:$0xff]
      %v4839 = vld [vmem:[#allocation3 + $0xa9] sm:$0xff]
      %v4840 = vld [vmem:[#allocation3 + $0xb1] sm:$0xff]
      %v4841 = vld [vmem:[#allocation3 + $0xc1] sm:$0xff]
      %v4842 = vld [vmem:[#allocation3 + $0xc9] sm:$0xff]
      %v4843 = vld [vmem:[#allocation3 + $0xd9] sm:$0xff]
      %v4844 = vld [vmem:[#allocation3 + $0xe1] sm:$0xff]
      %v4845 = vld [vmem:[#allocation3 + $0xf1] sm:$0xff]
      %v4846 = vld [vmem:[#allocation3 + $0xf9] sm:$0xff]
      %v4847 = vld [vmem:[#allocation3 + $0x109] sm:$0xff]
      %v4848 = vld [vmem:[#allocation3 + $0x111] sm:$0xff]
      %v4849 = vld [vmem:[#allocation3 + $0x121] sm:$0xff]
      %v4850 = vld [vmem:[#allocation3 + $0x129] sm:$0xff]
      %v4851 = vld [vmem:[#allocation3 + $0x139] sm:$0xff]
      %v4852 = vld [vmem:[#allocation3 + $0x141] sm:$0xff]
      %v4853 = vld [vmem:[#allocation3 + $0x151] sm:$0xff]
      %v4854 = vld [vmem:[#allocation3 + $0x159] sm:$0xff]
      %v4855 = vld [vmem:[#allocation3 + $0x169] sm:$0xff]
      %v4856 = vld [vmem:[#allocation3 + $0x171] sm:$0xff]
      %v4857 = vld [vmem:[#allocation3 + $0x2] sm:$0xff]
      %v4858 = vld [vmem:[#allocation3 + $0xa] sm:$0xff]
      %v4859 = vld [vmem:[#allocation3 + $0x1a] sm:$0xff]
      %v4860 = vld [vmem:[#allocation3 + $0x22] sm:$0xff]
      %v4861 = vld [vmem:[#allocation3 + $0x32] sm:$0xff]
      %v4862 = vld [vmem:[#allocation3 + $0x3a] sm:$0xff]
      %v4863 = vld [vmem:[#allocation3 + $0x4a] sm:$0xff]
      %v4864 = vld [vmem:[#allocation3 + $0x52] sm:$0xff]
      %v4865 = vld [vmem:[#allocation3 + $0x62] sm:$0xff]
      %v4866 = vld [vmem:[#allocation3 + $0x6a] sm:$0xff]
      %v4867 = vld [vmem:[#allocation3 + $0x7a] sm:$0xff]
      %v4868 = vld [vmem:[#allocation3 + $0x82] sm:$0xff]
      %v4869 = vld [vmem:[#allocation3 + $0x92] sm:$0xff]
      %v4870 = vld [vmem:[#allocation3 + $0x9a] sm:$0xff]
      %v4871 = vld [vmem:[#allocation3 + $0xaa] sm:$0xff]
      %v4872 = vld [vmem:[#allocation3 + $0xb2] sm:$0xff]
      %v4873 = vld [vmem:[#allocation3 + $0xc2] sm:$0xff]
      %v4874 = vld [vmem:[#allocation3 + $0xca] sm:$0xff]
      %v4875 = vld [vmem:[#allocation3 + $0xda] sm:$0xff]
      %v4876 = vld [vmem:[#allocation3 + $0xe2] sm:$0xff]
      %v4877 = vld [vmem:[#allocation3 + $0xf2] sm:$0xff]
      %v4878 = vld [vmem:[#allocation3 + $0xfa] sm:$0xff]
      %v4879 = vld [vmem:[#allocation3 + $0x10a] sm:$0xff]
      %v4880 = vld [vmem:[#allocation3 + $0x112] sm:$0xff]
      %v4881 = vld [vmem:[#allocation3 + $0x122] sm:$0xff]
      %v4882 = vld [vmem:[#allocation3 + $0x12a] sm:$0xff]
      %v4883 = vld [vmem:[#allocation3 + $0x13a] sm:$0xff]
      %v4884 = vld [vmem:[#allocation3 + $0x142] sm:$0xff]
      %v4885 = vld [vmem:[#allocation3 + $0x152] sm:$0xff]
      %v4886 = vld [vmem:[#allocation3 + $0x15a] sm:$0xff]
      %v4887 = vld [vmem:[#allocation3 + $0x16a] sm:$0xff]
      %v4888 = vld [vmem:[#allocation3 + $0x172] sm:$0xff]
      %v4889 = vld [vmem:[%s2594] sm:$0xff]
      %v4890 = vld [vmem:[%s2594 + $0x8] sm:$0xff]
      %v4891 = vld [vmem:[%s2594 + $0x18] sm:$0xff]
      %v4892 = vld [vmem:[%s2594 + $0x20] sm:$0xff]
      %v4893 = vld [vmem:[%s2594 + $0x30] sm:$0xff]
      %v4894 = vld [vmem:[%s2594 + $0x38] sm:$0xff]
      %v4895 = vld [vmem:[%s2594 + $0x48] sm:$0xff]
      %v4896 = vld [vmem:[%s2594 + $0x50] sm:$0xff]
      %v4897 = vld [vmem:[%s2594 + $0x60] sm:$0xff]
      %v4898 = vld [vmem:[%s2594 + $0x68] sm:$0xff]
      %v4899 = vld [vmem:[%s2594 + $0x78] sm:$0xff]
      %v4900 = vld [vmem:[%s2594 + $0x80] sm:$0xff]
      %v4901 = vld [vmem:[%s2594 + $0x90] sm:$0xff]
      %v4902 = vld [vmem:[%s2594 + $0x98] sm:$0xff]
      %v4903 = vld [vmem:[%s2594 + $0xa8] sm:$0xff]
      %v4904 = vld [vmem:[%s2594 + $0xb0] sm:$0xff]
      %v4905 = vld [vmem:[%s2594 + $0xc0] sm:$0xff]
      %v4906 = vld [vmem:[%s2594 + $0xc8] sm:$0xff]
      %v4907 = vld [vmem:[%s2594 + $0xd8] sm:$0xff]
      %v4908 = vld [vmem:[%s2594 + $0xe0] sm:$0xff]
      %v4909 = vld [vmem:[%s2594 + $0xf0] sm:$0xff]
      %v4910 = vld [vmem:[%s2594 + $0xf8] sm:$0xff]
      %v4911 = vld [vmem:[%s2594 + $0x108] sm:$0xff]
      %v4912 = vld [vmem:[%s2594 + $0x110] sm:$0xff]
      %v4913 = vld [vmem:[%s2594 + $0x120] sm:$0xff]
      %v4914 = vld [vmem:[%s2594 + $0x128] sm:$0xff]
      %v4915 = vld [vmem:[%s2594 + $0x138] sm:$0xff]
      %v4916 = vld [vmem:[%s2594 + $0x140] sm:$0xff]
      %v4917 = vld [vmem:[%s2594 + $0x150] sm:$0xff]
      %v4918 = vld [vmem:[%s2594 + $0x158] sm:$0xff]
      %v4919 = vld [vmem:[%s2594 + $0x168] sm:$0xff]
      %v4920 = vld [vmem:[%s2594 + $0x170] sm:$0xff]
      %v4921 = vld [vmem:[%s2594 + $0x1] sm:$0xff]
      %v4922 = vld [vmem:[%s2594 + $0x9] sm:$0xff]
      %v4923 = vld [vmem:[%s2594 + $0x19] sm:$0xff]
      %v4924 = vld [vmem:[%s2594 + $0x21] sm:$0xff]
      %v4925 = vld [vmem:[%s2594 + $0x31] sm:$0xff]
      %v4926 = vld [vmem:[%s2594 + $0x39] sm:$0xff]
      %v4927 = vld [vmem:[%s2594 + $0x49] sm:$0xff]
      %v4928 = vld [vmem:[%s2594 + $0x51] sm:$0xff]
      %v4929 = vld [vmem:[%s2594 + $0x61] sm:$0xff]
      %v4930 = vld [vmem:[%s2594 + $0x69] sm:$0xff]
      %v4931 = vld [vmem:[%s2594 + $0x79] sm:$0xff]
      %v4932 = vld [vmem:[%s2594 + $0x81] sm:$0xff]
      %v4933 = vld [vmem:[%s2594 + $0x91] sm:$0xff]
      %v4934 = vld [vmem:[%s2594 + $0x99] sm:$0xff]
      %v4935 = vld [vmem:[%s2594 + $0xa9] sm:$0xff]
      %v4936 = vld [vmem:[%s2594 + $0xb1] sm:$0xff]
      %v4937 = vld [vmem:[%s2594 + $0xc1] sm:$0xff]
      %v4938 = vld [vmem:[%s2594 + $0xc9] sm:$0xff]
      %v4939 = vld [vmem:[%s2594 + $0xd9] sm:$0xff]
      %v4940 = vld [vmem:[%s2594 + $0xe1] sm:$0xff]
      %v4941 = vld [vmem:[%s2594 + $0xf1] sm:$0xff]
      %v4942 = vld [vmem:[%s2594 + $0xf9] sm:$0xff]
      %v4943 = vld [vmem:[%s2594 + $0x109] sm:$0xff]
      %v4944 = vld [vmem:[%s2594 + $0x111] sm:$0xff]
      %v4945 = vld [vmem:[%s2594 + $0x121] sm:$0xff]
      %v4946 = vld [vmem:[%s2594 + $0x129] sm:$0xff]
      %v4947 = vld [vmem:[%s2594 + $0x139] sm:$0xff]
      %v4948 = vld [vmem:[%s2594 + $0x141] sm:$0xff]
      %v4949 = vld [vmem:[%s2594 + $0x151] sm:$0xff]
      %v4950 = vld [vmem:[%s2594 + $0x159] sm:$0xff]
      %v4951 = vld [vmem:[%s2594 + $0x169] sm:$0xff]
      %v4952 = vld [vmem:[%s2594 + $0x171] sm:$0xff]
      %v4953 = vld [vmem:[%s2594 + $0x2] sm:$0xff]
      %v4954 = vld [vmem:[%s2594 + $0xa] sm:$0xff]
      %v4955 = vld [vmem:[%s2594 + $0x1a] sm:$0xff]
      %v4956 = vld [vmem:[%s2594 + $0x22] sm:$0xff]
      %v4957 = vld [vmem:[%s2594 + $0x32] sm:$0xff]
      %v4958 = vld [vmem:[%s2594 + $0x3a] sm:$0xff]
      %v4959 = vld [vmem:[%s2594 + $0x4a] sm:$0xff]
      %v4960 = vld [vmem:[%s2594 + $0x52] sm:$0xff]
      %v4961 = vld [vmem:[%s2594 + $0x62] sm:$0xff]
      %v4962 = vld [vmem:[%s2594 + $0x6a] sm:$0xff]
      %v4963 = vld [vmem:[%s2594 + $0x7a] sm:$0xff]
      %v4964 = vld [vmem:[%s2594 + $0x82] sm:$0xff]
      %v4965 = vld [vmem:[%s2594 + $0x92] sm:$0xff]
      %v4966 = vld [vmem:[%s2594 + $0x9a] sm:$0xff]
      %v4967 = vld [vmem:[%s2594 + $0xaa] sm:$0xff]
      %v4968 = vld [vmem:[%s2594 + $0xb2] sm:$0xff]
      %v4969 = vld [vmem:[%s2594 + $0xc2] sm:$0xff]
      %v4970 = vld [vmem:[%s2594 + $0xca] sm:$0xff]
      %v4971 = vld [vmem:[%s2594 + $0xda] sm:$0xff]
      %v4972 = vld [vmem:[%s2594 + $0xe2] sm:$0xff]
      %v4973 = vld [vmem:[%s2594 + $0xf2] sm:$0xff]
      %v4974 = vld [vmem:[%s2594 + $0xfa] sm:$0xff]
      %v4975 = vld [vmem:[%s2594 + $0x10a] sm:$0xff]
      %v4976 = vld [vmem:[%s2594 + $0x112] sm:$0xff]
      %v4977 = vld [vmem:[%s2594 + $0x122] sm:$0xff]
      %v4978 = vld [vmem:[%s2594 + $0x12a] sm:$0xff]
      %v4979 = vld [vmem:[%s2594 + $0x13a] sm:$0xff]
      %v4980 = vld [vmem:[%s2594 + $0x142] sm:$0xff]
      %v4981 = vld [vmem:[%s2594 + $0x152] sm:$0xff]
      %v4982 = vld [vmem:[%s2594 + $0x15a] sm:$0xff]
      %v4983 = vld [vmem:[%s2594 + $0x16a] sm:$0xff]
      %v4984 = vld [vmem:[%s2594 + $0x172] sm:$0xff]
      %v4985 = vld [vmem:[%s2819] sm:$0xff]
      %v4986 = vld [vmem:[%s2819 + $0x8] sm:$0xff]
      %v4987 = vld [vmem:[%s2819 + $0x18] sm:$0xff]
      %v4988 = vld [vmem:[%s2819 + $0x20] sm:$0xff]
      %v4989 = vld [vmem:[%s2819 + $0x30] sm:$0xff]
      %v4990 = vld [vmem:[%s2819 + $0x38] sm:$0xff]
      %v4991 = vld [vmem:[%s2819 + $0x48] sm:$0xff]
      %v4992 = vld [vmem:[%s2819 + $0x50] sm:$0xff]
      %v4993 = vld [vmem:[%s2819 + $0x60] sm:$0xff]
      %v4994 = vld [vmem:[%s2819 + $0x68] sm:$0xff]
      %v4995 = vld [vmem:[%s2819 + $0x78] sm:$0xff]
      %v4996 = vld [vmem:[%s2819 + $0x80] sm:$0xff]
      %v4997 = vld [vmem:[%s2819 + $0x90] sm:$0xff]
      %v4998 = vld [vmem:[%s2819 + $0x98] sm:$0xff]
      %v4999 = vld [vmem:[%s2819 + $0xa8] sm:$0xff]
      %v5000 = vld [vmem:[%s2819 + $0xb0] sm:$0xff]
      %v5001 = vld [vmem:[%s2819 + $0xc0] sm:$0xff]
      %v5002 = vld [vmem:[%s2819 + $0xc8] sm:$0xff]
      %v5003 = vld [vmem:[%s2819 + $0xd8] sm:$0xff]
      %v5004 = vld [vmem:[%s2819 + $0xe0] sm:$0xff]
      %v5005 = vld [vmem:[%s2819 + $0xf0] sm:$0xff]
      %v5006 = vld [vmem:[%s2819 + $0xf8] sm:$0xff]
      %v5007 = vld [vmem:[%s2819 + $0x108] sm:$0xff]
      %v5008 = vld [vmem:[%s2819 + $0x110] sm:$0xff]
      %v5009 = vld [vmem:[%s2819 + $0x120] sm:$0xff]
      %v5010 = vld [vmem:[%s2819 + $0x128] sm:$0xff]
      %v5011 = vld [vmem:[%s2819 + $0x138] sm:$0xff]
      %v5012 = vld [vmem:[%s2819 + $0x140] sm:$0xff]
      %v5013 = vld [vmem:[%s2819 + $0x150] sm:$0xff]
      %v5014 = vld [vmem:[%s2819 + $0x158] sm:$0xff]
      %v5015 = vld [vmem:[%s2819 + $0x168] sm:$0xff]
      %v5016 = vld [vmem:[%s2819 + $0x170] sm:$0xff]
      %v5017 = vld [vmem:[%s2819 + $0x1] sm:$0xff]
      %v5018 = vld [vmem:[%s2819 + $0x9] sm:$0xff]
      %v5019 = vld [vmem:[%s2819 + $0x19] sm:$0xff]
      %v5020 = vld [vmem:[%s2819 + $0x21] sm:$0xff]
      %v5021 = vld [vmem:[%s2819 + $0x31] sm:$0xff]
      %v5022 = vld [vmem:[%s2819 + $0x39] sm:$0xff]
      %v5023 = vld [vmem:[%s2819 + $0x49] sm:$0xff]
      %v5024 = vld [vmem:[%s2819 + $0x51] sm:$0xff]
      %v5025 = vld [vmem:[%s2819 + $0x61] sm:$0xff]
      %v5026 = vld [vmem:[%s2819 + $0x69] sm:$0xff]
      %v5027 = vld [vmem:[%s2819 + $0x79] sm:$0xff]
      %v5028 = vld [vmem:[%s2819 + $0x81] sm:$0xff]
      %v5029 = vld [vmem:[%s2819 + $0x91] sm:$0xff]
      %v5030 = vld [vmem:[%s2819 + $0x99] sm:$0xff]
      %v5031 = vld [vmem:[%s2819 + $0xa9] sm:$0xff]
      %v5032 = vld [vmem:[%s2819 + $0xb1] sm:$0xff]
      %v5033 = vld [vmem:[%s2819 + $0xc1] sm:$0xff]
      %v5034 = vld [vmem:[%s2819 + $0xc9] sm:$0xff]
      %v5035 = vld [vmem:[%s2819 + $0xd9] sm:$0xff]
      %v5036 = vld [vmem:[%s2819 + $0xe1] sm:$0xff]
      %v5037 = vld [vmem:[%s2819 + $0xf1] sm:$0xff]
      %v5038 = vld [vmem:[%s2819 + $0xf9] sm:$0xff]
      %v5039 = vld [vmem:[%s2819 + $0x109] sm:$0xff]
      %v5040 = vld [vmem:[%s2819 + $0x111] sm:$0xff]
      %v5041 = vld [vmem:[%s2819 + $0x121] sm:$0xff]
      %v5042 = vld [vmem:[%s2819 + $0x129] sm:$0xff]
      %v5043 = vld [vmem:[%s2819 + $0x139] sm:$0xff]
      %v5044 = vld [vmem:[%s2819 + $0x141] sm:$0xff]
      %v5045 = vld [vmem:[%s2819 + $0x151] sm:$0xff]
      %v5046 = vld [vmem:[%s2819 + $0x159] sm:$0xff]
      %v5047 = vld [vmem:[%s2819 + $0x169] sm:$0xff]
      %v5048 = vld [vmem:[%s2819 + $0x171] sm:$0xff]
      %v5049 = vld [vmem:[%s2819 + $0x2] sm:$0xff]
      %v5050 = vld [vmem:[%s2819 + $0xa] sm:$0xff]
      %v5051 = vld [vmem:[%s2819 + $0x1a] sm:$0xff]
      %v5052 = vld [vmem:[%s2819 + $0x22] sm:$0xff]
      %v5053 = vld [vmem:[%s2819 + $0x32] sm:$0xff]
      %v5054 = vld [vmem:[%s2819 + $0x3a] sm:$0xff]
      %v5055 = vld [vmem:[%s2819 + $0x4a] sm:$0xff]
      %v5056 = vld [vmem:[%s2819 + $0x52] sm:$0xff]
      %v5057 = vld [vmem:[%s2819 + $0x62] sm:$0xff]
      %v5058 = vld [vmem:[%s2819 + $0x6a] sm:$0xff]
      %v5059 = vld [vmem:[%s2819 + $0x7a] sm:$0xff]
      %v5060 = vld [vmem:[%s2819 + $0x82] sm:$0xff]
      %v5061 = vld [vmem:[%s2819 + $0x92] sm:$0xff]
      %v5062 = vld [vmem:[%s2819 + $0x9a] sm:$0xff]
      %v5063 = vld [vmem:[%s2819 + $0xaa] sm:$0xff]
      %v5064 = vld [vmem:[%s2819 + $0xb2] sm:$0xff]
      %v5065 = vld [vmem:[%s2819 + $0xc2] sm:$0xff]
      %v5066 = vld [vmem:[%s2819 + $0xca] sm:$0xff]
      %v5067 = vld [vmem:[%s2819 + $0xda] sm:$0xff]
      %v5068 = vld [vmem:[%s2819 + $0xe2] sm:$0xff]
      %v5069 = vld [vmem:[%s2819 + $0xf2] sm:$0xff]
      %v5070 = vld [vmem:[%s2819 + $0xfa] sm:$0xff]
      %v5071 = vld [vmem:[%s2819 + $0x10a] sm:$0xff]
      %v5072 = vld [vmem:[%s2819 + $0x112] sm:$0xff]
      %v5073 = vld [vmem:[%s2819 + $0x122] sm:$0xff]
      %v5074 = vld [vmem:[%s2819 + $0x12a] sm:$0xff]
      %v5075 = vld [vmem:[%s2819 + $0x13a] sm:$0xff]
      %v5076 = vld [vmem:[%s2819 + $0x142] sm:$0xff]
      %v5077 = vld [vmem:[%s2819 + $0x152] sm:$0xff]
      %v5078 = vld [vmem:[%s2819 + $0x15a] sm:$0xff]
      %v5079 = vld [vmem:[%s2819 + $0x16a] sm:$0xff]
      %v5080 = vld [vmem:[%s2819 + $0x172] sm:$0xff]
      %5113 = vrot.lane.b32.xlu0 %v4825, 4
      %v5114 = vpop.permute.xlu0 %5113
      %5115 = vrot.lane.b32.xlu0 %v4826, 4
      %v5116 = vpop.permute.xlu0 %5115
      %5117 = vrot.lane.b32.xlu0 %v4827, 4
      %v5118 = vpop.permute.xlu0 %5117
      %5119 = vrot.lane.b32.xlu0 %v4828, 4
      %v5120 = vpop.permute.xlu0 %5119
      %5121 = vrot.lane.b32.xlu0 %v4829, 4
      %v5122 = vpop.permute.xlu0 %5121
      %5123 = vrot.lane.b32.xlu0 %v4830, 4
      %v5124 = vpop.permute.xlu0 %5123
      %5125 = vrot.lane.b32.xlu0 %v4831, 4
      %v5126 = vpop.permute.xlu0 %5125
      %5127 = vrot.lane.b32.xlu0 %v4832, 4
      %v5128 = vpop.permute.xlu0 %5127
      %5129 = vrot.lane.b32.xlu0 %v4833, 4
      %v5130 = vpop.permute.xlu0 %5129
      %5131 = vrot.lane.b32.xlu0 %v4834, 4
      %v5132 = vpop.permute.xlu0 %5131
      %5133 = vrot.lane.b32.xlu0 %v4835, 4
      %v5134 = vpop.permute.xlu0 %5133
      %5135 = vrot.lane.b32.xlu0 %v4836, 4
      %v5136 = vpop.permute.xlu0 %5135
      %5137 = vrot.lane.b32.xlu0 %v4837, 4
      %v5138 = vpop.permute.xlu0 %5137
      %5139 = vrot.lane.b32.xlu0 %v4838, 4
      %v5140 = vpop.permute.xlu0 %5139
      %5141 = vrot.lane.b32.xlu0 %v4839, 4
      %v5142 = vpop.permute.xlu0 %5141
      %5143 = vrot.lane.b32.xlu0 %v4840, 4
      %v5144 = vpop.permute.xlu0 %5143
      %5145 = vrot.lane.b32.xlu0 %v4841, 4
      %v5146 = vpop.permute.xlu0 %5145
      %5147 = vrot.lane.b32.xlu0 %v4842, 4
      %v5148 = vpop.permute.xlu0 %5147
      %5149 = vrot.lane.b32.xlu0 %v4843, 4
      %v5150 = vpop.permute.xlu0 %5149
      %5151 = vrot.lane.b32.xlu0 %v4844, 4
      %v5152 = vpop.permute.xlu0 %5151
      %5153 = vrot.lane.b32.xlu0 %v4845, 4
      %v5154 = vpop.permute.xlu0 %5153
      %5155 = vrot.lane.b32.xlu0 %v4846, 4
      %v5156 = vpop.permute.xlu0 %5155
      %5157 = vrot.lane.b32.xlu0 %v4847, 4
      %v5158 = vpop.permute.xlu0 %5157
      %5159 = vrot.lane.b32.xlu0 %v4848, 4
      %v5160 = vpop.permute.xlu0 %5159
      %5161 = vrot.lane.b32.xlu0 %v4849, 4
      %v5162 = vpop.permute.xlu0 %5161
      %5163 = vrot.lane.b32.xlu0 %v4850, 4
      %v5164 = vpop.permute.xlu0 %5163
      %5165 = vrot.lane.b32.xlu0 %v4851, 4
      %v5166 = vpop.permute.xlu0 %5165
      %5167 = vrot.lane.b32.xlu0 %v4852, 4
      %v5168 = vpop.permute.xlu0 %5167
      %5169 = vrot.lane.b32.xlu0 %v4853, 4
      %v5170 = vpop.permute.xlu0 %5169
      %5171 = vrot.lane.b32.xlu0 %v4854, 4
      %v5172 = vpop.permute.xlu0 %5171
      %5173 = vrot.lane.b32.xlu0 %v4855, 4
      %v5174 = vpop.permute.xlu0 %5173
      %5175 = vrot.lane.b32.xlu0 %v4856, 4
      %v5176 = vpop.permute.xlu0 %5175
      %5241 = vrot.lane.b32.xlu0 %v4857, 8
      %v5242 = vpop.permute.xlu0 %5241
      %5243 = vrot.lane.b32.xlu0 %v4858, 8
      %v5244 = vpop.permute.xlu0 %5243
      %5245 = vrot.lane.b32.xlu0 %v4859, 8
      %v5246 = vpop.permute.xlu0 %5245
      %5247 = vrot.lane.b32.xlu0 %v4860, 8
      %v5248 = vpop.permute.xlu0 %5247
      %5249 = vrot.lane.b32.xlu0 %v4861, 8
      %v5250 = vpop.permute.xlu0 %5249
      %5251 = vrot.lane.b32.xlu0 %v4862, 8
      %v5252 = vpop.permute.xlu0 %5251
      %5253 = vrot.lane.b32.xlu0 %v4863, 8
      %v5254 = vpop.permute.xlu0 %5253
      %5255 = vrot.lane.b32.xlu0 %v4864, 8
      %v5256 = vpop.permute.xlu0 %5255
      %5257 = vrot.lane.b32.xlu0 %v4865, 8
      %v5258 = vpop.permute.xlu0 %5257
      %5259 = vrot.lane.b32.xlu0 %v4866, 8
      %v5260 = vpop.permute.xlu0 %5259
      %5261 = vrot.lane.b32.xlu0 %v4867, 8
      %v5262 = vpop.permute.xlu0 %5261
      %5263 = vrot.lane.b32.xlu0 %v4868, 8
      %v5264 = vpop.permute.xlu0 %5263
      %5265 = vrot.lane.b32.xlu0 %v4869, 8
      %v5266 = vpop.permute.xlu0 %5265
      %5267 = vrot.lane.b32.xlu0 %v4870, 8
      %v5268 = vpop.permute.xlu0 %5267
      %5269 = vrot.lane.b32.xlu0 %v4871, 8
      %v5270 = vpop.permute.xlu0 %5269
      %5271 = vrot.lane.b32.xlu0 %v4872, 8
      %v5272 = vpop.permute.xlu0 %5271
      %5273 = vrot.lane.b32.xlu0 %v4873, 8
      %v5274 = vpop.permute.xlu0 %5273
      %5275 = vrot.lane.b32.xlu0 %v4874, 8
      %v5276 = vpop.permute.xlu0 %5275
      %5277 = vrot.lane.b32.xlu0 %v4875, 8
      %v5278 = vpop.permute.xlu0 %5277
      %5279 = vrot.lane.b32.xlu0 %v4876, 8
      %v5280 = vpop.permute.xlu0 %5279
      %5281 = vrot.lane.b32.xlu0 %v4877, 8
      %v5282 = vpop.permute.xlu0 %5281
      %5283 = vrot.lane.b32.xlu0 %v4878, 8
      %v5284 = vpop.permute.xlu0 %5283
      %5285 = vrot.lane.b32.xlu0 %v4879, 8
      %v5286 = vpop.permute.xlu0 %5285
      %5287 = vrot.lane.b32.xlu0 %v4880, 8
      %v5288 = vpop.permute.xlu0 %5287
      %5289 = vrot.lane.b32.xlu0 %v4881, 8
      %v5290 = vpop.permute.xlu0 %5289
      %5291 = vrot.lane.b32.xlu0 %v4882, 8
      %v5292 = vpop.permute.xlu0 %5291
      %5293 = vrot.lane.b32.xlu0 %v4883, 8
      %v5294 = vpop.permute.xlu0 %5293
      %5295 = vrot.lane.b32.xlu0 %v4884, 8
      %v5296 = vpop.permute.xlu0 %5295
      %5297 = vrot.lane.b32.xlu0 %v4885, 8
      %v5298 = vpop.permute.xlu0 %5297
      %5299 = vrot.lane.b32.xlu0 %v4886, 8
      %v5300 = vpop.permute.xlu0 %5299
      %5301 = vrot.lane.b32.xlu0 %v4887, 8
      %v5302 = vpop.permute.xlu0 %5301
      %5303 = vrot.lane.b32.xlu0 %v4888, 8
      %v5304 = vpop.permute.xlu0 %5303
      %5369 = vrot.lane.b32.xlu0 %v4889, 12
      %v5370 = vpop.permute.xlu0 %5369
      %5371 = vrot.lane.b32.xlu0 %v4890, 12
      %v5372 = vpop.permute.xlu0 %5371
      %5373 = vrot.lane.b32.xlu0 %v4891, 12
      %v5374 = vpop.permute.xlu0 %5373
      %5375 = vrot.lane.b32.xlu0 %v4892, 12
      %v5376 = vpop.permute.xlu0 %5375
      %5377 = vrot.lane.b32.xlu0 %v4893, 12
      %v5378 = vpop.permute.xlu0 %5377
      %5379 = vrot.lane.b32.xlu0 %v4894, 12
      %v5380 = vpop.permute.xlu0 %5379
      %5381 = vrot.lane.b32.xlu0 %v4895, 12
      %v5382 = vpop.permute.xlu0 %5381
      %5383 = vrot.lane.b32.xlu0 %v4896, 12
      %v5384 = vpop.permute.xlu0 %5383
      %5385 = vrot.lane.b32.xlu0 %v4897, 12
      %v5386 = vpop.permute.xlu0 %5385
      %5387 = vrot.lane.b32.xlu0 %v4898, 12
      %v5388 = vpop.permute.xlu0 %5387
      %5389 = vrot.lane.b32.xlu0 %v4899, 12
      %v5390 = vpop.permute.xlu0 %5389
      %5391 = vrot.lane.b32.xlu0 %v4900, 12
      %v5392 = vpop.permute.xlu0 %5391
      %5393 = vrot.lane.b32.xlu0 %v4901, 12
      %v5394 = vpop.permute.xlu0 %5393
      %5395 = vrot.lane.b32.xlu0 %v4902, 12
      %v5396 = vpop.permute.xlu0 %5395
      %5397 = vrot.lane.b32.xlu0 %v4903, 12
      %v5398 = vpop.permute.xlu0 %5397
      %5399 = vrot.lane.b32.xlu0 %v4904, 12
      %v5400 = vpop.permute.xlu0 %5399
      %5401 = vrot.lane.b32.xlu0 %v4905, 12
      %v5402 = vpop.permute.xlu0 %5401
      %5403 = vrot.lane.b32.xlu0 %v4906, 12
      %v5404 = vpop.permute.xlu0 %5403
      %5405 = vrot.lane.b32.xlu0 %v4907, 12
      %v5406 = vpop.permute.xlu0 %5405
      %5407 = vrot.lane.b32.xlu0 %v4908, 12
      %v5408 = vpop.permute.xlu0 %5407
      %5409 = vrot.lane.b32.xlu0 %v4909, 12
      %v5410 = vpop.permute.xlu0 %5409
      %5411 = vrot.lane.b32.xlu0 %v4910, 12
      %v5412 = vpop.permute.xlu0 %5411
      %5413 = vrot.lane.b32.xlu0 %v4911, 12
      %v5414 = vpop.permute.xlu0 %5413
      %5415 = vrot.lane.b32.xlu0 %v4912, 12
      %v5416 = vpop.permute.xlu0 %5415
      %5417 = vrot.lane.b32.xlu0 %v4913, 12
      %v5418 = vpop.permute.xlu0 %5417
      %5419 = vrot.lane.b32.xlu0 %v4914, 12
      %v5420 = vpop.permute.xlu0 %5419
      %5421 = vrot.lane.b32.xlu0 %v4915, 12
      %v5422 = vpop.permute.xlu0 %5421
      %5423 = vrot.lane.b32.xlu0 %v4916, 12
      %v5424 = vpop.permute.xlu0 %5423
      %5425 = vrot.lane.b32.xlu0 %v4917, 12
      %v5426 = vpop.permute.xlu0 %5425
      %5427 = vrot.lane.b32.xlu0 %v4918, 12
      %v5428 = vpop.permute.xlu0 %5427
      %5429 = vrot.lane.b32.xlu0 %v4919, 12
      %v5430 = vpop.permute.xlu0 %5429
      %5431 = vrot.lane.b32.xlu0 %v4920, 12
      %v5432 = vpop.permute.xlu0 %5431
      %5497 = vrot.lane.b32.xlu0 %v4921, 16
      %v5498 = vpop.permute.xlu0 %5497
      %5499 = vrot.lane.b32.xlu0 %v4922, 16
      %v5500 = vpop.permute.xlu0 %5499
      %5501 = vrot.lane.b32.xlu0 %v4923, 16
      %v5502 = vpop.permute.xlu0 %5501
      %5503 = vrot.lane.b32.xlu0 %v4924, 16
      %v5504 = vpop.permute.xlu0 %5503
      %5505 = vrot.lane.b32.xlu0 %v4925, 16
      %v5506 = vpop.permute.xlu0 %5505
      %5507 = vrot.lane.b32.xlu0 %v4926, 16
      %v5508 = vpop.permute.xlu0 %5507
      %5509 = vrot.lane.b32.xlu0 %v4927, 16
      %v5510 = vpop.permute.xlu0 %5509
      %5511 = vrot.lane.b32.xlu0 %v4928, 16
      %v5512 = vpop.permute.xlu0 %5511
      %5513 = vrot.lane.b32.xlu0 %v4929, 16
      %v5514 = vpop.permute.xlu0 %5513
      %5515 = vrot.lane.b32.xlu0 %v4930, 16
      %v5516 = vpop.permute.xlu0 %5515
      %5517 = vrot.lane.b32.xlu0 %v4931, 16
      %v5518 = vpop.permute.xlu0 %5517
      %5519 = vrot.lane.b32.xlu0 %v4932, 16
      %v5520 = vpop.permute.xlu0 %5519
      %5521 = vrot.lane.b32.xlu0 %v4933, 16
      %v5522 = vpop.permute.xlu0 %5521
      %5523 = vrot.lane.b32.xlu0 %v4934, 16
      %v5524 = vpop.permute.xlu0 %5523
      %5525 = vrot.lane.b32.xlu0 %v4935, 16
      %v5526 = vpop.permute.xlu0 %5525
      %5527 = vrot.lane.b32.xlu0 %v4936, 16
      %v5528 = vpop.permute.xlu0 %5527
      %5529 = vrot.lane.b32.xlu0 %v4937, 16
      %v5530 = vpop.permute.xlu0 %5529
      %5531 = vrot.lane.b32.xlu0 %v4938, 16
      %v5532 = vpop.permute.xlu0 %5531
      %5533 = vrot.lane.b32.xlu0 %v4939, 16
      %v5534 = vpop.permute.xlu0 %5533
      %5535 = vrot.lane.b32.xlu0 %v4940, 16
      %v5536 = vpop.permute.xlu0 %5535
      %5537 = vrot.lane.b32.xlu0 %v4941, 16
      %v5538 = vpop.permute.xlu0 %5537
      %5539 = vrot.lane.b32.xlu0 %v4942, 16
      %v5540 = vpop.permute.xlu0 %5539
      %5541 = vrot.lane.b32.xlu0 %v4943, 16
      %v5542 = vpop.permute.xlu0 %5541
      %5543 = vrot.lane.b32.xlu0 %v4944, 16
      %v5544 = vpop.permute.xlu0 %5543
      %5545 = vrot.lane.b32.xlu0 %v4945, 16
      %v5546 = vpop.permute.xlu0 %5545
      %5547 = vrot.lane.b32.xlu0 %v4946, 16
      %v5548 = vpop.permute.xlu0 %5547
      %5549 = vrot.lane.b32.xlu0 %v4947, 16
      %v5550 = vpop.permute.xlu0 %5549
      %5551 = vrot.lane.b32.xlu0 %v4948, 16
      %v5552 = vpop.permute.xlu0 %5551
      %5553 = vrot.lane.b32.xlu0 %v4949, 16
      %v5554 = vpop.permute.xlu0 %5553
      %5555 = vrot.lane.b32.xlu0 %v4950, 16
      %v5556 = vpop.permute.xlu0 %5555
      %5557 = vrot.lane.b32.xlu0 %v4951, 16
      %v5558 = vpop.permute.xlu0 %5557
      %5559 = vrot.lane.b32.xlu0 %v4952, 16
      %v5560 = vpop.permute.xlu0 %5559
      %5625 = vrot.lane.b32.xlu0 %v4953, 20
      %v5626 = vpop.permute.xlu0 %5625
      %5627 = vrot.lane.b32.xlu0 %v4954, 20
      %v5628 = vpop.permute.xlu0 %5627
      %5629 = vrot.lane.b32.xlu0 %v4955, 20
      %v5630 = vpop.permute.xlu0 %5629
      %5631 = vrot.lane.b32.xlu0 %v4956, 20
      %v5632 = vpop.permute.xlu0 %5631
      %5633 = vrot.lane.b32.xlu0 %v4957, 20
      %v5634 = vpop.permute.xlu0 %5633
      %5635 = vrot.lane.b32.xlu0 %v4958, 20
      %v5636 = vpop.permute.xlu0 %5635
      %5637 = vrot.lane.b32.xlu0 %v4959, 20
      %v5638 = vpop.permute.xlu0 %5637
      %5639 = vrot.lane.b32.xlu0 %v4960, 20
      %v5640 = vpop.permute.xlu0 %5639
      %5641 = vrot.lane.b32.xlu0 %v4961, 20
      %v5642 = vpop.permute.xlu0 %5641
      %5643 = vrot.lane.b32.xlu0 %v4962, 20
      %v5644 = vpop.permute.xlu0 %5643
      %5645 = vrot.lane.b32.xlu0 %v4963, 20
      %v5646 = vpop.permute.xlu0 %5645
      %5647 = vrot.lane.b32.xlu0 %v4964, 20
      %v5648 = vpop.permute.xlu0 %5647
      %5649 = vrot.lane.b32.xlu0 %v4965, 20
      %v5650 = vpop.permute.xlu0 %5649
      %5651 = vrot.lane.b32.xlu0 %v4966, 20
      %v5652 = vpop.permute.xlu0 %5651
      %5653 = vrot.lane.b32.xlu0 %v4967, 20
      %v5654 = vpop.permute.xlu0 %5653
      %5655 = vrot.lane.b32.xlu0 %v4968, 20
      %v5656 = vpop.permute.xlu0 %5655
      %5657 = vrot.lane.b32.xlu0 %v4969, 20
      %v5658 = vpop.permute.xlu0 %5657
      %5659 = vrot.lane.b32.xlu0 %v4970, 20
      %v5660 = vpop.permute.xlu0 %5659
      %5661 = vrot.lane.b32.xlu0 %v4971, 20
      %v5662 = vpop.permute.xlu0 %5661
      %5663 = vrot.lane.b32.xlu0 %v4972, 20
      %v5664 = vpop.permute.xlu0 %5663
      %5665 = vrot.lane.b32.xlu0 %v4973, 20
      %v5666 = vpop.permute.xlu0 %5665
      %5667 = vrot.lane.b32.xlu0 %v4974, 20
      %v5668 = vpop.permute.xlu0 %5667
      %5669 = vrot.lane.b32.xlu0 %v4975, 20
      %v5670 = vpop.permute.xlu0 %5669
      %5671 = vrot.lane.b32.xlu0 %v4976, 20
      %v5672 = vpop.permute.xlu0 %5671
      %5673 = vrot.lane.b32.xlu0 %v4977, 20
      %v5674 = vpop.permute.xlu0 %5673
      %5675 = vrot.lane.b32.xlu0 %v4978, 20
      %v5676 = vpop.permute.xlu0 %5675
      %5677 = vrot.lane.b32.xlu0 %v4979, 20
      %v5678 = vpop.permute.xlu0 %5677
      %5679 = vrot.lane.b32.xlu0 %v4980, 20
      %v5680 = vpop.permute.xlu0 %5679
      %5681 = vrot.lane.b32.xlu0 %v4981, 20
      %v5682 = vpop.permute.xlu0 %5681
      %5683 = vrot.lane.b32.xlu0 %v4982, 20
      %v5684 = vpop.permute.xlu0 %5683
      %5685 = vrot.lane.b32.xlu0 %v4983, 20
      %v5686 = vpop.permute.xlu0 %5685
      %5687 = vrot.lane.b32.xlu0 %v4984, 20
      %v5688 = vpop.permute.xlu0 %5687
      %5753 = vrot.lane.b32.xlu0 %v4985, 24
      %v5754 = vpop.permute.xlu0 %5753
      %5755 = vrot.lane.b32.xlu0 %v4986, 24
      %v5756 = vpop.permute.xlu0 %5755
      %5757 = vrot.lane.b32.xlu0 %v4987, 24
      %v5758 = vpop.permute.xlu0 %5757
      %5759 = vrot.lane.b32.xlu0 %v4988, 24
      %v5760 = vpop.permute.xlu0 %5759
      %5761 = vrot.lane.b32.xlu0 %v4989, 24
      %v5762 = vpop.permute.xlu0 %5761
      %5763 = vrot.lane.b32.xlu0 %v4990, 24
      %v5764 = vpop.permute.xlu0 %5763
      %5765 = vrot.lane.b32.xlu0 %v4991, 24
      %v5766 = vpop.permute.xlu0 %5765
      %5767 = vrot.lane.b32.xlu0 %v4992, 24
      %v5768 = vpop.permute.xlu0 %5767
      %5769 = vrot.lane.b32.xlu0 %v4993, 24
      %v5770 = vpop.permute.xlu0 %5769
      %5771 = vrot.lane.b32.xlu0 %v4994, 24
      %v5772 = vpop.permute.xlu0 %5771
      %5773 = vrot.lane.b32.xlu0 %v4995, 24
      %v5774 = vpop.permute.xlu0 %5773
      %5775 = vrot.lane.b32.xlu0 %v4996, 24
      %v5776 = vpop.permute.xlu0 %5775
      %5777 = vrot.lane.b32.xlu0 %v4997, 24
      %v5778 = vpop.permute.xlu0 %5777
      %5779 = vrot.lane.b32.xlu0 %v4998, 24
      %v5780 = vpop.permute.xlu0 %5779
      %5781 = vrot.lane.b32.xlu0 %v4999, 24
      %v5782 = vpop.permute.xlu0 %5781
      %5783 = vrot.lane.b32.xlu0 %v5000, 24
      %v5784 = vpop.permute.xlu0 %5783
      %5785 = vrot.lane.b32.xlu0 %v5001, 24
      %v5786 = vpop.permute.xlu0 %5785
      %5787 = vrot.lane.b32.xlu0 %v5002, 24
      %v5788 = vpop.permute.xlu0 %5787
      %5789 = vrot.lane.b32.xlu0 %v5003, 24
      %v5790 = vpop.permute.xlu0 %5789
      %5791 = vrot.lane.b32.xlu0 %v5004, 24
      %v5792 = vpop.permute.xlu0 %5791
      %5793 = vrot.lane.b32.xlu0 %v5005, 24
      %v5794 = vpop.permute.xlu0 %5793
      %5795 = vrot.lane.b32.xlu0 %v5006, 24
      %v5796 = vpop.permute.xlu0 %5795
      %5797 = vrot.lane.b32.xlu0 %v5007, 24
      %v5798 = vpop.permute.xlu0 %5797
      %5799 = vrot.lane.b32.xlu0 %v5008, 24
      %v5800 = vpop.permute.xlu0 %5799
      %5801 = vrot.lane.b32.xlu0 %v5009, 24
      %v5802 = vpop.permute.xlu0 %5801
      %5803 = vrot.lane.b32.xlu0 %v5010, 24
      %v5804 = vpop.permute.xlu0 %5803
      %5805 = vrot.lane.b32.xlu0 %v5011, 24
      %v5806 = vpop.permute.xlu0 %5805
      %5807 = vrot.lane.b32.xlu0 %v5012, 24
      %v5808 = vpop.permute.xlu0 %5807
      %5809 = vrot.lane.b32.xlu0 %v5013, 24
      %v5810 = vpop.permute.xlu0 %5809
      %5811 = vrot.lane.b32.xlu0 %v5014, 24
      %v5812 = vpop.permute.xlu0 %5811
      %5813 = vrot.lane.b32.xlu0 %v5015, 24
      %v5814 = vpop.permute.xlu0 %5813
      %5815 = vrot.lane.b32.xlu0 %v5016, 24
      %v5816 = vpop.permute.xlu0 %5815
      %5881 = vrot.lane.b32.xlu0 %v5017, 28
      %v5882 = vpop.permute.xlu0 %5881
      %5883 = vrot.lane.b32.xlu0 %v5018, 28
      %v5884 = vpop.permute.xlu0 %5883
      %5885 = vrot.lane.b32.xlu0 %v5019, 28
      %v5886 = vpop.permute.xlu0 %5885
      %5887 = vrot.lane.b32.xlu0 %v5020, 28
      %v5888 = vpop.permute.xlu0 %5887
      %5889 = vrot.lane.b32.xlu0 %v5021, 28
      %v5890 = vpop.permute.xlu0 %5889
      %5891 = vrot.lane.b32.xlu0 %v5022, 28
      %v5892 = vpop.permute.xlu0 %5891
      %5893 = vrot.lane.b32.xlu0 %v5023, 28
      %v5894 = vpop.permute.xlu0 %5893
      %5895 = vrot.lane.b32.xlu0 %v5024, 28
      %v5896 = vpop.permute.xlu0 %5895
      %5897 = vrot.lane.b32.xlu0 %v5025, 28
      %v5898 = vpop.permute.xlu0 %5897
      %5899 = vrot.lane.b32.xlu0 %v5026, 28
      %v5900 = vpop.permute.xlu0 %5899
      %5901 = vrot.lane.b32.xlu0 %v5027, 28
      %v5902 = vpop.permute.xlu0 %5901
      %5903 = vrot.lane.b32.xlu0 %v5028, 28
      %v5904 = vpop.permute.xlu0 %5903
      %5905 = vrot.lane.b32.xlu0 %v5029, 28
      %v5906 = vpop.permute.xlu0 %5905
      %5907 = vrot.lane.b32.xlu0 %v5030, 28
      %v5908 = vpop.permute.xlu0 %5907
      %5909 = vrot.lane.b32.xlu0 %v5031, 28
      %v5910 = vpop.permute.xlu0 %5909
      %5911 = vrot.lane.b32.xlu0 %v5032, 28
      %v5912 = vpop.permute.xlu0 %5911
      %5913 = vrot.lane.b32.xlu0 %v5033, 28
      %v5914 = vpop.permute.xlu0 %5913
      %5915 = vrot.lane.b32.xlu0 %v5034, 28
      %v5916 = vpop.permute.xlu0 %5915
      %5917 = vrot.lane.b32.xlu0 %v5035, 28
      %v5918 = vpop.permute.xlu0 %5917
      %5919 = vrot.lane.b32.xlu0 %v5036, 28
      %v5920 = vpop.permute.xlu0 %5919
      %5921 = vrot.lane.b32.xlu0 %v5037, 28
      %v5922 = vpop.permute.xlu0 %5921
      %5923 = vrot.lane.b32.xlu0 %v5038, 28
      %v5924 = vpop.permute.xlu0 %5923
      %5925 = vrot.lane.b32.xlu0 %v5039, 28
      %v5926 = vpop.permute.xlu0 %5925
      %5927 = vrot.lane.b32.xlu0 %v5040, 28
      %v5928 = vpop.permute.xlu0 %5927
      %5929 = vrot.lane.b32.xlu0 %v5041, 28
      %v5930 = vpop.permute.xlu0 %5929
      %5931 = vrot.lane.b32.xlu0 %v5042, 28
      %v5932 = vpop.permute.xlu0 %5931
      %5933 = vrot.lane.b32.xlu0 %v5043, 28
      %v5934 = vpop.permute.xlu0 %5933
      %5935 = vrot.lane.b32.xlu0 %v5044, 28
      %v5936 = vpop.permute.xlu0 %5935
      %5937 = vrot.lane.b32.xlu0 %v5045, 28
      %v5938 = vpop.permute.xlu0 %5937
      %5939 = vrot.lane.b32.xlu0 %v5046, 28
      %v5940 = vpop.permute.xlu0 %5939
      %5941 = vrot.lane.b32.xlu0 %v5047, 28
      %v5942 = vpop.permute.xlu0 %5941
      %5943 = vrot.lane.b32.xlu0 %v5048, 28
      %v5944 = vpop.permute.xlu0 %5943
      %6009 = vrot.lane.b32.xlu0 %v5049, 32
      %v6010 = vpop.permute.xlu0 %6009
      %6011 = vrot.lane.b32.xlu0 %v5050, 32
      %v6012 = vpop.permute.xlu0 %6011
      %6013 = vrot.lane.b32.xlu0 %v5051, 32
      %v6014 = vpop.permute.xlu0 %6013
      %6015 = vrot.lane.b32.xlu0 %v5052, 32
      %v6016 = vpop.permute.xlu0 %6015
      %6017 = vrot.lane.b32.xlu0 %v5053, 32
      %v6018 = vpop.permute.xlu0 %6017
      %6019 = vrot.lane.b32.xlu0 %v5054, 32
      %v6020 = vpop.permute.xlu0 %6019
      %6021 = vrot.lane.b32.xlu0 %v5055, 32
      %v6022 = vpop.permute.xlu0 %6021
      %6023 = vrot.lane.b32.xlu0 %v5056, 32
      %v6024 = vpop.permute.xlu0 %6023
      %6025 = vrot.lane.b32.xlu0 %v5057, 32
      %v6026 = vpop.permute.xlu0 %6025
      %6027 = vrot.lane.b32.xlu0 %v5058, 32
      %v6028 = vpop.permute.xlu0 %6027
      %6029 = vrot.lane.b32.xlu0 %v5059, 32
      %v6030 = vpop.permute.xlu0 %6029
      %6031 = vrot.lane.b32.xlu0 %v5060, 32
      %v6032 = vpop.permute.xlu0 %6031
      %6033 = vrot.lane.b32.xlu0 %v5061, 32
      %v6034 = vpop.permute.xlu0 %6033
      %6035 = vrot.lane.b32.xlu0 %v5062, 32
      %v6036 = vpop.permute.xlu0 %6035
      %6037 = vrot.lane.b32.xlu0 %v5063, 32
      %v6038 = vpop.permute.xlu0 %6037
      %6039 = vrot.lane.b32.xlu0 %v5064, 32
      %v6040 = vpop.permute.xlu0 %6039
      %6041 = vrot.lane.b32.xlu0 %v5065, 32
      %v6042 = vpop.permute.xlu0 %6041
      %6043 = vrot.lane.b32.xlu0 %v5066, 32
      %v6044 = vpop.permute.xlu0 %6043
      %6045 = vrot.lane.b32.xlu0 %v5067, 32
      %v6046 = vpop.permute.xlu0 %6045
      %6047 = vrot.lane.b32.xlu0 %v5068, 32
      %v6048 = vpop.permute.xlu0 %6047
      %6049 = vrot.lane.b32.xlu0 %v5069, 32
      %v6050 = vpop.permute.xlu0 %6049
      %6051 = vrot.lane.b32.xlu0 %v5070, 32
      %v6052 = vpop.permute.xlu0 %6051
      %6053 = vrot.lane.b32.xlu0 %v5071, 32
      %v6054 = vpop.permute.xlu0 %6053
      %6055 = vrot.lane.b32.xlu0 %v5072, 32
      %v6056 = vpop.permute.xlu0 %6055
      %6057 = vrot.lane.b32.xlu0 %v5073, 32
      %v6058 = vpop.permute.xlu0 %6057
      %6059 = vrot.lane.b32.xlu0 %v5074, 32
      %v6060 = vpop.permute.xlu0 %6059
      %6061 = vrot.lane.b32.xlu0 %v5075, 32
      %v6062 = vpop.permute.xlu0 %6061
      %6063 = vrot.lane.b32.xlu0 %v5076, 32
      %v6064 = vpop.permute.xlu0 %6063
      %6065 = vrot.lane.b32.xlu0 %v5077, 32
      %v6066 = vpop.permute.xlu0 %6065
      %6067 = vrot.lane.b32.xlu0 %v5078, 32
      %v6068 = vpop.permute.xlu0 %6067
      %6069 = vrot.lane.b32.xlu0 %v5079, 32
      %v6070 = vpop.permute.xlu0 %6069
      %6071 = vrot.lane.b32.xlu0 %v5080, 32
      %v6072 = vpop.permute.xlu0 %6071
      %v6105 = vsel %vm2410, %v4793, %v5114
      %v6106 = vsel %vm2410, %v4794, %v5116
      %v6107 = vsel %vm2410, %v4795, %v5118
      %v6108 = vsel %vm2410, %v4796, %v5120
      %v6109 = vsel %vm2410, %v4797, %v5122
      %v6110 = vsel %vm2410, %v4798, %v5124
      %v6111 = vsel %vm2410, %v4799, %v5126
      %v6112 = vsel %vm2410, %v4800, %v5128
      %v6113 = vsel %vm2410, %v4801, %v5130
      %v6114 = vsel %vm2410, %v4802, %v5132
      %v6115 = vsel %vm2410, %v4803, %v5134
      %v6116 = vsel %vm2410, %v4804, %v5136
      %v6117 = vsel %vm2410, %v4805, %v5138
      %v6118 = vsel %vm2410, %v4806, %v5140
      %v6119 = vsel %vm2410, %v4807, %v5142
      %v6120 = vsel %vm2410, %v4808, %v5144
      %v6121 = vsel %vm2410, %v4809, %v5146
      %v6122 = vsel %vm2410, %v4810, %v5148
      %v6123 = vsel %vm2410, %v4811, %v5150
      %v6124 = vsel %vm2410, %v4812, %v5152
      %v6125 = vsel %vm2410, %v4813, %v5154
      %v6126 = vsel %vm2410, %v4814, %v5156
      %v6127 = vsel %vm2410, %v4815, %v5158
      %v6128 = vsel %vm2410, %v4816, %v5160
      %v6129 = vsel %vm2410, %v4817, %v5162
      %v6130 = vsel %vm2410, %v4818, %v5164
      %v6131 = vsel %vm2410, %v4819, %v5166
      %v6132 = vsel %vm2410, %v4820, %v5168
      %v6133 = vsel %vm2410, %v4821, %v5170
      %v6134 = vsel %vm2410, %v4822, %v5172
      %v6135 = vsel %vm2410, %v4823, %v5174
      %v6136 = vsel %vm2410, %v4824, %v5176
      %v6137 = vsel %vm279, %v6105, %v5242
      %v6138 = vsel %vm279, %v6106, %v5244
      %v6139 = vsel %vm279, %v6107, %v5246
      %v6140 = vsel %vm279, %v6108, %v5248
      %v6141 = vsel %vm279, %v6109, %v5250
      %v6142 = vsel %vm279, %v6110, %v5252
      %v6143 = vsel %vm279, %v6111, %v5254
      %v6144 = vsel %vm279, %v6112, %v5256
      %v6145 = vsel %vm279, %v6113, %v5258
      %v6146 = vsel %vm279, %v6114, %v5260
      %v6147 = vsel %vm279, %v6115, %v5262
      %v6148 = vsel %vm279, %v6116, %v5264
      %v6149 = vsel %vm279, %v6117, %v5266
      %v6150 = vsel %vm279, %v6118, %v5268
      %v6151 = vsel %vm279, %v6119, %v5270
      %v6152 = vsel %vm279, %v6120, %v5272
      %v6153 = vsel %vm279, %v6121, %v5274
      %v6154 = vsel %vm279, %v6122, %v5276
      %v6155 = vsel %vm279, %v6123, %v5278
      %v6156 = vsel %vm279, %v6124, %v5280
      %v6157 = vsel %vm279, %v6125, %v5282
      %v6158 = vsel %vm279, %v6126, %v5284
      %v6159 = vsel %vm279, %v6127, %v5286
      %v6160 = vsel %vm279, %v6128, %v5288
      %v6161 = vsel %vm279, %v6129, %v5290
      %v6162 = vsel %vm279, %v6130, %v5292
      %v6163 = vsel %vm279, %v6131, %v5294
      %v6164 = vsel %vm279, %v6132, %v5296
      %v6165 = vsel %vm279, %v6133, %v5298
      %v6166 = vsel %vm279, %v6134, %v5300
      %v6167 = vsel %vm279, %v6135, %v5302
      %v6168 = vsel %vm279, %v6136, %v5304
      %v6169 = vsel %vm4004, %v6137, %v5370
      %v6170 = vsel %vm4004, %v6138, %v5372
      %v6171 = vsel %vm4004, %v6139, %v5374
      %v6172 = vsel %vm4004, %v6140, %v5376
      %v6173 = vsel %vm4004, %v6141, %v5378
      %v6174 = vsel %vm4004, %v6142, %v5380
      %v6175 = vsel %vm4004, %v6143, %v5382
      %v6176 = vsel %vm4004, %v6144, %v5384
      %v6177 = vsel %vm4004, %v6145, %v5386
      %v6178 = vsel %vm4004, %v6146, %v5388
      %v6179 = vsel %vm4004, %v6147, %v5390
      %v6180 = vsel %vm4004, %v6148, %v5392
      %v6181 = vsel %vm4004, %v6149, %v5394
      %v6182 = vsel %vm4004, %v6150, %v5396
      %v6183 = vsel %vm4004, %v6151, %v5398
      %v6184 = vsel %vm4004, %v6152, %v5400
      %v6185 = vsel %vm4004, %v6153, %v5402
      %v6186 = vsel %vm4004, %v6154, %v5404
      %v6187 = vsel %vm4004, %v6155, %v5406
      %v6188 = vsel %vm4004, %v6156, %v5408
      %v6189 = vsel %vm4004, %v6157, %v5410
      %v6190 = vsel %vm4004, %v6158, %v5412
      %v6191 = vsel %vm4004, %v6159, %v5414
      %v6192 = vsel %vm4004, %v6160, %v5416
      %v6193 = vsel %vm4004, %v6161, %v5418
      %v6194 = vsel %vm4004, %v6162, %v5420
      %v6195 = vsel %vm4004, %v6163, %v5422
      %v6196 = vsel %vm4004, %v6164, %v5424
      %v6197 = vsel %vm4004, %v6165, %v5426
      %v6198 = vsel %vm4004, %v6166, %v5428
      %v6199 = vsel %vm4004, %v6167, %v5430
      %v6200 = vsel %vm4004, %v6168, %v5432
      %v6201 = vsel %vm1745, %v6169, %v5498
      %v6202 = vsel %vm1745, %v6170, %v5500
      %v6203 = vsel %vm1745, %v6171, %v5502
      %v6204 = vsel %vm1745, %v6172, %v5504
      %v6205 = vsel %vm1745, %v6173, %v5506
      %v6206 = vsel %vm1745, %v6174, %v5508
      %v6207 = vsel %vm1745, %v6175, %v5510
      %v6208 = vsel %vm1745, %v6176, %v5512
      %v6209 = vsel %vm1745, %v6177, %v5514
      %v6210 = vsel %vm1745, %v6178, %v5516
      %v6211 = vsel %vm1745, %v6179, %v5518
      %v6212 = vsel %vm1745, %v6180, %v5520
      %v6213 = vsel %vm1745, %v6181, %v5522
      %v6214 = vsel %vm1745, %v6182, %v5524
      %v6215 = vsel %vm1745, %v6183, %v5526
      %v6216 = vsel %vm1745, %v6184, %v5528
      %v6217 = vsel %vm1745, %v6185, %v5530
      %v6218 = vsel %vm1745, %v6186, %v5532
      %v6219 = vsel %vm1745, %v6187, %v5534
      %v6220 = vsel %vm1745, %v6188, %v5536
      %v6221 = vsel %vm1745, %v6189, %v5538
      %v6222 = vsel %vm1745, %v6190, %v5540
      %v6223 = vsel %vm1745, %v6191, %v5542
      %v6224 = vsel %vm1745, %v6192, %v5544
      %v6225 = vsel %vm1745, %v6193, %v5546
      %v6226 = vsel %vm1745, %v6194, %v5548
      %v6227 = vsel %vm1745, %v6195, %v5550
      %v6228 = vsel %vm1745, %v6196, %v5552
      %v6229 = vsel %vm1745, %v6197, %v5554
      %v6230 = vsel %vm1745, %v6198, %v5556
      %v6231 = vsel %vm1745, %v6199, %v5558
      %v6232 = vsel %vm1745, %v6200, %v5560
      %v6233 = vsel %vm4069, %v6201, %v5626
      %v6234 = vsel %vm4069, %v6202, %v5628
      %v6235 = vsel %vm4069, %v6203, %v5630
      %v6236 = vsel %vm4069, %v6204, %v5632
      %v6237 = vsel %vm4069, %v6205, %v5634
      %v6238 = vsel %vm4069, %v6206, %v5636
      %v6239 = vsel %vm4069, %v6207, %v5638
      %v6240 = vsel %vm4069, %v6208, %v5640
      %v6241 = vsel %vm4069, %v6209, %v5642
      %v6242 = vsel %vm4069, %v6210, %v5644
      %v6243 = vsel %vm4069, %v6211, %v5646
      %v6244 = vsel %vm4069, %v6212, %v5648
      %v6245 = vsel %vm4069, %v6213, %v5650
      %v6246 = vsel %vm4069, %v6214, %v5652
      %v6247 = vsel %vm4069, %v6215, %v5654
      %v6248 = vsel %vm4069, %v6216, %v5656
      %v6249 = vsel %vm4069, %v6217, %v5658
      %v6250 = vsel %vm4069, %v6218, %v5660
      %v6251 = vsel %vm4069, %v6219, %v5662
      %v6252 = vsel %vm4069, %v6220, %v5664
      %v6253 = vsel %vm4069, %v6221, %v5666
      %v6254 = vsel %vm4069, %v6222, %v5668
      %v6255 = vsel %vm4069, %v6223, %v5670
      %v6256 = vsel %vm4069, %v6224, %v5672
      %v6257 = vsel %vm4069, %v6225, %v5674
      %v6258 = vsel %vm4069, %v6226, %v5676
      %v6259 = vsel %vm4069, %v6227, %v5678
      %v6260 = vsel %vm4069, %v6228, %v5680
      %v6261 = vsel %vm4069, %v6229, %v5682
      %v6262 = vsel %vm4069, %v6230, %v5684
      %v6263 = vsel %vm4069, %v6231, %v5686
      %v6264 = vsel %vm4069, %v6232, %v5688
      %v6265 = vsel %vm1778, %v6233, %v5754
      %v6266 = vsel %vm1778, %v6234, %v5756
      %v6267 = vsel %vm1778, %v6235, %v5758
      %v6268 = vsel %vm1778, %v6236, %v5760
      %v6269 = vsel %vm1778, %v6237, %v5762
      %v6270 = vsel %vm1778, %v6238, %v5764
      %v6271 = vsel %vm1778, %v6239, %v5766
      %v6272 = vsel %vm1778, %v6240, %v5768
      %v6273 = vsel %vm1778, %v6241, %v5770
      %v6274 = vsel %vm1778, %v6242, %v5772
      %v6275 = vsel %vm1778, %v6243, %v5774
      %v6276 = vsel %vm1778, %v6244, %v5776
      %v6277 = vsel %vm1778, %v6245, %v5778
      %v6278 = vsel %vm1778, %v6246, %v5780
      %v6279 = vsel %vm1778, %v6247, %v5782
      %v6280 = vsel %vm1778, %v6248, %v5784
      %v6281 = vsel %vm1778, %v6249, %v5786
      %v6282 = vsel %vm1778, %v6250, %v5788
      %v6283 = vsel %vm1778, %v6251, %v5790
      %v6284 = vsel %vm1778, %v6252, %v5792
      %v6285 = vsel %vm1778, %v6253, %v5794
      %v6286 = vsel %vm1778, %v6254, %v5796
      %v6287 = vsel %vm1778, %v6255, %v5798
      %v6288 = vsel %vm1778, %v6256, %v5800
      %v6289 = vsel %vm1778, %v6257, %v5802
      %v6290 = vsel %vm1778, %v6258, %v5804
      %v6291 = vsel %vm1778, %v6259, %v5806
      %v6292 = vsel %vm1778, %v6260, %v5808
      %v6293 = vsel %vm1778, %v6261, %v5810
      %v6294 = vsel %vm1778, %v6262, %v5812
      %v6295 = vsel %vm1778, %v6263, %v5814
      %v6296 = vsel %vm1778, %v6264, %v5816
      %v6297 = vsel %vm4134, %v6265, %v5882
      %v6298 = vsel %vm4134, %v6266, %v5884
      %v6299 = vsel %vm4134, %v6267, %v5886
      %v6300 = vsel %vm4134, %v6268, %v5888
      %v6301 = vsel %vm4134, %v6269, %v5890
      %v6302 = vsel %vm4134, %v6270, %v5892
      %v6303 = vsel %vm4134, %v6271, %v5894
      %v6304 = vsel %vm4134, %v6272, %v5896
      %v6305 = vsel %vm4134, %v6273, %v5898
      %v6306 = vsel %vm4134, %v6274, %v5900
      %v6307 = vsel %vm4134, %v6275, %v5902
      %v6308 = vsel %vm4134, %v6276, %v5904
      %v6309 = vsel %vm4134, %v6277, %v5906
      %v6310 = vsel %vm4134, %v6278, %v5908
      %v6311 = vsel %vm4134, %v6279, %v5910
      %v6312 = vsel %vm4134, %v6280, %v5912
      %v6313 = vsel %vm4134, %v6281, %v5914
      %v6314 = vsel %vm4134, %v6282, %v5916
      %v6315 = vsel %vm4134, %v6283, %v5918
      %v6316 = vsel %vm4134, %v6284, %v5920
      %v6317 = vsel %vm4134, %v6285, %v5922
      %v6318 = vsel %vm4134, %v6286, %v5924
      %v6319 = vsel %vm4134, %v6287, %v5926
      %v6320 = vsel %vm4134, %v6288, %v5928
      %v6321 = vsel %vm4134, %v6289, %v5930
      %v6322 = vsel %vm4134, %v6290, %v5932
      %v6323 = vsel %vm4134, %v6291, %v5934
      %v6324 = vsel %vm4134, %v6292, %v5936
      %v6325 = vsel %vm4134, %v6293, %v5938
      %v6326 = vsel %vm4134, %v6294, %v5940
      %v6327 = vsel %vm4134, %v6295, %v5942
      %v6328 = vsel %vm4134, %v6296, %v5944
      %v6329 = vsel %vm1811, %v6297, %v6010
      %v6330 = vsel %vm1811, %v6298, %v6012
      %v6331 = vsel %vm1811, %v6299, %v6014
      %v6332 = vsel %vm1811, %v6300, %v6016
      %v6333 = vsel %vm1811, %v6301, %v6018
      %v6334 = vsel %vm1811, %v6302, %v6020
      %v6335 = vsel %vm1811, %v6303, %v6022
      %v6336 = vsel %vm1811, %v6304, %v6024
      %v6337 = vsel %vm1811, %v6305, %v6026
      %v6338 = vsel %vm1811, %v6306, %v6028
      %v6339 = vsel %vm1811, %v6307, %v6030
      %v6340 = vsel %vm1811, %v6308, %v6032
      %v6341 = vsel %vm1811, %v6309, %v6034
      %v6342 = vsel %vm1811, %v6310, %v6036
      %v6343 = vsel %vm1811, %v6311, %v6038
      %v6344 = vsel %vm1811, %v6312, %v6040
      %v6345 = vsel %vm1811, %v6313, %v6042
      %v6346 = vsel %vm1811, %v6314, %v6044
      %v6347 = vsel %vm1811, %v6315, %v6046
      %v6348 = vsel %vm1811, %v6316, %v6048
      %v6349 = vsel %vm1811, %v6317, %v6050
      %v6350 = vsel %vm1811, %v6318, %v6052
      %v6351 = vsel %vm1811, %v6319, %v6054
      %v6352 = vsel %vm1811, %v6320, %v6056
      %v6353 = vsel %vm1811, %v6321, %v6058
      %v6354 = vsel %vm1811, %v6322, %v6060
      %v6355 = vsel %vm1811, %v6323, %v6062
      %v6356 = vsel %vm1811, %v6324, %v6064
      %v6357 = vsel %vm1811, %v6325, %v6066
      %v6358 = vsel %vm1811, %v6326, %v6068
      %v6359 = vsel %vm1811, %v6327, %v6070
      %v6360 = vsel %vm1811, %v6328, %v6072
      %v6361 = vld [vmem:[%s5] sm:$0xff]
      %v6362 = vld [vmem:[%s5 + $0x8] sm:$0xff]
      %v6363 = vld [vmem:[%s5 + $0x10] sm:$0xff]
      %v6364 = vld [vmem:[%s5 + $0x18] sm:$0xff]
      %v6365 = vld [vmem:[%s5 + $0x20] sm:$0xf]
      %v6366 = vld [vmem:[%s6] sm:$0x1]
      %v6368 = vlaneseq
      %v6369 = vshrl.u32 %v6368, 7
      %v6370 = vsub.s32 0, %v6369
      %v6371 = vrot.slane %v6366, %v6370
      %v6374 = vsel %vm4211, %v6329, 0
      %v6377 = vsel %vm4211, %v6330, 0
      %v6380 = vsel %vm4211, %v6331, 0
      %v6383 = vsel %vm4211, %v6332, 0
      %v6386 = vsel %vm4211, %v6333, 0
      %v6389 = vsel %vm4211, %v6334, 0
      %v6392 = vsel %vm4211, %v6335, 0
      %v6395 = vsel %vm4211, %v6336, 0
      %v6398 = vsel %vm4211, %v6337, 0
      %v6401 = vsel %vm4211, %v6338, 0
      %v6404 = vsel %vm4211, %v6339, 0
      %v6407 = vsel %vm4211, %v6340, 0
      %v6410 = vsel %vm4211, %v6341, 0
      %v6413 = vsel %vm4211, %v6342, 0
      %v6416 = vsel %vm4211, %v6343, 0
      %v6419 = vsel %vm4211, %v6344, 0
      %v6422 = vsel %vm4211, %v6345, 0
      %v6425 = vsel %vm4211, %v6346, 0
      %v6428 = vsel %vm4211, %v6347, 0
      %v6431 = vsel %vm4211, %v6348, 0
      %v6434 = vsel %vm4211, %v6349, 0
      %v6437 = vsel %vm4211, %v6350, 0
      %v6440 = vsel %vm4211, %v6351, 0
      %v6443 = vsel %vm4211, %v6352, 0
      %v6446 = vsel %vm4211, %v6353, 0
      %v6449 = vsel %vm4211, %v6354, 0
      %v6452 = vsel %vm4211, %v6355, 0
      %v6455 = vsel %vm4211, %v6356, 0
      %v6458 = vsel %vm4211, %v6357, 0
      %v6461 = vsel %vm4211, %v6358, 0
      %v6464 = vsel %vm4211, %v6359, 0
      %v6467 = vsel %vm4211, %v6360, 0
      %v6470 = vsel %vm4308, %v6365, 0
      %6472 = vmatprep.subr.mxu0 0.0
      %6473 = vmatpush1.msra.mxu0 0.0
      %6474 = vmatprep.subr.mxu0 0.0
      %6475 = vmatpush1.msra.mxu0 0.0
      %6476 = vmatprep.subr.mxu0 0.0
      %6477 = vmatpush1.msra.mxu0 0.0
      %6478 = vmatprep.subr.mxu0 0.0
      %6479 = vmatpush1.msra.mxu0 0.0
      %6480 = vmatprep.subr.mxu0 0.0
      %6481 = vmatpush1.msra.mxu0 0.0
      %6482 = vmatprep.subr.mxu0 0.0
      %6483 = vmatpush1.msra.mxu0 0.0
      %6484 = vmatprep.subr.mxu0 0.0
      %6485 = vmatpush1.msra.mxu0 0.0
      %6486 = vmatprep.subr.mxu0 0.0
      %6487 = vmatpush1.msra.mxu0 0.0
      %6488 = vmatprep.subr.mxu0 0.0
      %6489 = vmatpush1.msra.mxu0 0.0
      %6490 = vmatprep.subr.mxu0 0.0
      %6491 = vmatpush1.msra.mxu0 0.0
      %6492 = vmatprep.subr.mxu0 0.0
      %6493 = vmatpush1.msra.mxu0 0.0
      %6494 = vmatprep.subr.mxu0 0.0
      %6495 = vmatpush1.msra.mxu0 %v6470
      %6496 = vmatprep.subr.mxu0 0.0
      %6497 = vmatpush1.msra.mxu0 %v6364
      %6498 = vmatprep.subr.mxu0 0.0
      %6499 = vmatpush1.msra.mxu0 %v6363
      %6500 = vmatprep.subr.mxu0 0.0
      %6501 = vmatpush1.msra.mxu0 %v6362
      %6502 = vmatprep.subr.mxu0 0.0
      %6503 = vmatpush1.msra.mxu0 %v6361
      %6504 = vmatprep.subr.mxu0 0.0
      %6505 = vmatpush2.msra.mxu0 0.0
      %6506 = vmatprep.subr.mxu0 0.0
      %6507 = vmatpush2.msra.mxu0 0.0
      %6508 = vmatprep.subr.mxu0 0.0
      %6509 = vmatpush2.msra.mxu0 0.0
      %6510 = vmatprep.subr.mxu0 0.0
      %6511 = vmatpush2.msra.mxu0 0.0
      %6512 = vmatprep.subr.mxu0 0.0
      %6513 = vmatpush2.msra.mxu0 0.0
      %6514 = vmatprep.subr.mxu0 0.0
      %6515 = vmatpush2.msra.mxu0 0.0
      %6516 = vmatprep.subr.mxu0 0.0
      %6517 = vmatpush2.msra.mxu0 0.0
      %6518 = vmatprep.subr.mxu0 0.0
      %6519 = vmatpush2.msra.mxu0 0.0
      %6520 = vmatprep.subr.mxu0 0.0
      %6521 = vmatpush2.msra.mxu0 0.0
      %6522 = vmatprep.subr.mxu0 0.0
      %6523 = vmatpush2.msra.mxu0 0.0
      %6524 = vmatprep.subr.mxu0 0.0
      %6525 = vmatpush2.msra.mxu0 0.0
      %6526 = vmatprep.subr.mxu0 0.0
      %6527 = vmatpush2.msra.mxu0 0.0
      %6528 = vmatprep.subr.mxu0 0.0
      %6529 = vmatpush2.msra.mxu0 0.0
      %6530 = vmatprep.subr.mxu0 0.0
      %6531 = vmatpush2.msra.mxu0 0.0
      %6532 = vmatprep.subr.mxu0 0.0
      %6533 = vmatpush2.msra.mxu0 0.0
      %6534 = vmatprep.subr.mxu0 0.0
      %6535 = vmatpush2.msra.mxu0 0.0
      %6536 = vmatprep.mubr.f32.mxu0 0.0
      %6537 = vmatmul.mubr.f32.gmra.mxu0 %v6374
      %v6538 = vpop.f32.mrf.mxu0
      %v6539 = vadd.f32 %v6371, %v6538
      %v6540 = vpop.f32.mrf.mxu0
      %6541 = vmatprep.mubr.f32.mxu0 0.0
      %6542 = vmatmul.mubr.f32.gmra.mxu0 %v6377
      %v6543 = vpop.f32.mrf.mxu0
      %v6544 = vadd.f32 %v6371, %v6543
      %v6545 = vpop.f32.mrf.mxu0
      %6546 = vmatprep.mubr.f32.mxu0 0.0
      %6547 = vmatmul.mubr.f32.gmra.mxu0 %v6380
      %v6548 = vpop.f32.mrf.mxu0
      %v6549 = vadd.f32 %v6371, %v6548
      %v6550 = vpop.f32.mrf.mxu0
      %6551 = vmatprep.mubr.f32.mxu0 0.0
      %6552 = vmatmul.mubr.f32.gmra.mxu0 %v6383
      %v6553 = vpop.f32.mrf.mxu0
      %v6554 = vadd.f32 %v6371, %v6553
      %v6555 = vpop.f32.mrf.mxu0
      %6556 = vmatprep.mubr.f32.mxu0 0.0
      %6557 = vmatmul.mubr.f32.gmra.mxu0 %v6386
      %v6558 = vpop.f32.mrf.mxu0
      %v6559 = vadd.f32 %v6371, %v6558
      %v6560 = vpop.f32.mrf.mxu0
      %6561 = vmatprep.mubr.f32.mxu0 0.0
      %6562 = vmatmul.mubr.f32.gmra.mxu0 %v6389
      %v6563 = vpop.f32.mrf.mxu0
      %v6564 = vadd.f32 %v6371, %v6563
      %v6565 = vpop.f32.mrf.mxu0
      %6566 = vmatprep.mubr.f32.mxu0 0.0
      %6567 = vmatmul.mubr.f32.gmra.mxu0 %v6392
      %v6568 = vpop.f32.mrf.mxu0
      %v6569 = vadd.f32 %v6371, %v6568
      %v6570 = vpop.f32.mrf.mxu0
      %6571 = vmatprep.mubr.f32.mxu0 0.0
      %6572 = vmatmul.mubr.f32.gmra.mxu0 %v6395
      %v6573 = vpop.f32.mrf.mxu0
      %v6574 = vadd.f32 %v6371, %v6573
      %v6575 = vpop.f32.mrf.mxu0
      %6576 = vmatprep.mubr.f32.mxu0 0.0
      %6577 = vmatmul.mubr.f32.gmra.mxu0 %v6398
      %v6578 = vpop.f32.mrf.mxu0
      %v6579 = vadd.f32 %v6371, %v6578
      %v6580 = vpop.f32.mrf.mxu0
      %6581 = vmatprep.mubr.f32.mxu0 0.0
      %6582 = vmatmul.mubr.f32.gmra.mxu0 %v6401
      %v6583 = vpop.f32.mrf.mxu0
      %v6584 = vadd.f32 %v6371, %v6583
      %v6585 = vpop.f32.mrf.mxu0
      %6586 = vmatprep.mubr.f32.mxu0 0.0
      %6587 = vmatmul.mubr.f32.gmra.mxu0 %v6404
      %v6588 = vpop.f32.mrf.mxu0
      %v6589 = vadd.f32 %v6371, %v6588
      %v6590 = vpop.f32.mrf.mxu0
      %6591 = vmatprep.mubr.f32.mxu0 0.0
      %6592 = vmatmul.mubr.f32.gmra.mxu0 %v6407
      %v6593 = vpop.f32.mrf.mxu0
      %v6594 = vadd.f32 %v6371, %v6593
      %v6595 = vpop.f32.mrf.mxu0
      %6596 = vmatprep.mubr.f32.mxu0 0.0
      %6597 = vmatmul.mubr.f32.gmra.mxu0 %v6410
      %v6598 = vpop.f32.mrf.mxu0
      %v6599 = vadd.f32 %v6371, %v6598
      %v6600 = vpop.f32.mrf.mxu0
      %6601 = vmatprep.mubr.f32.mxu0 0.0
      %6602 = vmatmul.mubr.f32.gmra.mxu0 %v6413
      %v6603 = vpop.f32.mrf.mxu0
      %v6604 = vadd.f32 %v6371, %v6603
      %v6605 = vpop.f32.mrf.mxu0
      %6606 = vmatprep.mubr.f32.mxu0 0.0
      %6607 = vmatmul.mubr.f32.gmra.mxu0 %v6416
      %v6608 = vpop.f32.mrf.mxu0
      %v6609 = vadd.f32 %v6371, %v6608
      %v6610 = vpop.f32.mrf.mxu0
      %6611 = vmatprep.mubr.f32.mxu0 0.0
      %6612 = vmatmul.mubr.f32.gmra.mxu0 %v6419
      %v6613 = vpop.f32.mrf.mxu0
      %v6614 = vadd.f32 %v6371, %v6613
      %v6615 = vpop.f32.mrf.mxu0
      %6616 = vmatprep.mubr.f32.mxu0 0.0
      %6617 = vmatmul.mubr.f32.gmra.mxu0 %v6422
      %v6618 = vpop.f32.mrf.mxu0
      %v6619 = vadd.f32 %v6371, %v6618
      %v6620 = vpop.f32.mrf.mxu0
      %6621 = vmatprep.mubr.f32.mxu0 0.0
      %6622 = vmatmul.mubr.f32.gmra.mxu0 %v6425
      %v6623 = vpop.f32.mrf.mxu0
      %v6624 = vadd.f32 %v6371, %v6623
      %v6625 = vpop.f32.mrf.mxu0
      %6626 = vmatprep.mubr.f32.mxu0 0.0
      %6627 = vmatmul.mubr.f32.gmra.mxu0 %v6428
      %v6628 = vpop.f32.mrf.mxu0
      %v6629 = vadd.f32 %v6371, %v6628
      %v6630 = vpop.f32.mrf.mxu0
      %6631 = vmatprep.mubr.f32.mxu0 0.0
      %6632 = vmatmul.mubr.f32.gmra.mxu0 %v6431
      %v6633 = vpop.f32.mrf.mxu0
      %v6634 = vadd.f32 %v6371, %v6633
      %v6635 = vpop.f32.mrf.mxu0
      %6636 = vmatprep.mubr.f32.mxu0 0.0
      %6637 = vmatmul.mubr.f32.gmra.mxu0 %v6434
      %v6638 = vpop.f32.mrf.mxu0
      %v6639 = vadd.f32 %v6371, %v6638
      %v6640 = vpop.f32.mrf.mxu0
      %6641 = vmatprep.mubr.f32.mxu0 0.0
      %6642 = vmatmul.mubr.f32.gmra.mxu0 %v6437
      %v6643 = vpop.f32.mrf.mxu0
      %v6644 = vadd.f32 %v6371, %v6643
      %v6645 = vpop.f32.mrf.mxu0
      %6646 = vmatprep.mubr.f32.mxu0 0.0
      %6647 = vmatmul.mubr.f32.gmra.mxu0 %v6440
      %v6648 = vpop.f32.mrf.mxu0
      %v6649 = vadd.f32 %v6371, %v6648
      %v6650 = vpop.f32.mrf.mxu0
      %6651 = vmatprep.mubr.f32.mxu0 0.0
      %6652 = vmatmul.mubr.f32.gmra.mxu0 %v6443
      %v6653 = vpop.f32.mrf.mxu0
      %v6654 = vadd.f32 %v6371, %v6653
      %v6655 = vpop.f32.mrf.mxu0
      %6656 = vmatprep.mubr.f32.mxu0 0.0
      %6657 = vmatmul.mubr.f32.gmra.mxu0 %v6446
      %v6658 = vpop.f32.mrf.mxu0
      %v6659 = vadd.f32 %v6371, %v6658
      %v6660 = vpop.f32.mrf.mxu0
      %6661 = vmatprep.mubr.f32.mxu0 0.0
      %6662 = vmatmul.mubr.f32.gmra.mxu0 %v6449
      %v6663 = vpop.f32.mrf.mxu0
      %v6664 = vadd.f32 %v6371, %v6663
      %v6665 = vpop.f32.mrf.mxu0
      %6666 = vmatprep.mubr.f32.mxu0 0.0
      %6667 = vmatmul.mubr.f32.gmra.mxu0 %v6452
      %v6668 = vpop.f32.mrf.mxu0
      %v6669 = vadd.f32 %v6371, %v6668
      %v6670 = vpop.f32.mrf.mxu0
      %6671 = vmatprep.mubr.f32.mxu0 0.0
      %6672 = vmatmul.mubr.f32.gmra.mxu0 %v6455
      %v6673 = vpop.f32.mrf.mxu0
      %v6674 = vadd.f32 %v6371, %v6673
      %v6675 = vpop.f32.mrf.mxu0
      %6676 = vmatprep.mubr.f32.mxu0 0.0
      %6677 = vmatmul.mubr.f32.gmra.mxu0 %v6458
      %v6678 = vpop.f32.mrf.mxu0
      %v6679 = vadd.f32 %v6371, %v6678
      %v6680 = vpop.f32.mrf.mxu0
      %6681 = vmatprep.mubr.f32.mxu0 0.0
      %6682 = vmatmul.mubr.f32.gmra.mxu0 %v6461
      %v6683 = vpop.f32.mrf.mxu0
      %v6684 = vadd.f32 %v6371, %v6683
      %v6685 = vpop.f32.mrf.mxu0
      %6686 = vmatprep.mubr.f32.mxu0 0.0
      %6687 = vmatmul.mubr.f32.gmra.mxu0 %v6464
      %v6688 = vpop.f32.mrf.mxu0
      %v6689 = vadd.f32 %v6371, %v6688
      %v6690 = vpop.f32.mrf.mxu0
      %6691 = vmatprep.mubr.f32.mxu0 0.0
      %6692 = vmatmul.mubr.f32.gmra.mxu0 %v6467
      %v6693 = vpop.f32.mrf.mxu0
      %v6694 = vadd.f32 %v6371, %v6693
      %v6695 = vpop.f32.mrf.mxu0
      %6696 = vdwg.mxu0
      %6729 = vrot.lane.b32.xlu0 %v4379, 8
      %v6730 = vpop.permute.xlu0 %6729
      %6731 = vrot.lane.b32.xlu0 %v4384, 8
      %v6732 = vpop.permute.xlu0 %6731
      %6733 = vrot.lane.b32.xlu0 %v4389, 8
      %v6734 = vpop.permute.xlu0 %6733
      %6735 = vrot.lane.b32.xlu0 %v4394, 8
      %v6736 = vpop.permute.xlu0 %6735
      %6737 = vrot.lane.b32.xlu0 %v4399, 8
      %v6738 = vpop.permute.xlu0 %6737
      %6739 = vrot.lane.b32.xlu0 %v4404, 8
      %v6740 = vpop.permute.xlu0 %6739
      %6741 = vrot.lane.b32.xlu0 %v4409, 8
      %v6742 = vpop.permute.xlu0 %6741
      %6743 = vrot.lane.b32.xlu0 %v4414, 8
      %v6744 = vpop.permute.xlu0 %6743
      %6745 = vrot.lane.b32.xlu0 %v4419, 8
      %v6746 = vpop.permute.xlu0 %6745
      %6747 = vrot.lane.b32.xlu0 %v4424, 8
      %v6748 = vpop.permute.xlu0 %6747
      %6749 = vrot.lane.b32.xlu0 %v4429, 8
      %v6750 = vpop.permute.xlu0 %6749
      %6751 = vrot.lane.b32.xlu0 %v4434, 8
      %v6752 = vpop.permute.xlu0 %6751
      %6753 = vrot.lane.b32.xlu0 %v4439, 8
      %v6754 = vpop.permute.xlu0 %6753
      %6755 = vrot.lane.b32.xlu0 %v4444, 8
      %v6756 = vpop.permute.xlu0 %6755
      %6757 = vrot.lane.b32.xlu0 %v4449, 8
      %v6758 = vpop.permute.xlu0 %6757
      %6759 = vrot.lane.b32.xlu0 %v4454, 8
      %v6760 = vpop.permute.xlu0 %6759
      %6761 = vrot.lane.b32.xlu0 %v4459, 8
      %v6762 = vpop.permute.xlu0 %6761
      %6763 = vrot.lane.b32.xlu0 %v4464, 8
      %v6764 = vpop.permute.xlu0 %6763
      %6765 = vrot.lane.b32.xlu0 %v4469, 8
      %v6766 = vpop.permute.xlu0 %6765
      %6767 = vrot.lane.b32.xlu0 %v4474, 8
      %v6768 = vpop.permute.xlu0 %6767
      %6769 = vrot.lane.b32.xlu0 %v4479, 8
      %v6770 = vpop.permute.xlu0 %6769
      %6771 = vrot.lane.b32.xlu0 %v4484, 8
      %v6772 = vpop.permute.xlu0 %6771
      %6773 = vrot.lane.b32.xlu0 %v4489, 8
      %v6774 = vpop.permute.xlu0 %6773
      %6775 = vrot.lane.b32.xlu0 %v4494, 8
      %v6776 = vpop.permute.xlu0 %6775
      %6777 = vrot.lane.b32.xlu0 %v4499, 8
      %v6778 = vpop.permute.xlu0 %6777
      %6779 = vrot.lane.b32.xlu0 %v4504, 8
      %v6780 = vpop.permute.xlu0 %6779
      %6781 = vrot.lane.b32.xlu0 %v4509, 8
      %v6782 = vpop.permute.xlu0 %6781
      %6783 = vrot.lane.b32.xlu0 %v4514, 8
      %v6784 = vpop.permute.xlu0 %6783
      %6785 = vrot.lane.b32.xlu0 %v4519, 8
      %v6786 = vpop.permute.xlu0 %6785
      %6787 = vrot.lane.b32.xlu0 %v4524, 8
      %v6788 = vpop.permute.xlu0 %6787
      %6789 = vrot.lane.b32.xlu0 %v4529, 8
      %v6790 = vpop.permute.xlu0 %6789
      %6791 = vrot.lane.b32.xlu0 %v4534, 8
      %v6792 = vpop.permute.xlu0 %6791
      %6857 = vrot.lane.b32.xlu0 %v6539, 12
      %v6858 = vpop.permute.xlu0 %6857
      %6859 = vrot.lane.b32.xlu0 %v6544, 12
      %v6860 = vpop.permute.xlu0 %6859
      %6861 = vrot.lane.b32.xlu0 %v6549, 12
      %v6862 = vpop.permute.xlu0 %6861
      %6863 = vrot.lane.b32.xlu0 %v6554, 12
      %v6864 = vpop.permute.xlu0 %6863
      %6865 = vrot.lane.b32.xlu0 %v6559, 12
      %v6866 = vpop.permute.xlu0 %6865
      %6867 = vrot.lane.b32.xlu0 %v6564, 12
      %v6868 = vpop.permute.xlu0 %6867
      %6869 = vrot.lane.b32.xlu0 %v6569, 12
      %v6870 = vpop.permute.xlu0 %6869
      %6871 = vrot.lane.b32.xlu0 %v6574, 12
      %v6872 = vpop.permute.xlu0 %6871
      %6873 = vrot.lane.b32.xlu0 %v6579, 12
      %v6874 = vpop.permute.xlu0 %6873
      %6875 = vrot.lane.b32.xlu0 %v6584, 12
      %v6876 = vpop.permute.xlu0 %6875
      %6877 = vrot.lane.b32.xlu0 %v6589, 12
      %v6878 = vpop.permute.xlu0 %6877
      %6879 = vrot.lane.b32.xlu0 %v6594, 12
      %v6880 = vpop.permute.xlu0 %6879
      %6881 = vrot.lane.b32.xlu0 %v6599, 12
      %v6882 = vpop.permute.xlu0 %6881
      %6883 = vrot.lane.b32.xlu0 %v6604, 12
      %v6884 = vpop.permute.xlu0 %6883
      %6885 = vrot.lane.b32.xlu0 %v6609, 12
      %v6886 = vpop.permute.xlu0 %6885
      %6887 = vrot.lane.b32.xlu0 %v6614, 12
      %v6888 = vpop.permute.xlu0 %6887
      %6889 = vrot.lane.b32.xlu0 %v6619, 12
      %v6890 = vpop.permute.xlu0 %6889
      %6891 = vrot.lane.b32.xlu0 %v6624, 12
      %v6892 = vpop.permute.xlu0 %6891
      %6893 = vrot.lane.b32.xlu0 %v6629, 12
      %v6894 = vpop.permute.xlu0 %6893
      %6895 = vrot.lane.b32.xlu0 %v6634, 12
      %v6896 = vpop.permute.xlu0 %6895
      %6897 = vrot.lane.b32.xlu0 %v6639, 12
      %v6898 = vpop.permute.xlu0 %6897
      %6899 = vrot.lane.b32.xlu0 %v6644, 12
      %v6900 = vpop.permute.xlu0 %6899
      %6901 = vrot.lane.b32.xlu0 %v6649, 12
      %v6902 = vpop.permute.xlu0 %6901
      %6903 = vrot.lane.b32.xlu0 %v6654, 12
      %v6904 = vpop.permute.xlu0 %6903
      %6905 = vrot.lane.b32.xlu0 %v6659, 12
      %v6906 = vpop.permute.xlu0 %6905
      %6907 = vrot.lane.b32.xlu0 %v6664, 12
      %v6908 = vpop.permute.xlu0 %6907
      %6909 = vrot.lane.b32.xlu0 %v6669, 12
      %v6910 = vpop.permute.xlu0 %6909
      %6911 = vrot.lane.b32.xlu0 %v6674, 12
      %v6912 = vpop.permute.xlu0 %6911
      %6913 = vrot.lane.b32.xlu0 %v6679, 12
      %v6914 = vpop.permute.xlu0 %6913
      %6915 = vrot.lane.b32.xlu0 %v6684, 12
      %v6916 = vpop.permute.xlu0 %6915
      %6917 = vrot.lane.b32.xlu0 %v6689, 12
      %v6918 = vpop.permute.xlu0 %6917
      %6919 = vrot.lane.b32.xlu0 %v6694, 12
      %v6920 = vpop.permute.xlu0 %6919
      %v6953 = vsel %vm279, %v2156, %v6730
      %v6954 = vsel %vm279, %v2161, %v6732
      %v6955 = vsel %vm279, %v2166, %v6734
      %v6956 = vsel %vm279, %v2171, %v6736
      %v6957 = vsel %vm279, %v2176, %v6738
      %v6958 = vsel %vm279, %v2181, %v6740
      %v6959 = vsel %vm279, %v2186, %v6742
      %v6960 = vsel %vm279, %v2191, %v6744
      %v6961 = vsel %vm279, %v2196, %v6746
      %v6962 = vsel %vm279, %v2201, %v6748
      %v6963 = vsel %vm279, %v2206, %v6750
      %v6964 = vsel %vm279, %v2211, %v6752
      %v6965 = vsel %vm279, %v2216, %v6754
      %v6966 = vsel %vm279, %v2221, %v6756
      %v6967 = vsel %vm279, %v2226, %v6758
      %v6968 = vsel %vm279, %v2231, %v6760
      %v6969 = vsel %vm279, %v2236, %v6762
      %v6970 = vsel %vm279, %v2241, %v6764
      %v6971 = vsel %vm279, %v2246, %v6766
      %v6972 = vsel %vm279, %v2251, %v6768
      %v6973 = vsel %vm279, %v2256, %v6770
      %v6974 = vsel %vm279, %v2261, %v6772
      %v6975 = vsel %vm279, %v2266, %v6774
      %v6976 = vsel %vm279, %v2271, %v6776
      %v6977 = vsel %vm279, %v2276, %v6778
      %v6978 = vsel %vm279, %v2281, %v6780
      %v6979 = vsel %vm279, %v2286, %v6782
      %v6980 = vsel %vm279, %v2291, %v6784
      %v6981 = vsel %vm279, %v2296, %v6786
      %v6982 = vsel %vm279, %v2301, %v6788
      %v6983 = vsel %vm279, %v2306, %v6790
      %v6984 = vsel %vm279, %v2311, %v6792
      %v6985 = vsel %vm4004, %v6953, %v6858
      %v6986 = vsel %vm4004, %v6954, %v6860
      %v6987 = vsel %vm4004, %v6955, %v6862
      %v6988 = vsel %vm4004, %v6956, %v6864
      %v6989 = vsel %vm4004, %v6957, %v6866
      %v6990 = vsel %vm4004, %v6958, %v6868
      %v6991 = vsel %vm4004, %v6959, %v6870
      %v6992 = vsel %vm4004, %v6960, %v6872
      %v6993 = vsel %vm4004, %v6961, %v6874
      %v6994 = vsel %vm4004, %v6962, %v6876
      %v6995 = vsel %vm4004, %v6963, %v6878
      %v6996 = vsel %vm4004, %v6964, %v6880
      %v6997 = vsel %vm4004, %v6965, %v6882
      %v6998 = vsel %vm4004, %v6966, %v6884
      %v6999 = vsel %vm4004, %v6967, %v6886
      %v7000 = vsel %vm4004, %v6968, %v6888
      %v7001 = vsel %vm4004, %v6969, %v6890
      %v7002 = vsel %vm4004, %v6970, %v6892
      %v7003 = vsel %vm4004, %v6971, %v6894
      %v7004 = vsel %vm4004, %v6972, %v6896
      %v7005 = vsel %vm4004, %v6973, %v6898
      %v7006 = vsel %vm4004, %v6974, %v6900
      %v7007 = vsel %vm4004, %v6975, %v6902
      %v7008 = vsel %vm4004, %v6976, %v6904
      %v7009 = vsel %vm4004, %v6977, %v6906
      %v7010 = vsel %vm4004, %v6978, %v6908
      %v7011 = vsel %vm4004, %v6979, %v6910
      %v7012 = vsel %vm4004, %v6980, %v6912
      %v7013 = vsel %vm4004, %v6981, %v6914
      %v7014 = vsel %vm4004, %v6982, %v6916
      %v7015 = vsel %vm4004, %v6983, %v6918
      %v7016 = vsel %vm4004, %v6984, %v6920
      %v7017 = vmax.f32 %v6985, 0.0
      %v7018 = vmax.f32 %v6986, 0.0
      %v7019 = vmax.f32 %v6987, 0.0
      %v7020 = vmax.f32 %v6988, 0.0
      %v7021 = vmax.f32 %v6989, 0.0
      %v7022 = vmax.f32 %v6990, 0.0
      %v7023 = vmax.f32 %v6991, 0.0
      %v7024 = vmax.f32 %v6992, 0.0
      %v7025 = vmax.f32 %v6993, 0.0
      %v7026 = vmax.f32 %v6994, 0.0
      %v7027 = vmax.f32 %v6995, 0.0
      %v7028 = vmax.f32 %v6996, 0.0
      %v7029 = vmax.f32 %v6997, 0.0
      %v7030 = vmax.f32 %v6998, 0.0
      %v7031 = vmax.f32 %v6999, 0.0
      %v7032 = vmax.f32 %v7000, 0.0
      %v7033 = vmax.f32 %v7001, 0.0
      %v7034 = vmax.f32 %v7002, 0.0
      %v7035 = vmax.f32 %v7003, 0.0
      %v7036 = vmax.f32 %v7004, 0.0
      %v7037 = vmax.f32 %v7005, 0.0
      %v7038 = vmax.f32 %v7006, 0.0
      %v7039 = vmax.f32 %v7007, 0.0
      %v7040 = vmax.f32 %v7008, 0.0
      %v7041 = vmax.f32 %v7009, 0.0
      %v7042 = vmax.f32 %v7010, 0.0
      %v7043 = vmax.f32 %v7011, 0.0
      %v7044 = vmax.f32 %v7012, 0.0
      %v7045 = vmax.f32 %v7013, 0.0
      %v7046 = vmax.f32 %v7014, 0.0
      %v7047 = vmax.f32 %v7015, 0.0
      %v7048 = vmax.f32 %v7016, 0.0
      %7049 = vst.msk [vmem:[%s278] sm:$0xff] %vm1745, %v7017
      %7050 = vst.msk [vmem:[%s278 + $0x8] sm:$0xff] %vm1745, %v7018
      %7051 = vst.msk [vmem:[%s278 + $0x10] sm:$0xff] %vm1745, %v7019
      %7052 = vst.msk [vmem:[%s278 + $0x18] sm:$0xff] %vm1745, %v7020
      %7053 = vst.msk [vmem:[%s278 + $0x20] sm:$0xff] %vm1745, %v7021
      %7054 = vst.msk [vmem:[%s278 + $0x28] sm:$0xff] %vm1745, %v7022
      %7055 = vst.msk [vmem:[%s278 + $0x30] sm:$0xff] %vm1745, %v7023
      %7056 = vst.msk [vmem:[%s278 + $0x38] sm:$0xff] %vm1745, %v7024
      %7057 = vst.msk [vmem:[%s278 + $0x40] sm:$0xff] %vm1745, %v7025
      %7058 = vst.msk [vmem:[%s278 + $0x48] sm:$0xff] %vm1745, %v7026
      %7059 = vst.msk [vmem:[%s278 + $0x50] sm:$0xff] %vm1745, %v7027
      %7060 = vst.msk [vmem:[%s278 + $0x58] sm:$0xff] %vm1745, %v7028
      %7061 = vst.msk [vmem:[%s278 + $0x60] sm:$0xff] %vm1745, %v7029
      %7062 = vst.msk [vmem:[%s278 + $0x68] sm:$0xff] %vm1745, %v7030
      %7063 = vst.msk [vmem:[%s278 + $0x70] sm:$0xff] %vm1745, %v7031
      %7064 = vst.msk [vmem:[%s278 + $0x78] sm:$0xff] %vm1745, %v7032
      %7065 = vst.msk [vmem:[%s278 + $0x80] sm:$0xff] %vm1745, %v7033
      %7066 = vst.msk [vmem:[%s278 + $0x88] sm:$0xff] %vm1745, %v7034
      %7067 = vst.msk [vmem:[%s278 + $0x90] sm:$0xff] %vm1745, %v7035
      %7068 = vst.msk [vmem:[%s278 + $0x98] sm:$0xff] %vm1745, %v7036
      %7069 = vst.msk [vmem:[%s278 + $0xa0] sm:$0xff] %vm1745, %v7037
      %7070 = vst.msk [vmem:[%s278 + $0xa8] sm:$0xff] %vm1745, %v7038
      %7071 = vst.msk [vmem:[%s278 + $0xb0] sm:$0xff] %vm1745, %v7039
      %7072 = vst.msk [vmem:[%s278 + $0xb8] sm:$0xff] %vm1745, %v7040
      %7073 = vst.msk [vmem:[%s278 + $0xc0] sm:$0xff] %vm1745, %v7041
      %7074 = vst.msk [vmem:[%s278 + $0xc8] sm:$0xff] %vm1745, %v7042
      %7075 = vst.msk [vmem:[%s278 + $0xd0] sm:$0xff] %vm1745, %v7043
      %7076 = vst.msk [vmem:[%s278 + $0xd8] sm:$0xff] %vm1745, %v7044
      %7077 = vst.msk [vmem:[%s278 + $0xe0] sm:$0xff] %vm1745, %v7045
      %7078 = vst.msk [vmem:[%s278 + $0xe8] sm:$0xff] %vm1745, %v7046
      %7079 = vst.msk [vmem:[%s278 + $0xf0] sm:$0xff] %vm1745, %v7047
      %7080 = vst.msk [vmem:[%s278 + $0xf8] sm:$0xff] %vm1745, %v7048
      %p7081 = scmp.lt.s32.totalorder %s18, 1
      %s7082 = scalar_select %p7081, %s18, 1
      %s7083 = smul.addr %s7082, 32
      %s7084 = smul.addr %s7083, 8
      %s7085 = scalar_lea.vmem %s7, %s7084
      // Predicated region
      $region49: #{ssh_forward.1} parent=47 // pred_check
        %p7086 = pneg %p188
      $region50: #{ssh_forward.1} parent=47 // pred_check_branch
        %7088 = sbr.rel (%p7086) target = $region52
      $region51: #{ssh_forward.1} parent=47 // pred_region
        _
      $region52: #{ssh_forward.1} parent=47 // pred_fallthru
        _
    $region48: #{ssh_forward.1} parent=5 // pred_fallthru
      _
    %p7089 = scmp.le.s32.totalorder 2, %s13
    // Predicated region
    $region53: #{ssh_forward.1} parent=5 // pred_check
      %p7090 = pneg %p7089
    $region54: #{ssh_forward.1} parent=5 // pred_check_branch
      %7092 = sbr.rel (%p7090) target = $region56
    $region55: #{ssh_forward.1} parent=5 // pred_region
      %s7093 = ssub.s32 %s13, 2
      // Predicated region
      $region57: #{ssh_forward.1} parent=55 // pred_check
        %p7094 = pneg %p194
      $region58: #{ssh_forward.1} parent=55 // pred_check_branch
        %7096 = sbr.rel (%p7094) target = $region60
      $region59: #{ssh_forward.1} parent=55 // pred_region
        %p7097 = scmp.lt.s32.totalorder %s19, 1
        %s7098 = scalar_select %p7097, %s19, 1
        %s7099 = smul.addr %s7098, 32
        %s7100 = smul.addr %s7099, 8
        %s7101 = scalar_lea.vmem %s7, %s7100
      $region60: #{ssh_forward.1} parent=55 // pred_fallthru
        _
    $region56: #{ssh_forward.1} parent=5 // pred_fallthru
      _
  $region6: #{ssh_forward.1} parent=0 // loop_footer
    %s17 = sadd.s32 1, %s13
  $region7: #{ssh_forward.1} parent=0 // loop_footer_branch
    %12 = sbr.rel target = $region3
  $region8: #{ssh_forward.1} parent=0 // loop_exit
    _

</llo_original>
